<compile_context>
chip_gen: v7x
topology: tpu7x:2x2x1
jax: 0.10.0
libtpu: 0.0.40
codegen_flags: <defaults>
</compile_context>

<pallas_src>
import functools
import math

import jax
import jax.numpy as jnp
from jax.experimental import pallas as pl
from jax.experimental.pallas import tpu as pltpu


# ------------------------------ small helpers ------------------------------ #

def _pick_tile(dim, quantum, cap):
    """Largest multiple of `quantum` <= cap that divides dim.

    Falls back to `dim` itself (a full-extent block is always legal) when no
    such divisor exists; BERT-style dims (multiples of 64/128) never hit the
    fallback, so the intended VMEM cap is respected in practice.
    """
    if dim <= cap:
        return dim
    t = (cap // quantum) * quantum
    while t >= quantum:
        if dim % t == 0:
            return t
        t -= quantum
    return dim


@functools.lru_cache(maxsize=None)
def _vmem_limit_bytes():
    # ~75% of physical VMEM: ~96 MiB on v5e/v6e (128 MiB), ~48 MiB on v7x
    # (64 MiB).  Falls back to a safe 48 MiB if the query is unavailable.
    phys = 64 * 1024 * 1024
    try:
        info = pltpu.get_tpu_info()
        phys = int(getattr(info, "vmem_capacity_bytes", phys))
    except Exception:
        pass
    return int(min(phys * 3 // 4, 100 * 1024 * 1024))


def _erf_approx(x):
    # Abramowitz & Stegun 7.1.26 (max abs err ~1.5e-7); abs/exp/mul/add plus a
    # fast EUP reciprocal so it lowers cleanly (and cheaply) inside a kernel.
    p = 0.3275911
    a1, a2, a3, a4, a5 = (0.254829592, -0.284496736, 1.421413741,
                          -1.453152027, 1.061405429)
    ax = jnp.abs(x)
    t = pl.reciprocal(1.0 + p * ax, approx=True)
    poly = ((((a5 * t + a4) * t + a3) * t + a2) * t + a1) * t
    y = 1.0 - poly * jnp.exp(-ax * ax)
    return jnp.where(x >= 0, y, -y)


def _gelu_erf(x):
    # exact-erf GELU (PyTorch activation='gelu'), erf via A&S approximation
    return 0.5 * x * (1.0 + _erf_approx(x * 0.7071067811865476))


# ----------------------------- Pallas kernels ------------------------------ #

def _mm_bias_kernel(x_ref, w_ref, b_ref, o_ref, acc_ref, *, activation):
    # o = act(x @ w + b); x/w bf16 -> MXU, K-accumulated in f32 VMEM scratch.
    @pl.when(pl.program_id(2) == 0)
    def _():
        acc_ref[...] = jnp.zeros_like(acc_ref)

    acc_ref[...] += jnp.dot(x_ref[...], w_ref[...],
                            preferred_element_type=jnp.float32)

    @pl.when(pl.program_id(2) == pl.num_programs(2) - 1)
    def _():
        y = acc_ref[...] + b_ref[...]
        if activation is not None:
            y = activation(y)
        o_ref[...] = y.astype(o_ref.dtype)


def _mm_bias_add_ln_kernel(x_ref, w_ref, b_ref, r_ref, g_ref, bb_ref,
                           o_ref, acc_ref):
    # o = LayerNorm(x @ w + b + residual) * gamma + beta   (eps = 1e-5)
    @pl.when(pl.program_id(1) == 0)
    def _():
        acc_ref[...] = jnp.zeros_like(acc_ref)

    acc_ref[...] += jnp.dot(x_ref[...], w_ref[...],
                            preferred_element_type=jnp.float32)

    @pl.when(pl.program_id(1) == pl.num_programs(1) - 1)
    def _():
        y = acc_ref[...] + b_ref[...] + r_ref[...].astype(jnp.float32)
        mu = jnp.mean(y, axis=-1, keepdims=True)
        var = jnp.mean(jnp.square(y - mu), axis=-1, keepdims=True)
        o_ref[...] = ((y - mu) * jax.lax.rsqrt(var + 1e-5) * g_ref[...]
                      + bb_ref[...]).astype(o_ref.dtype)


def _attention_kernel(qkv_ref, bias_ref, o_ref, *, n_head, head_dim, scale):
    # One batch per grid step.  qkv_ref: (S, 3*D) bf16; bias_ref: (1, H, S)
    # additive key bias (0 / -1e9); o_ref: (S, D) bf16 (heads concatenated in
    # the column order the out-projection expects — no XLA transposes).
    # Heads are processed in pairs and each pair's context is stored directly
    # into its o_ref column slice: only 2 contexts live at a time (no H-wide
    # concatenate) and stores are 2*head_dim lanes wide (128 for BERT-base).
    d_model = n_head * head_dim
    bias = bias_ref[0]                                    # (H, S) f32
    pair = 2 if n_head % 2 == 0 else 1
    for h0 in range(0, n_head, pair):
        pair_ctx = []
        for h in range(h0, h0 + pair):
            lo = h * head_dim
            q = qkv_ref[:, lo:lo + head_dim]              # (S, hd) bf16
            k = qkv_ref[:, d_model + lo:d_model + lo + head_dim]
            v = qkv_ref[:, 2 * d_model + lo:2 * d_model + lo + head_dim]
            s = jax.lax.dot_general(q, k, (((1,), (1,)), ((), ())),
                                    preferred_element_type=jnp.float32) * scale
            s = s + bias[h:h + 1, :]                      # (S, S) + (1, S)
            m = jnp.max(s, axis=-1, keepdims=True)
            p = jnp.exp(s - m)
            denom = jnp.sum(p, axis=-1, keepdims=True)
            p = p * pl.reciprocal(denom, approx=True)
            ctx = jnp.dot(p.astype(v.dtype), v,
                          preferred_element_type=jnp.float32)
            pair_ctx.append(ctx.astype(o_ref.dtype))
        lo0 = h0 * head_dim
        o_ref[:, lo0:lo0 + pair * head_dim] = (
            pair_ctx[0] if pair == 1 else jnp.concatenate(pair_ctx, axis=-1))
    # TODO(synk): for very long sequences / v7x dual-core balance, block the
    # query dim flash-style and grid over (batch, q-tile) marked parallel.


def _cls_head_kernel(x_ref, w_ref, b_ref, o_ref):
    # log_softmax(x @ w + b) over the (128-padded) label axis.
    z = jnp.dot(x_ref[...], w_ref[...],
                preferred_element_type=jnp.float32) + b_ref[...]
    m = jnp.max(z, axis=-1, keepdims=True)
    s = z - m
    lse = jnp.log(jnp.sum(jnp.exp(s), axis=-1, keepdims=True))
    o_ref[...] = s - lse


# ----------------------------- kernel wrappers ------------------------------ #

def matmul_bias(x, w, b, *, out_dtype=jnp.bfloat16, activation=None):
    M, K = x.shape
    N = w.shape[1]
    tm = _pick_tile(M, 16, 512)
    tn = _pick_tile(N, 128, 1024)
    tk = _pick_tile(K, 128, 512)
    kern = functools.partial(_mm_bias_kernel, activation=activation)
    return pl.pallas_call(
        kern,
        out_shape=jax.ShapeDtypeStruct((M, N), out_dtype),
        grid=(M // tm, N // tn, K // tk),
        in_specs=[
            pl.BlockSpec((tm, tk), lambda i, j, k: (i, k)),
            pl.BlockSpec((tk, tn), lambda i, j, k: (k, j)),
            pl.BlockSpec((1, tn), lambda i, j, k: (0, j)),
        ],
        out_specs=pl.BlockSpec((tm, tn), lambda i, j, k: (i, j)),
        scratch_shapes=[pltpu.VMEM((tm, tn), jnp.float32)],
        compiler_params=pltpu.CompilerParams(
            dimension_semantics=("parallel", "parallel", "arbitrary"),
            vmem_limit_bytes=_vmem_limit_bytes()),
    )(x, w, b.reshape(1, N))


def matmul_bias_add_layernorm(x, w, b, residual, gamma, beta):
    # N is kept whole (LayerNorm reduces over the full model dim); bf16 out.
    M, K = x.shape
    N = w.shape[1]
    tm = _pick_tile(M, 16, 512)
    tk = _pick_tile(K, 128, 512)
    return pl.pallas_call(
        _mm_bias_add_ln_kernel,
        out_shape=jax.ShapeDtypeStruct((M, N), jnp.bfloat16),
        grid=(M // tm, K // tk),
        in_specs=[
            pl.BlockSpec((tm, tk), lambda i, k: (i, k)),
            pl.BlockSpec((tk, N), lambda i, k: (k, 0)),
            pl.BlockSpec((1, N), lambda i, k: (0, 0)),
            pl.BlockSpec((tm, N), lambda i, k: (i, 0)),
            pl.BlockSpec((1, N), lambda i, k: (0, 0)),
            pl.BlockSpec((1, N), lambda i, k: (0, 0)),
        ],
        out_specs=pl.BlockSpec((tm, N), lambda i, k: (i, 0)),
        scratch_shapes=[pltpu.VMEM((tm, N), jnp.float32)],
        compiler_params=pltpu.CompilerParams(
            dimension_semantics=("parallel", "arbitrary"),
            vmem_limit_bytes=_vmem_limit_bytes()),
    )(x, w, b.reshape(1, N), residual, gamma.reshape(1, N), beta.reshape(1, N))


def attention(qkv, bias3, B, S, n_head, head_dim):
    d_model = n_head * head_dim
    kern = functools.partial(_attention_kernel, n_head=n_head,
                             head_dim=head_dim, scale=1.0 / math.sqrt(head_dim))
    return pl.pallas_call(
        kern,
        out_shape=jax.ShapeDtypeStruct((B * S, d_model), jnp.bfloat16),
        grid=(B,),
        in_specs=[
            pl.BlockSpec((S, 3 * d_model), lambda b: (b, 0)),
            pl.BlockSpec((1, n_head, S), lambda b: (b, 0, 0)),
        ],
        out_specs=pl.BlockSpec((S, d_model), lambda b: (b, 0)),
        compiler_params=pltpu.CompilerParams(
            dimension_semantics=("parallel",),
            vmem_limit_bytes=_vmem_limit_bytes()),
    )(qkv, bias3)


def classifier_log_softmax(x, w, b):
    # Pad the label dim to a lane-dense multiple of 128 (zero weight columns,
    # -1e9 bias columns -> log-softmax over the real labels is unchanged),
    # keep the kernel store unmasked, slice the real labels outside.
    M, K = x.shape
    n_labels = w.shape[1]
    n_pad = max(128, pl.cdiv(n_labels, 128) * 128)
    w_p = jnp.zeros((K, n_pad), w.dtype).at[:, :n_labels].set(w)
    b_p = jnp.full((1, n_pad), -1e9, jnp.float32).at[0, :n_labels].set(
        b.astype(jnp.float32))
    tm = _pick_tile(M, 16, 256)
    out = pl.pallas_call(
        _cls_head_kernel,
        out_shape=jax.ShapeDtypeStruct((M, n_pad), jnp.float32),
        grid=(M // tm,),
        in_specs=[
            pl.BlockSpec((tm, K), lambda i: (i, 0)),
            pl.BlockSpec((K, n_pad), lambda i: (0, 0)),
            pl.BlockSpec((1, n_pad), lambda i: (0, 0)),
        ],
        out_specs=pl.BlockSpec((tm, n_pad), lambda i: (i, 0)),
        compiler_params=pltpu.CompilerParams(
            dimension_semantics=("parallel",),
            vmem_limit_bytes=_vmem_limit_bytes()),
    )(x, w_p, b_p)
    return out[:, :n_labels]


# ------------------------------- model glue -------------------------------- #

def encoder_layer(x2d, p, bias3, B, S, H, hd):
    # post-LN transformer encoder layer; dropout == identity (eval mode)
    qkv = matmul_bias(x2d, p["w_qkv"], p["b_qkv"])
    attn = attention(qkv, bias3, B, S, H, hd)
    h1 = matmul_bias_add_layernorm(attn, p["w_out"], p["b_out"], x2d,
                                   p["ln1_g"], p["ln1_b"])
    ff = matmul_bias(h1, p["w_ff1"], p["b_ff1"], activation=_gelu_erf)
    h2 = matmul_bias_add_layernorm(ff, p["w_ff2"], p["b_ff2"], h1,
                                   p["ln2_g"], p["ln2_b"])
    return h2


def bert_token_classification_forward(params, token_ids, position_ids,
                                      segment_ids, n_head):
    B, S = token_ids.shape
    D = params["tok_table"].shape[1]
    H = n_head
    hd = D // H

    # attention mask exactly as the PyTorch module builds it:
    # (token_ids > 0).unsqueeze(1).repeat(n_head, S, 1) -> flat head index
    # bh = b*H + h reads batch row (bh % B); True => disallowed => additive
    # large-negative bias (finite -1e9 avoids the all-masked-row NaN hazard).
    # TODO(synk): mask polarity / cross-batch head mixing reproduced verbatim
    # from the reference module.
    key_disallow = token_ids > 0                                   # (B, S)
    bias_rows = jnp.where(key_disallow, -1e9, 0.0).astype(jnp.float32)
    bias3 = jnp.tile(bias_rows, (H, 1)).reshape(B, H, S)           # (B, H, S)

    # BertEmbedding: token + position + segment (dropout == identity).
    # TODO(synk): the data-dependent embedding gathers stay in XLA; the sum is
    # fused by XLA and handed to the encoder as bf16 (halves activation DMA).
    te = jnp.take(params["tok_table"], token_ids, axis=0)
    pe = jnp.take(params["pos_table"], position_ids, axis=0)
    se = jnp.take(params["seg_table"], segment_ids, axis=0)
    x = (te + pe + se).astype(jnp.bfloat16).reshape(B * S, D)      # (B*S, D)

    for lp in params["layers"]:
        x = encoder_layer(x, lp, bias3, B, S, H, hd)

    # classification head: Linear(d_model, n_labels) + LogSoftmax(dim=-1)
    logp = classifier_log_softmax(x, params["cls_w"], params["cls_b"])
    return logp.reshape(B, S, -1)


# ------------------------------ parameter init ------------------------------ #

def init_params(key, vocab_size, max_len, n_segment, n_layer, d_model, n_head,
                n_labels):
    std = 0.02
    d_ff = 4 * d_model

    def nxt():
        nonlocal key
        key, sub = jax.random.split(key)
        return sub

    def normal(shape, dtype=jnp.float32):
        return (std * jax.random.normal(nxt(), shape)).astype(dtype)

    # embedding tables; padding_idx=0 => zero out row 0
    tok = normal((vocab_size, d_model)).at[0].set(0.0)
    pos = normal((max_len, d_model)).at[0].set(0.0)
    seg = normal((n_segment, d_model)).at[0].set(0.0)

    layers = []
    for _ in range(n_layer):
        layers.append(dict(
            w_qkv=normal((d_model, 3 * d_model), jnp.bfloat16),
            b_qkv=jnp.zeros((3 * d_model,), jnp.float32),
            w_out=normal((d_model, d_model), jnp.bfloat16),
            b_out=jnp.zeros((d_model,), jnp.float32),
            w_ff1=normal((d_model, d_ff), jnp.bfloat16),
            b_ff1=jnp.zeros((d_ff,), jnp.float32),
            w_ff2=normal((d_ff, d_model), jnp.bfloat16),
            b_ff2=jnp.zeros((d_model,), jnp.float32),
            ln1_g=jnp.ones((d_model,), jnp.float32),
            ln1_b=jnp.zeros((d_model,), jnp.float32),
            ln2_g=jnp.ones((d_model,), jnp.float32),
            ln2_b=jnp.zeros((d_model,), jnp.float32),
        ))
    return dict(tok_table=tok, pos_table=pos, seg_table=seg, layers=layers,
                cls_w=normal((d_model, n_labels), jnp.bfloat16),
                cls_b=jnp.zeros((n_labels,), jnp.float32))


# ---------------------------------- main ------------------------------------ #

if __name__ == "__main__":
    # small config (scaled down from vocab=30522, max_len=512, d_model=768, 12 heads)
    VOCAB, MAX_LEN, N_SEG = 100, 32, 2
    N_LAYER, D_MODEL, N_HEAD, N_LABELS = 2, 128, 4, 9
    B, S = 2, 16

    root = jax.random.PRNGKey(0)
    pkey, tkey = jax.random.split(root)
    params = init_params(pkey, VOCAB, MAX_LEN, N_SEG, N_LAYER, D_MODEL, N_HEAD,
                         N_LABELS)

    token_ids = jax.random.randint(tkey, (B, S), 1, VOCAB, dtype=jnp.int32)
    # keep some pad (0) tokens so no attention row is fully masked
    token_ids = token_ids.at[:, S // 2:].set(0)
    position_ids = jnp.broadcast_to(jnp.arange(S, dtype=jnp.int32), (B, S))
    segment_ids = jnp.concatenate(
        [jnp.zeros((B, S // 2), jnp.int32), jnp.ones((B, S // 2), jnp.int32)],
        axis=1)

    fwd = jax.jit(functools.partial(bert_token_classification_forward,
                                    n_head=N_HEAD))
    out = jax.block_until_ready(fwd(params, token_ids, position_ids, segment_ids))

    assert out.shape == (B, S, N_LABELS), out.shape
    assert bool(jnp.all(jnp.isfinite(out)))
    # log-softmax rows must exponentiate to 1
    row_sums = jnp.exp(out).sum(axis=-1)
    assert bool(jnp.all(jnp.abs(row_sums - 1.0) < 1e-3))
    # TODO(synk): dropout layers are stochastic; implemented as identity (eval mode).
    print("KERNEL_OK")
</pallas_src>

<mosaic_0001>
module attributes {stable_mosaic.version = 11 : i64} {
  func.func @_mm_bias_kernel(%arg0: i32, %arg1: i32, %arg2: i32, %arg3: memref<32x128xbf16, #tpu.memory_space<vmem>>, %arg4: memref<128x384xbf16, #tpu.memory_space<vmem>>, %arg5: memref<1x384xf32, #tpu.memory_space<vmem>>, %arg6: memref<32x384xbf16, #tpu.memory_space<vmem>>, %arg7: memref<32x384xf32, #tpu.memory_space<vmem>>) attributes {dimension_semantics = [#tpu.dimension_semantics<parallel>, #tpu.dimension_semantics<parallel>, #tpu.dimension_semantics<arbitrary>], iteration_bounds = array<i64: 1, 1, 1>, scalar_prefetch = 0 : i64, scratch_operands = 1 : i64, tpu.core_type = #tpu.core_type<tc>, window_params = [{transform_indices = @transform_0, window_bounds = array<i64: 32, 128>}, {transform_indices = @transform_1, window_bounds = array<i64: 128, 384>}, {transform_indices = @transform_2, window_bounds = array<i64: 1, 384>}, {transform_indices = @transform_3, window_bounds = array<i64: 32, 384>}]} {
    %c0_i32 = arith.constant 0 : i32
    %0 = arith.cmpi eq, %arg2, %c0_i32 : i32
    %1 = arith.extui %0 : i1 to i32
    %c0_i32_0 = arith.constant 0 : i32
    %2 = arith.cmpi ne, %1, %c0_i32_0 : i32
    scf.if %2 {
      %cst_10 = arith.constant 0.000000e+00 : f32
      %12 = vector.broadcast %cst_10 : f32 to vector<32x384xf32>
      %c0_11 = arith.constant 0 : index
      %c0_12 = arith.constant 0 : index
      %13 = vector.load %arg7[%c0_11, %c0_12] : memref<32x384xf32, #tpu.memory_space<vmem>>, vector<32x384xf32>
      tpu.vector_store %arg7[%c0_11, %c0_12], %12 {strides = array<i32>} : memref<32x384xf32, #tpu.memory_space<vmem>>, vector<32x384xf32>,
    } else {
    }
    %c0 = arith.constant 0 : index
    %c0_1 = arith.constant 0 : index
    %3 = vector.load %arg7[%c0, %c0_1] : memref<32x384xf32, #tpu.memory_space<vmem>>, vector<32x384xf32>
    %c0_2 = arith.constant 0 : index
    %c0_3 = arith.constant 0 : index
    %4 = vector.load %arg3[%c0_2, %c0_3] : memref<32x128xbf16, #tpu.memory_space<vmem>>, vector<32x128xbf16>
    %c0_4 = arith.constant 0 : index
    %c0_5 = arith.constant 0 : index
    %5 = vector.load %arg4[%c0_4, %c0_5] : memref<128x384xbf16, #tpu.memory_space<vmem>>, vector<128x384xbf16>
    %cst = arith.constant dense<0.000000e+00> : vector<32x384xf32>
    %6 = tpu.matmul %4, %5, %cst {dimension_numbers = #tpu.dot_dimension_numbers<[1], [0], [0], [1], [0, 0, 1, 1], [], []>} : vector<32x128xbf16>, vector<128x384xbf16>, vector<32x384xf32> -> vector<32x384xf32>
    %7 = arith.addf %3, %6 : vector<32x384xf32>
    %c0_6 = arith.constant 0 : index
    %c0_7 = arith.constant 0 : index
    %8 = vector.load %arg7[%c0_6, %c0_7] : memref<32x384xf32, #tpu.memory_space<vmem>>, vector<32x384xf32>
    tpu.vector_store %arg7[%c0_6, %c0_7], %7 {strides = array<i32>} : memref<32x384xf32, #tpu.memory_space<vmem>>, vector<32x384xf32>,
    %c0_i32_8 = arith.constant 0 : i32
    %9 = arith.cmpi eq, %arg2, %c0_i32_8 : i32
    %10 = arith.extui %9 : i1 to i32
    %c0_i32_9 = arith.constant 0 : i32
    %11 = arith.cmpi ne, %10, %c0_i32_9 : i32
    scf.if %11 {
      %c0_10 = arith.constant 0 : index
      %c0_11 = arith.constant 0 : index
      %12 = vector.load %arg7[%c0_10, %c0_11] : memref<32x384xf32, #tpu.memory_space<vmem>>, vector<32x384xf32>
      %c0_12 = arith.constant 0 : index
      %c0_13 = arith.constant 0 : index
      %13 = vector.load %arg5[%c0_12, %c0_13] : memref<1x384xf32, #tpu.memory_space<vmem>>, vector<1x384xf32>
      %14 = vector.broadcast %13 : vector<1x384xf32> to vector<32x384xf32>
      %15 = arith.addf %12, %14 : vector<32x384xf32>
      %16 = arith.truncf %15 : vector<32x384xf32> to vector<32x384xbf16>
      %c0_14 = arith.constant 0 : index
      %c0_15 = arith.constant 0 : index
      %17 = vector.load %arg6[%c0_14, %c0_15] : memref<32x384xbf16, #tpu.memory_space<vmem>>, vector<32x384xbf16>
      tpu.vector_store %arg6[%c0_14, %c0_15], %16 {strides = array<i32>} : memref<32x384xbf16, #tpu.memory_space<vmem>>, vector<32x384xbf16>,
    } else {
    }
    return
  }
  func.func @transform_0(%arg0: i32, %arg1: i32, %arg2: i32) -> (i32, i32) {
    %c0_i32 = arith.constant 0 : i32
    return %arg0, %arg2 : i32, i32
  }
  func.func @transform_1(%arg0: i32, %arg1: i32, %arg2: i32) -> (i32, i32) {
    %c0_i32 = arith.constant 0 : i32
    return %arg2, %arg1 : i32, i32
  }
  func.func @transform_2(%arg0: i32, %arg1: i32, %arg2: i32) -> (i32, i32) {
    %c0_i32 = arith.constant 0 : i32
    %c0_i32_0 = arith.constant 0 : i32
    return %c0_i32, %arg1 : i32, i32
  }
  func.func @transform_3(%arg0: i32, %arg1: i32, %arg2: i32) -> (i32, i32) {
    %c0_i32 = arith.constant 0 : i32
    return %arg0, %arg1 : i32, i32
  }
}

module attributes {stable_mosaic.version = 11 : i64} {
  func.func @_attention_kernel(%arg0: i32, %arg1: memref<16x384xbf16, #tpu.memory_space<vmem>>, %arg2: memref<1x4x16xf32, #tpu.memory_space<vmem>>, %arg3: memref<16x128xbf16, #tpu.memory_space<vmem>>) attributes {dimension_semantics = [#tpu.dimension_semantics<parallel>], iteration_bounds = array<i64: 2>, scalar_prefetch = 0 : i64, scratch_operands = 0 : i64, tpu.core_type = #tpu.core_type<tc>, window_params = [{transform_indices = @transform_0, window_bounds = array<i64: 16, 384>}, {transform_indices = @transform_1, window_bounds = array<i64: 1, 4, 16>}, {transform_indices = @transform_2, window_bounds = array<i64: 16, 128>}]} {
    %c0 = arith.constant 0 : index
    %c0_0 = arith.constant 0 : index
    %c0_1 = arith.constant 0 : index
    %0 = vector.load %arg2[%c0, %c0_0, %c0_1] : memref<1x4x16xf32, #tpu.memory_space<vmem>>, vector<1x4x16xf32>
    %1 = vector.shape_cast %0 : vector<1x4x16xf32> to vector<4x16xf32>
    %c0_2 = arith.constant 0 : index
    %c0_3 = arith.constant 0 : index
    %2 = vector.load %arg1[%c0_2, %c0_3] : memref<16x384xbf16, #tpu.memory_space<vmem>>, vector<16x32xbf16>
    %c0_4 = arith.constant 0 : index
    %c128 = arith.constant 128 : index
    %3 = vector.load %arg1[%c0_4, %c128] : memref<16x384xbf16, #tpu.memory_space<vmem>>, vector<16x32xbf16>
    %c0_5 = arith.constant 0 : index
    %c256 = arith.constant 256 : index
    %4 = vector.load %arg1[%c0_5, %c256] : memref<16x384xbf16, #tpu.memory_space<vmem>>, vector<16x32xbf16>
    %cst = arith.constant dense<0.000000e+00> : vector<16x16xf32>
    %5 = tpu.matmul %2, %3, %cst {dimension_numbers = #tpu.dot_dimension_numbers<[1], [1], [0], [0], [0, 0, 1, 0], [], []>} : vector<16x32xbf16>, vector<16x32xbf16>, vector<16x16xf32> -> vector<16x16xf32>
    %cst_6 = arith.constant 0.176776692 : f32
    %6 = vector.broadcast %cst_6 : f32 to vector<16x16xf32>
    %7 = arith.mulf %5, %6 : vector<16x16xf32>
    %8 = vector.extract_strided_slice %1 {offsets = [0, 0], sizes = [1, 16], strides = [1, 1]} : vector<4x16xf32> to vector<1x16xf32>
    %9 = vector.broadcast %8 : vector<1x16xf32> to vector<16x16xf32>
    %10 = arith.addf %7, %9 : vector<16x16xf32>
    %cst_7 = arith.constant dense<0xFF800000> : vector<16xf32>
    %11 = vector.multi_reduction <maximumf>, %10, %cst_7 [1] : vector<16x16xf32> to vector<16xf32>
    %12 = vector.shape_cast %11 : vector<16xf32> to vector<16x1xf32>
    %13 = vector.broadcast %12 : vector<16x1xf32> to vector<16x16xf32>
    %14 = arith.subf %10, %13 : vector<16x16xf32>
    %15 = math.exp %14 : vector<16x16xf32>
    %cst_8 = arith.constant dense<0.000000e+00> : vector<16xf32>
    %16 = vector.multi_reduction <add>, %15, %cst_8 [1] : vector<16x16xf32> to vector<16xf32>
    %17 = vector.shape_cast %16 : vector<16xf32> to vector<16x1xf32>
    %18 = tpu.reciprocal %17 {approx = true} : vector<16x1xf32> -> vector<16x1xf32>
    %19 = vector.broadcast %18 : vector<16x1xf32> to vector<16x16xf32>
    %20 = arith.mulf %15, %19 : vector<16x16xf32>
    %21 = arith.truncf %20 : vector<16x16xf32> to vector<16x16xbf16>
    %cst_9 = arith.constant dense<0.000000e+00> : vector<16x32xf32>
    %22 = tpu.matmul %21, %4, %cst_9 {dimension_numbers = #tpu.dot_dimension_numbers<[1], [0], [0], [1], [0, 0, 1, 1], [], []>} : vector<16x16xbf16>, vector<16x32xbf16>, vector<16x32xf32> -> vector<16x32xf32>
    %23 = arith.truncf %22 : vector<16x32xf32> to vector<16x32xbf16>
    %c0_10 = arith.constant 0 : index
    %c32 = arith.constant 32 : index
    %24 = vector.load %arg1[%c0_10, %c32] : memref<16x384xbf16, #tpu.memory_space<vmem>>, vector<16x32xbf16>
    %c0_11 = arith.constant 0 : index
    %c160 = arith.constant 160 : index
    %25 = vector.load %arg1[%c0_11, %c160] : memref<16x384xbf16, #tpu.memory_space<vmem>>, vector<16x32xbf16>
    %c0_12 = arith.constant 0 : index
    %c288 = arith.constant 288 : index
    %26 = vector.load %arg1[%c0_12, %c288] : memref<16x384xbf16, #tpu.memory_space<vmem>>, vector<16x32xbf16>
    %cst_13 = arith.constant dense<0.000000e+00> : vector<16x16xf32>
    %27 = tpu.matmul %24, %25, %cst_13 {dimension_numbers = #tpu.dot_dimension_numbers<[1], [1], [0], [0], [0, 0, 1, 0], [], []>} : vector<16x32xbf16>, vector<16x32xbf16>, vector<16x16xf32> -> vector<16x16xf32>
    %cst_14 = arith.constant 0.176776692 : f32
    %28 = vector.broadcast %cst_14 : f32 to vector<16x16xf32>
    %29 = arith.mulf %27, %28 : vector<16x16xf32>
    %30 = vector.extract_strided_slice %1 {offsets = [1, 0], sizes = [1, 16], strides = [1, 1]} : vector<4x16xf32> to vector<1x16xf32>
    %31 = vector.broadcast %30 : vector<1x16xf32> to vector<16x16xf32>
    %32 = arith.addf %29, %31 : vector<16x16xf32>
    %cst_15 = arith.constant dense<0xFF800000> : vector<16xf32>
    %33 = vector.multi_reduction <maximumf>, %32, %cst_15 [1] : vector<16x16xf32> to vector<16xf32>
    %34 = vector.shape_cast %33 : vector<16xf32> to vector<16x1xf32>
    %35 = vector.broadcast %34 : vector<16x1xf32> to vector<16x16xf32>
    %36 = arith.subf %32, %35 : vector<16x16xf32>
    %37 = math.exp %36 : vector<16x16xf32>
    %cst_16 = arith.constant dense<0.000000e+00> : vector<16xf32>
    %38 = vector.multi_reduction <add>, %37, %cst_16 [1] : vector<16x16xf32> to vector<16xf32>
    %39 = vector.shape_cast %38 : vector<16xf32> to vector<16x1xf32>
    %40 = tpu.reciprocal %39 {approx = true} : vector<16x1xf32> -> vector<16x1xf32>
    %41 = vector.broadcast %40 : vector<16x1xf32> to vector<16x16xf32>
    %42 = arith.mulf %37, %41 : vector<16x16xf32>
    %43 = arith.truncf %42 : vector<16x16xf32> to vector<16x16xbf16>
    %cst_17 = arith.constant dense<0.000000e+00> : vector<16x32xf32>
    %44 = tpu.matmul %43, %26, %cst_17 {dimension_numbers = #tpu.dot_dimension_numbers<[1], [0], [0], [1], [0, 0, 1, 1], [], []>} : vector<16x16xbf16>, vector<16x32xbf16>, vector<16x32xf32> -> vector<16x32xf32>
    %45 = arith.truncf %44 : vector<16x32xf32> to vector<16x32xbf16>
    %46 = tpu.concatenate %23, %45 in 1 : vector<16x32xbf16>, vector<16x32xbf16> -> vector<16x64xbf16>
    %c0_18 = arith.constant 0 : index
    %c0_19 = arith.constant 0 : index
    %47 = vector.load %arg3[%c0_18, %c0_19] : memref<16x128xbf16, #tpu.memory_space<vmem>>, vector<16x64xbf16>
    tpu.vector_store %arg3[%c0_18, %c0_19], %46 {strides = array<i32>} : memref<16x128xbf16, #tpu.memory_space<vmem>>, vector<16x64xbf16>,
    %c0_20 = arith.constant 0 : index
    %c64 = arith.constant 64 : index
    %48 = vector.load %arg1[%c0_20, %c64] : memref<16x384xbf16, #tpu.memory_space<vmem>>, vector<16x32xbf16>
    %c0_21 = arith.constant 0 : index
    %c192 = arith.constant 192 : index
    %49 = vector.load %arg1[%c0_21, %c192] : memref<16x384xbf16, #tpu.memory_space<vmem>>, vector<16x32xbf16>
    %c0_22 = arith.constant 0 : index
    %c320 = arith.constant 320 : index
    %50 = vector.load %arg1[%c0_22, %c320] : memref<16x384xbf16, #tpu.memory_space<vmem>>, vector<16x32xbf16>
    %cst_23 = arith.constant dense<0.000000e+00> : vector<16x16xf32>
    %51 = tpu.matmul %48, %49, %cst_23 {dimension_numbers = #tpu.dot_dimension_numbers<[1], [1], [0], [0], [0, 0, 1, 0], [], []>} : vector<16x32xbf16>, vector<16x32xbf16>, vector<16x16xf32> -> vector<16x16xf32>
    %cst_24 = arith.constant 0.176776692 : f32
    %52 = vector.broadcast %cst_24 : f32 to vector<16x16xf32>
    %53 = arith.mulf %51, %52 : vector<16x16xf32>
    %54 = vector.extract_strided_slice %1 {offsets = [2, 0], sizes = [1, 16], strides = [1, 1]} : vector<4x16xf32> to vector<1x16xf32>
    %55 = vector.broadcast %54 : vector<1x16xf32> to vector<16x16xf32>
    %56 = arith.addf %53, %55 : vector<16x16xf32>
    %cst_25 = arith.constant dense<0xFF800000> : vector<16xf32>
    %57 = vector.multi_reduction <maximumf>, %56, %cst_25 [1] : vector<16x16xf32> to vector<16xf32>
    %58 = vector.shape_cast %57 : vector<16xf32> to vector<16x1xf32>
    %59 = vector.broadcast %58 : vector<16x1xf32> to vector<16x16xf32>
    %60 = arith.subf %56, %59 : vector<16x16xf32>
    %61 = math.exp %60 : vector<16x16xf32>
    %cst_26 = arith.constant dense<0.000000e+00> : vector<16xf32>
    %62 = vector.multi_reduction <add>, %61, %cst_26 [1] : vector<16x16xf32> to vector<16xf32>
    %63 = vector.shape_cast %62 : vector<16xf32> to vector<16x1xf32>
    %64 = tpu.reciprocal %63 {approx = true} : vector<16x1xf32> -> vector<16x1xf32>
    %65 = vector.broadcast %64 : vector<16x1xf32> to vector<16x16xf32>
    %66 = arith.mulf %61, %65 : vector<16x16xf32>
    %67 = arith.truncf %66 : vector<16x16xf32> to vector<16x16xbf16>
    %cst_27 = arith.constant dense<0.000000e+00> : vector<16x32xf32>
    %68 = tpu.matmul %67, %50, %cst_27 {dimension_numbers = #tpu.dot_dimension_numbers<[1], [0], [0], [1], [0, 0, 1, 1], [], []>} : vector<16x16xbf16>, vector<16x32xbf16>, vector<16x32xf32> -> vector<16x32xf32>
    %69 = arith.truncf %68 : vector<16x32xf32> to vector<16x32xbf16>
    %c0_28 = arith.constant 0 : index
    %c96 = arith.constant 96 : index
    %70 = vector.load %arg1[%c0_28, %c96] : memref<16x384xbf16, #tpu.memory_space<vmem>>, vector<16x32xbf16>
    %c0_29 = arith.constant 0 : index
    %c224 = arith.constant 224 : index
    %71 = vector.load %arg1[%c0_29, %c224] : memref<16x384xbf16, #tpu.memory_space<vmem>>, vector<16x32xbf16>
    %c0_30 = arith.constant 0 : index
    %c352 = arith.constant 352 : index
    %72 = vector.load %arg1[%c0_30, %c352] : memref<16x384xbf16, #tpu.memory_space<vmem>>, vector<16x32xbf16>
    %cst_31 = arith.constant dense<0.000000e+00> : vector<16x16xf32>
    %73 = tpu.matmul %70, %71, %cst_31 {dimension_numbers = #tpu.dot_dimension_numbers<[1], [1], [0], [0], [0, 0, 1, 0], [], []>} : vector<16x32xbf16>, vector<16x32xbf16>, vector<16x16xf32> -> vector<16x16xf32>
    %cst_32 = arith.constant 0.176776692 : f32
    %74 = vector.broadcast %cst_32 : f32 to vector<16x16xf32>
    %75 = arith.mulf %73, %74 : vector<16x16xf32>
    %76 = vector.extract_strided_slice %1 {offsets = [3, 0], sizes = [1, 16], strides = [1, 1]} : vector<4x16xf32> to vector<1x16xf32>
    %77 = vector.broadcast %76 : vector<1x16xf32> to vector<16x16xf32>
    %78 = arith.addf %75, %77 : vector<16x16xf32>
    %cst_33 = arith.constant dense<0xFF800000> : vector<16xf32>
    %79 = vector.multi_reduction <maximumf>, %78, %cst_33 [1] : vector<16x16xf32> to vector<16xf32>
    %80 = vector.shape_cast %79 : vector<16xf32> to vector<16x1xf32>
    %81 = vector.broadcast %80 : vector<16x1xf32> to vector<16x16xf32>
    %82 = arith.subf %78, %81 : vector<16x16xf32>
    %83 = math.exp %82 : vector<16x16xf32>
    %cst_34 = arith.constant dense<0.000000e+00> : vector<16xf32>
    %84 = vector.multi_reduction <add>, %83, %cst_34 [1] : vector<16x16xf32> to vector<16xf32>
    %85 = vector.shape_cast %84 : vector<16xf32> to vector<16x1xf32>
    %86 = tpu.reciprocal %85 {approx = true} : vector<16x1xf32> -> vector<16x1xf32>
    %87 = vector.broadcast %86 : vector<16x1xf32> to vector<16x16xf32>
    %88 = arith.mulf %83, %87 : vector<16x16xf32>
    %89 = arith.truncf %88 : vector<16x16xf32> to vector<16x16xbf16>
    %cst_35 = arith.constant dense<0.000000e+00> : vector<16x32xf32>
    %90 = tpu.matmul %89, %72, %cst_35 {dimension_numbers = #tpu.dot_dimension_numbers<[1], [0], [0], [1], [0, 0, 1, 1], [], []>} : vector<16x16xbf16>, vector<16x32xbf16>, vector<16x32xf32> -> vector<16x32xf32>
    %91 = arith.truncf %90 : vector<16x32xf32> to vector<16x32xbf16>
    %92 = tpu.concatenate %69, %91 in 1 : vector<16x32xbf16>, vector<16x32xbf16> -> vector<16x64xbf16>
    %c0_36 = arith.constant 0 : index
    %c64_37 = arith.constant 64 : index
    %93 = vector.load %arg3[%c0_36, %c64_37] : memref<16x128xbf16, #tpu.memory_space<vmem>>, vector<16x64xbf16>
    tpu.vector_store %arg3[%c0_36, %c64_37], %92 {strides = array<i32>} : memref<16x128xbf16, #tpu.memory_space<vmem>>, vector<16x64xbf16>,
    return
  }
  func.func @transform_0(%arg0: i32) -> (i32, i32) {
    %c0_i32 = arith.constant 0 : i32
    %c0_i32_0 = arith.constant 0 : i32
    return %arg0, %c0_i32 : i32, i32
  }
  func.func @transform_1(%arg0: i32) -> (i32, i32, i32) {
    %c0_i32 = arith.constant 0 : i32
    %c0_i32_0 = arith.constant 0 : i32
    %c0_i32_1 = arith.constant 0 : i32
    return %arg0, %c0_i32, %c0_i32_0 : i32, i32, i32
  }
  func.func @transform_2(%arg0: i32) -> (i32, i32) {
    %c0_i32 = arith.constant 0 : i32
    %c0_i32_0 = arith.constant 0 : i32
    return %arg0, %c0_i32 : i32, i32
  }
}

module attributes {stable_mosaic.version = 11 : i64} {
  func.func @_mm_bias_add_ln_kernel(%arg0: i32, %arg1: i32, %arg2: memref<32x128xbf16, #tpu.memory_space<vmem>>, %arg3: memref<128x128xbf16, #tpu.memory_space<vmem>>, %arg4: memref<1x128xf32, #tpu.memory_space<vmem>>, %arg5: memref<32x128xbf16, #tpu.memory_space<vmem>>, %arg6: memref<1x128xf32, #tpu.memory_space<vmem>>, %arg7: memref<1x128xf32, #tpu.memory_space<vmem>>, %arg8: memref<32x128xbf16, #tpu.memory_space<vmem>>, %arg9: memref<32x128xf32, #tpu.memory_space<vmem>>) attributes {dimension_semantics = [#tpu.dimension_semantics<parallel>, #tpu.dimension_semantics<arbitrary>], iteration_bounds = array<i64: 1, 1>, scalar_prefetch = 0 : i64, scratch_operands = 1 : i64, tpu.core_type = #tpu.core_type<tc>, window_params = [{transform_indices = @transform_0, window_bounds = array<i64: 32, 128>}, {transform_indices = @transform_1, window_bounds = array<i64: 128, 128>}, {pipeline_mode = #tpu.pipeline_mode<synchronous>, transform_indices = @transform_2, window_bounds = array<i64: 1, 128>}, {transform_indices = @transform_3, window_bounds = array<i64: 32, 128>}, {pipeline_mode = #tpu.pipeline_mode<synchronous>, transform_indices = @transform_4, window_bounds = array<i64: 1, 128>}, {pipeline_mode = #tpu.pipeline_mode<synchronous>, transform_indices = @transform_5, window_bounds = array<i64: 1, 128>}, {transform_indices = @transform_6, window_bounds = array<i64: 32, 128>}]} {
    %c0_i32 = arith.constant 0 : i32
    %0 = arith.cmpi eq, %arg1, %c0_i32 : i32
    %1 = arith.extui %0 : i1 to i32
    %c0_i32_0 = arith.constant 0 : i32
    %2 = arith.cmpi ne, %1, %c0_i32_0 : i32
    scf.if %2 {
      %cst_10 = arith.constant 0.000000e+00 : f32
      %12 = vector.broadcast %cst_10 : f32 to vector<32x128xf32>
      %c0_11 = arith.constant 0 : index
      %c0_12 = arith.constant 0 : index
      %13 = vector.load %arg9[%c0_11, %c0_12] : memref<32x128xf32, #tpu.memory_space<vmem>>, vector<32x128xf32>
      tpu.vector_store %arg9[%c0_11, %c0_12], %12 {strides = array<i32>} : memref<32x128xf32, #tpu.memory_space<vmem>>, vector<32x128xf32>,
    } else {
    }
    %c0 = arith.constant 0 : index
    %c0_1 = arith.constant 0 : index
    %3 = vector.load %arg9[%c0, %c0_1] : memref<32x128xf32, #tpu.memory_space<vmem>>, vector<32x128xf32>
    %c0_2 = arith.constant 0 : index
    %c0_3 = arith.constant 0 : index
    %4 = vector.load %arg2[%c0_2, %c0_3] : memref<32x128xbf16, #tpu.memory_space<vmem>>, vector<32x128xbf16>
    %c0_4 = arith.constant 0 : index
    %c0_5 = arith.constant 0 : index
    %5 = vector.load %arg3[%c0_4, %c0_5] : memref<128x128xbf16, #tpu.memory_space<vmem>>, vector<128x128xbf16>
    %cst = arith.constant dense<0.000000e+00> : vector<32x128xf32>
    %6 = tpu.matmul %4, %5, %cst {dimension_numbers = #tpu.dot_dimension_numbers<[1], [0], [0], [1], [0, 0, 1, 1], [], []>} : vector<32x128xbf16>, vector<128x128xbf16>, vector<32x128xf32> -> vector<32x128xf32>
    %7 = arith.addf %3, %6 : vector<32x128xf32>
    %c0_6 = arith.constant 0 : index
    %c0_7 = arith.constant 0 : index
    %8 = vector.load %arg9[%c0_6, %c0_7] : memref<32x128xf32, #tpu.memory_space<vmem>>, vector<32x128xf32>
    tpu.vector_store %arg9[%c0_6, %c0_7], %7 {strides = array<i32>} : memref<32x128xf32, #tpu.memory_space<vmem>>, vector<32x128xf32>,
    %c0_i32_8 = arith.constant 0 : i32
    %9 = arith.cmpi eq, %arg1, %c0_i32_8 : i32
    %10 = arith.extui %9 : i1 to i32
    %c0_i32_9 = arith.constant 0 : i32
    %11 = arith.cmpi ne, %10, %c0_i32_9 : i32
    scf.if %11 {
      %c0_10 = arith.constant 0 : index
      %c0_11 = arith.constant 0 : index
      %12 = vector.load %arg9[%c0_10, %c0_11] : memref<32x128xf32, #tpu.memory_space<vmem>>, vector<32x128xf32>
      %c0_12 = arith.constant 0 : index
      %c0_13 = arith.constant 0 : index
      %13 = vector.load %arg4[%c0_12, %c0_13] : memref<1x128xf32, #tpu.memory_space<vmem>>, vector<1x128xf32>
      %14 = vector.broadcast %13 : vector<1x128xf32> to vector<32x128xf32>
      %15 = arith.addf %12, %14 : vector<32x128xf32>
      %c0_14 = arith.constant 0 : index
      %c0_15 = arith.constant 0 : index
      %16 = vector.load %arg5[%c0_14, %c0_15] : memref<32x128xbf16, #tpu.memory_space<vmem>>, vector<32x128xbf16>
      %17 = arith.extf %16 : vector<32x128xbf16> to vector<32x128xf32>
      %18 = arith.addf %15, %17 : vector<32x128xf32>
      %cst_16 = arith.constant dense<0.000000e+00> : vector<32xf32>
      %19 = vector.multi_reduction <add>, %18, %cst_16 [1] : vector<32x128xf32> to vector<32xf32>
      %20 = vector.shape_cast %19 : vector<32xf32> to vector<32x1xf32>
      %cst_17 = arith.constant 1.280000e+02 : f32
      %21 = vector.broadcast %cst_17 : f32 to vector<32x1xf32>
      %22 = arith.divf %20, %21 : vector<32x1xf32>
      %23 = vector.broadcast %22 : vector<32x1xf32> to vector<32x128xf32>
      %24 = arith.subf %18, %23 : vector<32x128xf32>
      %25 = arith.mulf %24, %24 : vector<32x128xf32>
      %cst_18 = arith.constant dense<0.000000e+00> : vector<32xf32>
      %26 = vector.multi_reduction <add>, %25, %cst_18 [1] : vector<32x128xf32> to vector<32xf32>
      %27 = vector.shape_cast %26 : vector<32xf32> to vector<32x1xf32>
      %cst_19 = arith.constant 1.280000e+02 : f32
      %28 = vector.broadcast %cst_19 : f32 to vector<32x1xf32>
      %29 = arith.divf %27, %28 : vector<32x1xf32>
      %30 = vector.broadcast %22 : vector<32x1xf32> to vector<32x128xf32>
      %31 = arith.subf %18, %30 : vector<32x128xf32>
      %cst_20 = arith.constant 9.99999974E-6 : f32
      %32 = vector.broadcast %cst_20 : f32 to vector<32x1xf32>
      %33 = arith.addf %29, %32 : vector<32x1xf32>
      %34 = math.rsqrt %33 : vector<32x1xf32>
      %35 = vector.broadcast %34 : vector<32x1xf32> to vector<32x128xf32>
      %36 = arith.mulf %31, %35 : vector<32x128xf32>
      %c0_21 = arith.constant 0 : index
      %c0_22 = arith.constant 0 : index
      %37 = vector.load %arg6[%c0_21, %c0_22] : memref<1x128xf32, #tpu.memory_space<vmem>>, vector<1x128xf32>
      %38 = vector.broadcast %37 : vector<1x128xf32> to vector<32x128xf32>
      %39 = arith.mulf %36, %38 : vector<32x128xf32>
      %c0_23 = arith.constant 0 : index
      %c0_24 = arith.constant 0 : index
      %40 = vector.load %arg7[%c0_23, %c0_24] : memref<1x128xf32, #tpu.memory_space<vmem>>, vector<1x128xf32>
      %41 = vector.broadcast %40 : vector<1x128xf32> to vector<32x128xf32>
      %42 = arith.addf %39, %41 : vector<32x128xf32>
      %43 = arith.truncf %42 : vector<32x128xf32> to vector<32x128xbf16>
      %c0_25 = arith.constant 0 : index
      %c0_26 = arith.constant 0 : index
      %44 = vector.load %arg8[%c0_25, %c0_26] : memref<32x128xbf16, #tpu.memory_space<vmem>>, vector<32x128xbf16>
      tpu.vector_store %arg8[%c0_25, %c0_26], %43 {strides = array<i32>} : memref<32x128xbf16, #tpu.memory_space<vmem>>, vector<32x128xbf16>,
    } else {
    }
    return
  }
  func.func @transform_0(%arg0: i32, %arg1: i32) -> (i32, i32) {
    %c0_i32 = arith.constant 0 : i32
    return %arg0, %arg1 : i32, i32
  }
  func.func @transform_1(%arg0: i32, %arg1: i32) -> (i32, i32) {
    %c0_i32 = arith.constant 0 : i32
    %c0_i32_0 = arith.constant 0 : i32
    return %arg1, %c0_i32 : i32, i32
  }
  func.func @transform_2(%arg0: i32, %arg1: i32) -> (i32, i32) {
    %c0_i32 = arith.constant 0 : i32
    %c0_i32_0 = arith.constant 0 : i32
    %c0_i32_1 = arith.constant 0 : i32
    return %c0_i32, %c0_i32_0 : i32, i32
  }
  func.func @transform_3(%arg0: i32, %arg1: i32) -> (i32, i32) {
    %c0_i32 = arith.constant 0 : i32
    %c0_i32_0 = arith.constant 0 : i32
    return %arg0, %c0_i32 : i32, i32
  }
  func.func @transform_4(%arg0: i32, %arg1: i32) -> (i32, i32) {
    %c0_i32 = arith.constant 0 : i32
    %c0_i32_0 = arith.constant 0 : i32
    %c0_i32_1 = arith.constant 0 : i32
    return %c0_i32, %c0_i32_0 : i32, i32
  }
  func.func @transform_5(%arg0: i32, %arg1: i32) -> (i32, i32) {
    %c0_i32 = arith.constant 0 : i32
    %c0_i32_0 = arith.constant 0 : i32
    %c0_i32_1 = arith.constant 0 : i32
    return %c0_i32, %c0_i32_0 : i32, i32
  }
  func.func @transform_6(%arg0: i32, %arg1: i32) -> (i32, i32) {
    %c0_i32 = arith.constant 0 : i32
    %c0_i32_0 = arith.constant 0 : i32
    return %arg0, %c0_i32 : i32, i32
  }
}

module attributes {stable_mosaic.version = 11 : i64} {
  func.func @_mm_bias_kernel(%arg0: i32, %arg1: i32, %arg2: i32, %arg3: memref<32x128xbf16, #tpu.memory_space<vmem>>, %arg4: memref<128x512xbf16, #tpu.memory_space<vmem>>, %arg5: memref<1x512xf32, #tpu.memory_space<vmem>>, %arg6: memref<32x512xbf16, #tpu.memory_space<vmem>>, %arg7: memref<32x512xf32, #tpu.memory_space<vmem>>) attributes {dimension_semantics = [#tpu.dimension_semantics<parallel>, #tpu.dimension_semantics<parallel>, #tpu.dimension_semantics<arbitrary>], iteration_bounds = array<i64: 1, 1, 1>, scalar_prefetch = 0 : i64, scratch_operands = 1 : i64, tpu.core_type = #tpu.core_type<tc>, window_params = [{transform_indices = @transform_0, window_bounds = array<i64: 32, 128>}, {transform_indices = @transform_1, window_bounds = array<i64: 128, 512>}, {transform_indices = @transform_2, window_bounds = array<i64: 1, 512>}, {transform_indices = @transform_3, window_bounds = array<i64: 32, 512>}]} {
    %c0_i32 = arith.constant 0 : i32
    %0 = arith.cmpi eq, %arg2, %c0_i32 : i32
    %1 = arith.extui %0 : i1 to i32
    %c0_i32_0 = arith.constant 0 : i32
    %2 = arith.cmpi ne, %1, %c0_i32_0 : i32
    scf.if %2 {
      %cst_10 = arith.constant 0.000000e+00 : f32
      %12 = vector.broadcast %cst_10 : f32 to vector<32x512xf32>
      %c0_11 = arith.constant 0 : index
      %c0_12 = arith.constant 0 : index
      %13 = vector.load %arg7[%c0_11, %c0_12] : memref<32x512xf32, #tpu.memory_space<vmem>>, vector<32x512xf32>
      tpu.vector_store %arg7[%c0_11, %c0_12], %12 {strides = array<i32>} : memref<32x512xf32, #tpu.memory_space<vmem>>, vector<32x512xf32>,
    } else {
    }
    %c0 = arith.constant 0 : index
    %c0_1 = arith.constant 0 : index
    %3 = vector.load %arg7[%c0, %c0_1] : memref<32x512xf32, #tpu.memory_space<vmem>>, vector<32x512xf32>
    %c0_2 = arith.constant 0 : index
    %c0_3 = arith.constant 0 : index
    %4 = vector.load %arg3[%c0_2, %c0_3] : memref<32x128xbf16, #tpu.memory_space<vmem>>, vector<32x128xbf16>
    %c0_4 = arith.constant 0 : index
    %c0_5 = arith.constant 0 : index
    %5 = vector.load %arg4[%c0_4, %c0_5] : memref<128x512xbf16, #tpu.memory_space<vmem>>, vector<128x512xbf16>
    %cst = arith.constant dense<0.000000e+00> : vector<32x512xf32>
    %6 = tpu.matmul %4, %5, %cst {dimension_numbers = #tpu.dot_dimension_numbers<[1], [0], [0], [1], [0, 0, 1, 1], [], []>} : vector<32x128xbf16>, vector<128x512xbf16>, vector<32x512xf32> -> vector<32x512xf32>
    %7 = arith.addf %3, %6 : vector<32x512xf32>
    %c0_6 = arith.constant 0 : index
    %c0_7 = arith.constant 0 : index
    %8 = vector.load %arg7[%c0_6, %c0_7] : memref<32x512xf32, #tpu.memory_space<vmem>>, vector<32x512xf32>
    tpu.vector_store %arg7[%c0_6, %c0_7], %7 {strides = array<i32>} : memref<32x512xf32, #tpu.memory_space<vmem>>, vector<32x512xf32>,
    %c0_i32_8 = arith.constant 0 : i32
    %9 = arith.cmpi eq, %arg2, %c0_i32_8 : i32
    %10 = arith.extui %9 : i1 to i32
    %c0_i32_9 = arith.constant 0 : i32
    %11 = arith.cmpi ne, %10, %c0_i32_9 : i32
    scf.if %11 {
      %c0_10 = arith.constant 0 : index
      %c0_11 = arith.constant 0 : index
      %12 = vector.load %arg7[%c0_10, %c0_11] : memref<32x512xf32, #tpu.memory_space<vmem>>, vector<32x512xf32>
      %c0_12 = arith.constant 0 : index
      %c0_13 = arith.constant 0 : index
      %13 = vector.load %arg5[%c0_12, %c0_13] : memref<1x512xf32, #tpu.memory_space<vmem>>, vector<1x512xf32>
      %14 = vector.broadcast %13 : vector<1x512xf32> to vector<32x512xf32>
      %15 = arith.addf %12, %14 : vector<32x512xf32>
      %cst_14 = arith.constant 5.000000e-01 : f32
      %16 = vector.broadcast %cst_14 : f32 to vector<32x512xf32>
      %17 = arith.mulf %16, %15 : vector<32x512xf32>
      %cst_15 = arith.constant 0.707106769 : f32
      %18 = vector.broadcast %cst_15 : f32 to vector<32x512xf32>
      %19 = arith.mulf %15, %18 : vector<32x512xf32>
      %20 = math.absf %19 : vector<32x512xf32>
      %cst_16 = arith.constant 0.327591091 : f32
      %21 = vector.broadcast %cst_16 : f32 to vector<32x512xf32>
      %22 = arith.mulf %21, %20 : vector<32x512xf32>
      %cst_17 = arith.constant 1.000000e+00 : f32
      %23 = vector.broadcast %cst_17 : f32 to vector<32x512xf32>
      %24 = arith.addf %23, %22 : vector<32x512xf32>
      %25 = tpu.reciprocal %24 {approx = true} : vector<32x512xf32> -> vector<32x512xf32>
      %cst_18 = arith.constant 1.06140542 : f32
      %26 = vector.broadcast %cst_18 : f32 to vector<32x512xf32>
      %27 = arith.mulf %26, %25 : vector<32x512xf32>
      %cst_19 = arith.constant -1.45315206 : f32
      %28 = vector.broadcast %cst_19 : f32 to vector<32x512xf32>
      %29 = arith.addf %27, %28 : vector<32x512xf32>
      %30 = arith.mulf %29, %25 : vector<32x512xf32>
      %cst_20 = arith.constant 1.42141378 : f32
      %31 = vector.broadcast %cst_20 : f32 to vector<32x512xf32>
      %32 = arith.addf %30, %31 : vector<32x512xf32>
      %33 = arith.mulf %32, %25 : vector<32x512xf32>
      %cst_21 = arith.constant -0.284496725 : f32
      %34 = vector.broadcast %cst_21 : f32 to vector<32x512xf32>
      %35 = arith.addf %33, %34 : vector<32x512xf32>
      %36 = arith.mulf %35, %25 : vector<32x512xf32>
      %cst_22 = arith.constant 0.254829586 : f32
      %37 = vector.broadcast %cst_22 : f32 to vector<32x512xf32>
      %38 = arith.addf %36, %37 : vector<32x512xf32>
      %39 = arith.mulf %38, %25 : vector<32x512xf32>
      %cst_23 = arith.constant 0.000000e+00 : f32
      %40 = vector.broadcast %cst_23 : f32 to vector<32x512xf32>
      %41 = arith.subf %40, %20 : vector<32x512xf32>
      %42 = arith.mulf %41, %20 : vector<32x512xf32>
      %43 = math.exp %42 : vector<32x512xf32>
      %44 = arith.mulf %39, %43 : vector<32x512xf32>
      %cst_24 = arith.constant 1.000000e+00 : f32
      %45 = vector.broadcast %cst_24 : f32 to vector<32x512xf32>
      %46 = arith.subf %45, %44 : vector<32x512xf32>
      %cst_25 = arith.constant 0.000000e+00 : f32
      %47 = vector.broadcast %cst_25 : f32 to vector<32x512xf32>
      %48 = arith.cmpf oge, %19, %47 : vector<32x512xf32>
      %cst_26 = arith.constant 0.000000e+00 : f32
      %49 = vector.broadcast %cst_26 : f32 to vector<32x512xf32>
      %50 = arith.subf %49, %46 : vector<32x512xf32>
      %51 = arith.select %48, %46, %50 : vector<32x512xi1>, vector<32x512xf32>
      %cst_27 = arith.constant 1.000000e+00 : f32
      %52 = vector.broadcast %cst_27 : f32 to vector<32x512xf32>
      %53 = arith.addf %52, %51 : vector<32x512xf32>
      %54 = arith.mulf %17, %53 : vector<32x512xf32>
      %55 = arith.truncf %54 : vector<32x512xf32> to vector<32x512xbf16>
      %c0_28 = arith.constant 0 : index
      %c0_29 = arith.constant 0 : index
      %56 = vector.load %arg6[%c0_28, %c0_29] : memref<32x512xbf16, #tpu.memory_space<vmem>>, vector<32x512xbf16>
      tpu.vector_store %arg6[%c0_28, %c0_29], %55 {strides = array<i32>} : memref<32x512xbf16, #tpu.memory_space<vmem>>, vector<32x512xbf16>,
    } else {
    }
    return
  }
  func.func @transform_0(%arg0: i32, %arg1: i32, %arg2: i32) -> (i32, i32) {
    %c0_i32 = arith.constant 0 : i32
    return %arg0, %arg2 : i32, i32
  }
  func.func @transform_1(%arg0: i32, %arg1: i32, %arg2: i32) -> (i32, i32) {
    %c0_i32 = arith.constant 0 : i32
    return %arg2, %arg1 : i32, i32
  }
  func.func @transform_2(%arg0: i32, %arg1: i32, %arg2: i32) -> (i32, i32) {
    %c0_i32 = arith.constant 0 : i32
    %c0_i32_0 = arith.constant 0 : i32
    return %c0_i32, %arg1 : i32, i32
  }
  func.func @transform_3(%arg0: i32, %arg1: i32, %arg2: i32) -> (i32, i32) {
    %c0_i32 = arith.constant 0 : i32
    return %arg0, %arg1 : i32, i32
  }
}

module attributes {stable_mosaic.version = 11 : i64} {
  func.func @_mm_bias_add_ln_kernel(%arg0: i32, %arg1: i32, %arg2: memref<32x512xbf16, #tpu.memory_space<vmem>>, %arg3: memref<512x128xbf16, #tpu.memory_space<vmem>>, %arg4: memref<1x128xf32, #tpu.memory_space<vmem>>, %arg5: memref<32x128xbf16, #tpu.memory_space<vmem>>, %arg6: memref<1x128xf32, #tpu.memory_space<vmem>>, %arg7: memref<1x128xf32, #tpu.memory_space<vmem>>, %arg8: memref<32x128xbf16, #tpu.memory_space<vmem>>, %arg9: memref<32x128xf32, #tpu.memory_space<vmem>>) attributes {dimension_semantics = [#tpu.dimension_semantics<parallel>, #tpu.dimension_semantics<arbitrary>], iteration_bounds = array<i64: 1, 1>, scalar_prefetch = 0 : i64, scratch_operands = 1 : i64, tpu.core_type = #tpu.core_type<tc>, window_params = [{transform_indices = @transform_0, window_bounds = array<i64: 32, 512>}, {transform_indices = @transform_1, window_bounds = array<i64: 512, 128>}, {pipeline_mode = #tpu.pipeline_mode<synchronous>, transform_indices = @transform_2, window_bounds = array<i64: 1, 128>}, {transform_indices = @transform_3, window_bounds = array<i64: 32, 128>}, {pipeline_mode = #tpu.pipeline_mode<synchronous>, transform_indices = @transform_4, window_bounds = array<i64: 1, 128>}, {pipeline_mode = #tpu.pipeline_mode<synchronous>, transform_indices = @transform_5, window_bounds = array<i64: 1, 128>}, {transform_indices = @transform_6, window_bounds = array<i64: 32, 128>}]} {
    %c0_i32 = arith.constant 0 : i32
    %0 = arith.cmpi eq, %arg1, %c0_i32 : i32
    %1 = arith.extui %0 : i1 to i32
    %c0_i32_0 = arith.constant 0 : i32
    %2 = arith.cmpi ne, %1, %c0_i32_0 : i32
    scf.if %2 {
      %cst_10 = arith.constant 0.000000e+00 : f32
      %12 = vector.broadcast %cst_10 : f32 to vector<32x128xf32>
      %c0_11 = arith.constant 0 : index
      %c0_12 = arith.constant 0 : index
      %13 = vector.load %arg9[%c0_11, %c0_12] : memref<32x128xf32, #tpu.memory_space<vmem>>, vector<32x128xf32>
      tpu.vector_store %arg9[%c0_11, %c0_12], %12 {strides = array<i32>} : memref<32x128xf32, #tpu.memory_space<vmem>>, vector<32x128xf32>,
    } else {
    }
    %c0 = arith.constant 0 : index
    %c0_1 = arith.constant 0 : index
    %3 = vector.load %arg9[%c0, %c0_1] : memref<32x128xf32, #tpu.memory_space<vmem>>, vector<32x128xf32>
    %c0_2 = arith.constant 0 : index
    %c0_3 = arith.constant 0 : index
    %4 = vector.load %arg2[%c0_2, %c0_3] : memref<32x512xbf16, #tpu.memory_space<vmem>>, vector<32x512xbf16>
    %c0_4 = arith.constant 0 : index
    %c0_5 = arith.constant 0 : index
    %5 = vector.load %arg3[%c0_4, %c0_5] : memref<512x128xbf16, #tpu.memory_space<vmem>>, vector<512x128xbf16>
    %cst = arith.constant dense<0.000000e+00> : vector<32x128xf32>
    %6 = tpu.matmul %4, %5, %cst {dimension_numbers = #tpu.dot_dimension_numbers<[1], [0], [0], [1], [0, 0, 1, 1], [], []>} : vector<32x512xbf16>, vector<512x128xbf16>, vector<32x128xf32> -> vector<32x128xf32>
    %7 = arith.addf %3, %6 : vector<32x128xf32>
    %c0_6 = arith.constant 0 : index
    %c0_7 = arith.constant 0 : index
    %8 = vector.load %arg9[%c0_6, %c0_7] : memref<32x128xf32, #tpu.memory_space<vmem>>, vector<32x128xf32>
    tpu.vector_store %arg9[%c0_6, %c0_7], %7 {strides = array<i32>} : memref<32x128xf32, #tpu.memory_space<vmem>>, vector<32x128xf32>,
    %c0_i32_8 = arith.constant 0 : i32
    %9 = arith.cmpi eq, %arg1, %c0_i32_8 : i32
    %10 = arith.extui %9 : i1 to i32
    %c0_i32_9 = arith.constant 0 : i32
    %11 = arith.cmpi ne, %10, %c0_i32_9 : i32
    scf.if %11 {
      %c0_10 = arith.constant 0 : index
      %c0_11 = arith.constant 0 : index
      %12 = vector.load %arg9[%c0_10, %c0_11] : memref<32x128xf32, #tpu.memory_space<vmem>>, vector<32x128xf32>
      %c0_12 = arith.constant 0 : index
      %c0_13 = arith.constant 0 : index
      %13 = vector.load %arg4[%c0_12, %c0_13] : memref<1x128xf32, #tpu.memory_space<vmem>>, vector<1x128xf32>
      %14 = vector.broadcast %13 : vector<1x128xf32> to vector<32x128xf32>
      %15 = arith.addf %12, %14 : vector<32x128xf32>
      %c0_14 = arith.constant 0 : index
      %c0_15 = arith.constant 0 : index
      %16 = vector.load %arg5[%c0_14, %c0_15] : memref<32x128xbf16, #tpu.memory_space<vmem>>, vector<32x128xbf16>
      %17 = arith.extf %16 : vector<32x128xbf16> to vector<32x128xf32>
      %18 = arith.addf %15, %17 : vector<32x128xf32>
      %cst_16 = arith.constant dense<0.000000e+00> : vector<32xf32>
      %19 = vector.multi_reduction <add>, %18, %cst_16 [1] : vector<32x128xf32> to vector<32xf32>
      %20 = vector.shape_cast %19 : vector<32xf32> to vector<32x1xf32>
      %cst_17 = arith.constant 1.280000e+02 : f32
      %21 = vector.broadcast %cst_17 : f32 to vector<32x1xf32>
      %22 = arith.divf %20, %21 : vector<32x1xf32>
      %23 = vector.broadcast %22 : vector<32x1xf32> to vector<32x128xf32>
      %24 = arith.subf %18, %23 : vector<32x128xf32>
      %25 = arith.mulf %24, %24 : vector<32x128xf32>
      %cst_18 = arith.constant dense<0.000000e+00> : vector<32xf32>
      %26 = vector.multi_reduction <add>, %25, %cst_18 [1] : vector<32x128xf32> to vector<32xf32>
      %27 = vector.shape_cast %26 : vector<32xf32> to vector<32x1xf32>
      %cst_19 = arith.constant 1.280000e+02 : f32
      %28 = vector.broadcast %cst_19 : f32 to vector<32x1xf32>
      %29 = arith.divf %27, %28 : vector<32x1xf32>
      %30 = vector.broadcast %22 : vector<32x1xf32> to vector<32x128xf32>
      %31 = arith.subf %18, %30 : vector<32x128xf32>
      %cst_20 = arith.constant 9.99999974E-6 : f32
      %32 = vector.broadcast %cst_20 : f32 to vector<32x1xf32>
      %33 = arith.addf %29, %32 : vector<32x1xf32>
      %34 = math.rsqrt %33 : vector<32x1xf32>
      %35 = vector.broadcast %34 : vector<32x1xf32> to vector<32x128xf32>
      %36 = arith.mulf %31, %35 : vector<32x128xf32>
      %c0_21 = arith.constant 0 : index
      %c0_22 = arith.constant 0 : index
      %37 = vector.load %arg6[%c0_21, %c0_22] : memref<1x128xf32, #tpu.memory_space<vmem>>, vector<1x128xf32>
      %38 = vector.broadcast %37 : vector<1x128xf32> to vector<32x128xf32>
      %39 = arith.mulf %36, %38 : vector<32x128xf32>
      %c0_23 = arith.constant 0 : index
      %c0_24 = arith.constant 0 : index
      %40 = vector.load %arg7[%c0_23, %c0_24] : memref<1x128xf32, #tpu.memory_space<vmem>>, vector<1x128xf32>
      %41 = vector.broadcast %40 : vector<1x128xf32> to vector<32x128xf32>
      %42 = arith.addf %39, %41 : vector<32x128xf32>
      %43 = arith.truncf %42 : vector<32x128xf32> to vector<32x128xbf16>
      %c0_25 = arith.constant 0 : index
      %c0_26 = arith.constant 0 : index
      %44 = vector.load %arg8[%c0_25, %c0_26] : memref<32x128xbf16, #tpu.memory_space<vmem>>, vector<32x128xbf16>
      tpu.vector_store %arg8[%c0_25, %c0_26], %43 {strides = array<i32>} : memref<32x128xbf16, #tpu.memory_space<vmem>>, vector<32x128xbf16>,
    } else {
    }
    return
  }
  func.func @transform_0(%arg0: i32, %arg1: i32) -> (i32, i32) {
    %c0_i32 = arith.constant 0 : i32
    return %arg0, %arg1 : i32, i32
  }
  func.func @transform_1(%arg0: i32, %arg1: i32) -> (i32, i32) {
    %c0_i32 = arith.constant 0 : i32
    %c0_i32_0 = arith.constant 0 : i32
    return %arg1, %c0_i32 : i32, i32
  }
  func.func @transform_2(%arg0: i32, %arg1: i32) -> (i32, i32) {
    %c0_i32 = arith.constant 0 : i32
    %c0_i32_0 = arith.constant 0 : i32
    %c0_i32_1 = arith.constant 0 : i32
    return %c0_i32, %c0_i32_0 : i32, i32
  }
  func.func @transform_3(%arg0: i32, %arg1: i32) -> (i32, i32) {
    %c0_i32 = arith.constant 0 : i32
    %c0_i32_0 = arith.constant 0 : i32
    return %arg0, %c0_i32 : i32, i32
  }
  func.func @transform_4(%arg0: i32, %arg1: i32) -> (i32, i32) {
    %c0_i32 = arith.constant 0 : i32
    %c0_i32_0 = arith.constant 0 : i32
    %c0_i32_1 = arith.constant 0 : i32
    return %c0_i32, %c0_i32_0 : i32, i32
  }
  func.func @transform_5(%arg0: i32, %arg1: i32) -> (i32, i32) {
    %c0_i32 = arith.constant 0 : i32
    %c0_i32_0 = arith.constant 0 : i32
    %c0_i32_1 = arith.constant 0 : i32
    return %c0_i32, %c0_i32_0 : i32, i32
  }
  func.func @transform_6(%arg0: i32, %arg1: i32) -> (i32, i32) {
    %c0_i32 = arith.constant 0 : i32
    %c0_i32_0 = arith.constant 0 : i32
    return %arg0, %c0_i32 : i32, i32
  }
}

module attributes {stable_mosaic.version = 11 : i64} {
  func.func @_cls_head_kernel(%arg0: i32, %arg1: memref<32x128xbf16, #tpu.memory_space<vmem>>, %arg2: memref<128x128xbf16, #tpu.memory_space<vmem>>, %arg3: memref<1x128xf32, #tpu.memory_space<vmem>>, %arg4: memref<32x128xf32, #tpu.memory_space<vmem>>) attributes {dimension_semantics = [#tpu.dimension_semantics<parallel>], iteration_bounds = array<i64: 1>, scalar_prefetch = 0 : i64, scratch_operands = 0 : i64, tpu.core_type = #tpu.core_type<tc>, window_params = [{transform_indices = @transform_0, window_bounds = array<i64: 32, 128>}, {pipeline_mode = #tpu.pipeline_mode<synchronous>, transform_indices = @transform_1, window_bounds = array<i64: 128, 128>}, {pipeline_mode = #tpu.pipeline_mode<synchronous>, transform_indices = @transform_2, window_bounds = array<i64: 1, 128>}, {transform_indices = @transform_3, window_bounds = array<i64: 32, 128>}]} {
    %c0 = arith.constant 0 : index
    %c0_0 = arith.constant 0 : index
    %0 = vector.load %arg1[%c0, %c0_0] : memref<32x128xbf16, #tpu.memory_space<vmem>>, vector<32x128xbf16>
    %c0_1 = arith.constant 0 : index
    %c0_2 = arith.constant 0 : index
    %1 = vector.load %arg2[%c0_1, %c0_2] : memref<128x128xbf16, #tpu.memory_space<vmem>>, vector<128x128xbf16>
    %cst = arith.constant dense<0.000000e+00> : vector<32x128xf32>
    %2 = tpu.matmul %0, %1, %cst {dimension_numbers = #tpu.dot_dimension_numbers<[1], [0], [0], [1], [0, 0, 1, 1], [], []>} : vector<32x128xbf16>, vector<128x128xbf16>, vector<32x128xf32> -> vector<32x128xf32>
    %c0_3 = arith.constant 0 : index
    %c0_4 = arith.constant 0 : index
    %3 = vector.load %arg3[%c0_3, %c0_4] : memref<1x128xf32, #tpu.memory_space<vmem>>, vector<1x128xf32>
    %4 = vector.broadcast %3 : vector<1x128xf32> to vector<32x128xf32>
    %5 = arith.addf %2, %4 : vector<32x128xf32>
    %cst_5 = arith.constant dense<0xFF800000> : vector<32xf32>
    %6 = vector.multi_reduction <maximumf>, %5, %cst_5 [1] : vector<32x128xf32> to vector<32xf32>
    %7 = vector.shape_cast %6 : vector<32xf32> to vector<32x1xf32>
    %8 = vector.broadcast %7 : vector<32x1xf32> to vector<32x128xf32>
    %9 = arith.subf %5, %8 : vector<32x128xf32>
    %10 = math.exp %9 : vector<32x128xf32>
    %cst_6 = arith.constant dense<0.000000e+00> : vector<32xf32>
    %11 = vector.multi_reduction <add>, %10, %cst_6 [1] : vector<32x128xf32> to vector<32xf32>
    %12 = vector.shape_cast %11 : vector<32xf32> to vector<32x1xf32>
    %13 = math.log %12 : vector<32x1xf32>
    %14 = vector.broadcast %13 : vector<32x1xf32> to vector<32x128xf32>
    %15 = arith.subf %9, %14 : vector<32x128xf32>
    %c0_7 = arith.constant 0 : index
    %c0_8 = arith.constant 0 : index
    %16 = vector.load %arg4[%c0_7, %c0_8] : memref<32x128xf32, #tpu.memory_space<vmem>>, vector<32x128xf32>
    tpu.vector_store %arg4[%c0_7, %c0_8], %15 {strides = array<i32>} : memref<32x128xf32, #tpu.memory_space<vmem>>, vector<32x128xf32>,
    return
  }
  func.func @transform_0(%arg0: i32) -> (i32, i32) {
    %c0_i32 = arith.constant 0 : i32
    %c0_i32_0 = arith.constant 0 : i32
    return %arg0, %c0_i32 : i32, i32
  }
  func.func @transform_1(%arg0: i32) -> (i32, i32) {
    %c0_i32 = arith.constant 0 : i32
    %c0_i32_0 = arith.constant 0 : i32
    %c0_i32_1 = arith.constant 0 : i32
    return %c0_i32, %c0_i32_0 : i32, i32
  }
  func.func @transform_2(%arg0: i32) -> (i32, i32) {
    %c0_i32 = arith.constant 0 : i32
    %c0_i32_0 = arith.constant 0 : i32
    %c0_i32_1 = arith.constant 0 : i32
    return %c0_i32, %c0_i32_0 : i32, i32
  }
  func.func @transform_3(%arg0: i32) -> (i32, i32) {
    %c0_i32 = arith.constant 0 : i32
    %c0_i32_0 = arith.constant 0 : i32
    return %arg0, %c0_i32 : i32, i32
  }
}

</mosaic_0001>

<llo_original>
// kernel: bert_token_classification_forward.11
$region0: #{bert_token_classification_forward.11}
  #allocation0 [shape = 'u32[]', space=smem, size = 0x4, offset = 0x4, fixed_abs, tag = 'smem constant byte address 0x4 - core index']
  #allocation1 [shape = 'u32[144,128]{1,0:T(1,128)}', space=vmem, size = 0x12000, scoped, tag = 'internal scratch']
  #allocation2 [shape = 'f32[32,384]{1,0:T(8,128)}', space=vmem, size = 0xc000, scoped, tag = 'scratch operand']
  %s0 = inlined_call_operand.vmem [shape: bf16[32,128], index: 0, kind: input, shape index: {}]
  %s1 = inlined_call_operand.vmem [shape: bf16[128,384], index: 1, kind: input, shape index: {}]
  %s2 = inlined_call_operand.vmem [shape: f32[1,384], index: 2, kind: input, shape index: {}]
  %s3 = inlined_call_operand.vmem [shape: bf16[32,384], index: 3, kind: output, shape index: {}]
  %s4 = sld [smem:[#allocation0]]
  $region30: #{bert_token_classification_forward.11} parent=0
    _
  %s6 = ssub.s32 1, %s4
  %s7 = scalar_select 0, %s6, %s4
  // Predicated region
  $region2: #{bert_token_classification_forward.11} parent=0 // pred_check
    _
  $region3: #{bert_token_classification_forward.11} parent=0 // pred_check_branch
    %9 = sbr.rel (0) target = $region5
  $region4: #{bert_token_classification_forward.11} parent=0 // pred_region
    _
  $region5: #{bert_token_classification_forward.11} parent=0 // pred_fallthru
    _
  // Predicated region
  $region6: #{bert_token_classification_forward.11} parent=0 // pred_check
    _
  $region7: #{bert_token_classification_forward.11} parent=0 // pred_check_branch
    %11 = sbr.rel (0) target = $region9
  $region8: #{bert_token_classification_forward.11} parent=0 // pred_region
    _
  $region9: #{bert_token_classification_forward.11} parent=0 // pred_fallthru
    _
  // Predicated region
  $region10: #{bert_token_classification_forward.11} parent=0 // pred_check
    _
  $region11: #{bert_token_classification_forward.11} parent=0 // pred_check_branch
    %13 = sbr.rel (0) target = $region13
  $region12: #{bert_token_classification_forward.11} parent=0 // pred_region
    _
  $region13: #{bert_token_classification_forward.11} parent=0 // pred_fallthru
    _
  %p15 = scmp.eq.s32.totalorder 0, 0
  // Predicated region
  $region14: #{bert_token_classification_forward.11} parent=0 // pred_check
    %p16 = pneg %p15
  $region15: #{bert_token_classification_forward.11} parent=0 // pred_check_branch
    %18 = sbr.rel (%p16) target = $region17
  $region16: #{bert_token_classification_forward.11} parent=0 // pred_region
    %19 = vst [vmem:[#allocation2] sm:$0xff] 0.0
    %20 = vst [vmem:[#allocation2 + $0x8] sm:$0xff] 0.0
    %21 = vst [vmem:[#allocation2 + $0x10] sm:$0xff] 0.0
    %22 = vst [vmem:[#allocation2 + $0x18] sm:$0xff] 0.0
    %23 = vst [vmem:[#allocation2 + $0x20] sm:$0xff] 0.0
    %24 = vst [vmem:[#allocation2 + $0x28] sm:$0xff] 0.0
    %25 = vst [vmem:[#allocation2 + $0x30] sm:$0xff] 0.0
    %26 = vst [vmem:[#allocation2 + $0x38] sm:$0xff] 0.0
    %27 = vst [vmem:[#allocation2 + $0x40] sm:$0xff] 0.0
    %28 = vst [vmem:[#allocation2 + $0x48] sm:$0xff] 0.0
    %29 = vst [vmem:[#allocation2 + $0x50] sm:$0xff] 0.0
    %30 = vst [vmem:[#allocation2 + $0x58] sm:$0xff] 0.0
  $region17: #{bert_token_classification_forward.11} parent=0 // pred_fallthru
    _
  %v31 = vld [vmem:[#allocation2] sm:$0xff]
  %v32 = vld [vmem:[#allocation2 + $0x8] sm:$0xff]
  %v33 = vld [vmem:[#allocation2 + $0x10] sm:$0xff]
  %v34 = vld [vmem:[#allocation2 + $0x18] sm:$0xff]
  %v35 = vld [vmem:[#allocation2 + $0x20] sm:$0xff]
  %v36 = vld [vmem:[#allocation2 + $0x28] sm:$0xff]
  %v37 = vld [vmem:[#allocation2 + $0x30] sm:$0xff]
  %v38 = vld [vmem:[#allocation2 + $0x38] sm:$0xff]
  %v39 = vld [vmem:[#allocation2 + $0x40] sm:$0xff]
  %v40 = vld [vmem:[#allocation2 + $0x48] sm:$0xff]
  %v41 = vld [vmem:[#allocation2 + $0x50] sm:$0xff]
  %v42 = vld [vmem:[#allocation2 + $0x58] sm:$0xff]
  %v43 = vld [vmem:[%s0] sm:$0xf]
  %v44 = vld [vmem:[%s0 + $0x4] sm:$0xf]
  %v45 = vld [vmem:[%s0 + $0x8] sm:$0xf]
  %v46 = vld [vmem:[%s0 + $0xc] sm:$0xf]
  %v47 = vld [vmem:[%s1] sm:$0xff]
  %v48 = vld [vmem:[%s1 + $0x8] sm:$0xf]
  %v49 = vld [vmem:[%s1 + $0xc] sm:$0xff]
  %v50 = vld [vmem:[%s1 + $0x14] sm:$0xf]
  %v51 = vld [vmem:[%s1 + $0x18] sm:$0xff]
  %v52 = vld [vmem:[%s1 + $0x20] sm:$0xf]
  %v53 = vld [vmem:[%s1 + $0x24] sm:$0xff]
  %v54 = vld [vmem:[%s1 + $0x2c] sm:$0xf]
  %v55 = vld [vmem:[%s1 + $0x30] sm:$0xff]
  %v56 = vld [vmem:[%s1 + $0x38] sm:$0xf]
  %v57 = vld [vmem:[%s1 + $0x3c] sm:$0xff]
  %v58 = vld [vmem:[%s1 + $0x44] sm:$0xf]
  %v59 = vld [vmem:[%s1 + $0x48] sm:$0xff]
  %v60 = vld [vmem:[%s1 + $0x50] sm:$0xf]
  %v61 = vld [vmem:[%s1 + $0x54] sm:$0xff]
  %v62 = vld [vmem:[%s1 + $0x5c] sm:$0xf]
  %v63 = vld [vmem:[%s1 + $0x60] sm:$0xff]
  %v64 = vld [vmem:[%s1 + $0x68] sm:$0xf]
  %v65 = vld [vmem:[%s1 + $0x6c] sm:$0xff]
  %v66 = vld [vmem:[%s1 + $0x74] sm:$0xf]
  %v67 = vld [vmem:[%s1 + $0x78] sm:$0xff]
  %v68 = vld [vmem:[%s1 + $0x80] sm:$0xf]
  %v69 = vld [vmem:[%s1 + $0x84] sm:$0xff]
  %v70 = vld [vmem:[%s1 + $0x8c] sm:$0xf]
  %v71 = vld [vmem:[%s1 + $0x90] sm:$0xff]
  %v72 = vld [vmem:[%s1 + $0x98] sm:$0xf]
  %v73 = vld [vmem:[%s1 + $0x9c] sm:$0xff]
  %v74 = vld [vmem:[%s1 + $0xa4] sm:$0xf]
  %v75 = vld [vmem:[%s1 + $0xa8] sm:$0xff]
  %v76 = vld [vmem:[%s1 + $0xb0] sm:$0xf]
  %v77 = vld [vmem:[%s1 + $0xb4] sm:$0xff]
  %v78 = vld [vmem:[%s1 + $0xbc] sm:$0xf]
  %v83 = vunpack.c.l.b16 %v43
  %v84 = vunpack.c.l.b16 %v44
  %v85 = vunpack.c.l.b16 %v45
  %v86 = vunpack.c.l.b16 %v46
  %v87 = vpack.c.b16 %v84, %v83
  %v88 = vpack.c.b16 %v86, %v85
  %v123 = vunpack.c.l.b16 %v47
  %v124 = vunpack.c.h.b16 %v47
  %v125 = vunpack.c.l.b16 %v48
  %v126 = vunpack.c.l.b16 %v49
  %v127 = vunpack.c.h.b16 %v49
  %v128 = vunpack.c.l.b16 %v50
  %v129 = vunpack.c.l.b16 %v51
  %v130 = vunpack.c.h.b16 %v51
  %v131 = vunpack.c.l.b16 %v52
  %v132 = vunpack.c.l.b16 %v53
  %v133 = vunpack.c.h.b16 %v53
  %v134 = vunpack.c.l.b16 %v54
  %v135 = vunpack.c.l.b16 %v55
  %v136 = vunpack.c.h.b16 %v55
  %v137 = vunpack.c.l.b16 %v56
  %v138 = vunpack.c.l.b16 %v57
  %v139 = vunpack.c.h.b16 %v57
  %v140 = vunpack.c.l.b16 %v58
  %v141 = vunpack.c.l.b16 %v59
  %v142 = vunpack.c.h.b16 %v59
  %v143 = vunpack.c.l.b16 %v60
  %v144 = vunpack.c.l.b16 %v61
  %v145 = vunpack.c.h.b16 %v61
  %v146 = vunpack.c.l.b16 %v62
  %v147 = vunpack.c.l.b16 %v63
  %v148 = vunpack.c.h.b16 %v63
  %v149 = vunpack.c.l.b16 %v64
  %v150 = vunpack.c.l.b16 %v65
  %v151 = vunpack.c.h.b16 %v65
  %v152 = vunpack.c.l.b16 %v66
  %v153 = vunpack.c.l.b16 %v67
  %v154 = vunpack.c.h.b16 %v67
  %v155 = vunpack.c.l.b16 %v68
  %v156 = vunpack.c.l.b16 %v69
  %v157 = vunpack.c.h.b16 %v69
  %v158 = vunpack.c.l.b16 %v70
  %v159 = vunpack.c.l.b16 %v71
  %v160 = vunpack.c.h.b16 %v71
  %v161 = vunpack.c.l.b16 %v72
  %v162 = vunpack.c.l.b16 %v73
  %v163 = vunpack.c.h.b16 %v73
  %v164 = vunpack.c.l.b16 %v74
  %v165 = vunpack.c.l.b16 %v75
  %v166 = vunpack.c.h.b16 %v75
  %v167 = vunpack.c.l.b16 %v76
  %v168 = vunpack.c.l.b16 %v77
  %v169 = vunpack.c.h.b16 %v77
  %v170 = vunpack.c.l.b16 %v78
  %v171 = vpack.c.b16 %v126, %v123
  %v172 = vpack.c.b16 %v127, %v124
  %v173 = vpack.c.b16 %v128, %v125
  %v174 = vpack.c.b16 %v132, %v129
  %v175 = vpack.c.b16 %v133, %v130
  %v176 = vpack.c.b16 %v134, %v131
  %v177 = vpack.c.b16 %v138, %v135
  %v178 = vpack.c.b16 %v139, %v136
  %v179 = vpack.c.b16 %v140, %v137
  %v180 = vpack.c.b16 %v144, %v141
  %v181 = vpack.c.b16 %v145, %v142
  %v182 = vpack.c.b16 %v146, %v143
  %v183 = vpack.c.b16 %v150, %v147
  %v184 = vpack.c.b16 %v151, %v148
  %v185 = vpack.c.b16 %v152, %v149
  %v186 = vpack.c.b16 %v156, %v153
  %v187 = vpack.c.b16 %v157, %v154
  %v188 = vpack.c.b16 %v158, %v155
  %v189 = vpack.c.b16 %v162, %v159
  %v190 = vpack.c.b16 %v163, %v160
  %v191 = vpack.c.b16 %v164, %v161
  %v192 = vpack.c.b16 %v168, %v165
  %v193 = vpack.c.b16 %v169, %v166
  %v194 = vpack.c.b16 %v170, %v167
  %219 = vmatprep.subr.bf16.mxu0 %v172
  %220 = vmatpush1.bf16.msra.mxu0 %v171
  %221 = vmatprep.subr.bf16.mxu0 %v175
  %222 = vmatpush1.bf16.msra.mxu0 %v174
  %223 = vmatprep.subr.bf16.mxu0 %v178
  %224 = vmatpush1.bf16.msra.mxu0 %v177
  %225 = vmatprep.subr.bf16.mxu0 %v181
  %226 = vmatpush1.bf16.msra.mxu0 %v180
  %227 = vmatprep.subr.bf16.mxu0 %v184
  %228 = vmatpush1.bf16.msra.mxu0 %v183
  %229 = vmatprep.subr.bf16.mxu0 %v187
  %230 = vmatpush1.bf16.msra.mxu0 %v186
  %231 = vmatprep.subr.bf16.mxu0 %v190
  %232 = vmatpush1.bf16.msra.mxu0 %v189
  %233 = vmatprep.subr.bf16.mxu0 %v193
  %234 = vmatpush1.bf16.msra.mxu0 %v192
  %235 = vmatprep.subr.bf16.mxu0 0
  %236 = vmatpush1.bf16.msra.mxu0 0
  %237 = vmatprep.subr.bf16.mxu0 0
  %238 = vmatpush1.bf16.msra.mxu0 0
  %239 = vmatprep.subr.bf16.mxu0 0
  %240 = vmatpush1.bf16.msra.mxu0 0
  %241 = vmatprep.subr.bf16.mxu0 0
  %242 = vmatpush1.bf16.msra.mxu0 0
  %243 = vmatprep.subr.bf16.mxu0 0
  %244 = vmatpush1.bf16.msra.mxu0 0
  %245 = vmatprep.subr.bf16.mxu0 0
  %246 = vmatpush1.bf16.msra.mxu0 0
  %247 = vmatprep.subr.bf16.mxu0 0
  %248 = vmatpush1.bf16.msra.mxu0 0
  %249 = vmatprep.subr.bf16.mxu0 0
  %250 = vmatpush1.bf16.msra.mxu0 0
  %251 = vmatprep.mubr.bf16.mxu0 0
  %252 = vmatmul.mubr.bf16.gmra.mrb[0].mxu0 %v87
  %v253 = vpop.f32.mrb[0].mxu0
  %v254 = vadd.f32 0.0, %v253
  %v255 = vpop.f32.mrb[0].mxu0
  %v256 = vadd.f32 0.0, %v255
  %v257 = vpop.f32.mrb[0].mxu0
  %v258 = vadd.f32 0.0, %v257
  %v259 = vpop.f32.mrb[0].mxu0
  %v260 = vadd.f32 0.0, %v259
  %261 = vmatprep.mubr.bf16.mxu0 0
  %262 = vmatmul.mubr.bf16.gmra.mrb[0].mxu0 %v88
  %v263 = vpop.f32.mrb[0].mxu0
  %v264 = vadd.f32 0.0, %v263
  %v265 = vpop.f32.mrb[0].mxu0
  %v266 = vadd.f32 0.0, %v265
  %v267 = vpop.f32.mrb[0].mxu0
  %v268 = vadd.f32 0.0, %v267
  %v269 = vpop.f32.mrb[0].mxu0
  %v270 = vadd.f32 0.0, %v269
  %271 = vdwg.mxu0
  %272 = vmatprep.subr.bf16.mxu0 0
  %273 = vmatpush1.bf16.msra.mxu0 %v173
  %274 = vmatprep.subr.bf16.mxu0 0
  %275 = vmatpush1.bf16.msra.mxu0 %v176
  %276 = vmatprep.subr.bf16.mxu0 0
  %277 = vmatpush1.bf16.msra.mxu0 %v179
  %278 = vmatprep.subr.bf16.mxu0 0
  %279 = vmatpush1.bf16.msra.mxu0 %v182
  %280 = vmatprep.subr.bf16.mxu0 0
  %281 = vmatpush1.bf16.msra.mxu0 %v185
  %282 = vmatprep.subr.bf16.mxu0 0
  %283 = vmatpush1.bf16.msra.mxu0 %v188
  %284 = vmatprep.subr.bf16.mxu0 0
  %285 = vmatpush1.bf16.msra.mxu0 %v191
  %286 = vmatprep.subr.bf16.mxu0 0
  %287 = vmatpush1.bf16.msra.mxu0 %v194
  %288 = vmatprep.subr.bf16.mxu0 0
  %289 = vmatpush1.bf16.msra.mxu0 0
  %290 = vmatprep.subr.bf16.mxu0 0
  %291 = vmatpush1.bf16.msra.mxu0 0
  %292 = vmatprep.subr.bf16.mxu0 0
  %293 = vmatpush1.bf16.msra.mxu0 0
  %294 = vmatprep.subr.bf16.mxu0 0
  %295 = vmatpush1.bf16.msra.mxu0 0
  %296 = vmatprep.subr.bf16.mxu0 0
  %297 = vmatpush1.bf16.msra.mxu0 0
  %298 = vmatprep.subr.bf16.mxu0 0
  %299 = vmatpush1.bf16.msra.mxu0 0
  %300 = vmatprep.subr.bf16.mxu0 0
  %301 = vmatpush1.bf16.msra.mxu0 0
  %302 = vmatprep.subr.bf16.mxu0 0
  %303 = vmatpush1.bf16.msra.mxu0 0
  %304 = vmatprep.mubr.bf16.mxu0 0
  %305 = vmatmul.mubr.bf16.gmra.mrb[0].mxu0 %v87
  %v306 = vpop.f32.mrb[0].mxu0
  %v307 = vadd.f32 0.0, %v306
  %v308 = vpop.f32.mrb[0].mxu0
  %v309 = vpop.f32.mrb[0].mxu0
  %v310 = vadd.f32 0.0, %v309
  %v311 = vpop.f32.mrb[0].mxu0
  %312 = vmatprep.mubr.bf16.mxu0 0
  %313 = vmatmul.mubr.bf16.gmra.mrb[0].mxu0 %v88
  %v314 = vpop.f32.mrb[0].mxu0
  %v315 = vadd.f32 0.0, %v314
  %v316 = vpop.f32.mrb[0].mxu0
  %v317 = vpop.f32.mrb[0].mxu0
  %v318 = vadd.f32 0.0, %v317
  %v319 = vpop.f32.mrb[0].mxu0
  %320 = vdwg.mxu0
  %v321 = vadd.f32 %v31, %v254
  %v322 = vadd.f32 %v32, %v256
  %v323 = vadd.f32 %v33, %v307
  %v324 = vadd.f32 %v34, %v258
  %v325 = vadd.f32 %v35, %v260
  %v326 = vadd.f32 %v36, %v310
  %v327 = vadd.f32 %v37, %v264
  %v328 = vadd.f32 %v38, %v266
  %v329 = vadd.f32 %v39, %v315
  %v330 = vadd.f32 %v40, %v268
  %v331 = vadd.f32 %v41, %v270
  %v332 = vadd.f32 %v42, %v318
  %333 = vst [vmem:[#allocation2] sm:$0xff] %v321
  %334 = vst [vmem:[#allocation2 + $0x8] sm:$0xff] %v322
  %335 = vst [vmem:[#allocation2 + $0x10] sm:$0xff] %v323
  %336 = vst [vmem:[#allocation2 + $0x18] sm:$0xff] %v324
  %337 = vst [vmem:[#allocation2 + $0x20] sm:$0xff] %v325
  %338 = vst [vmem:[#allocation2 + $0x28] sm:$0xff] %v326
  %339 = vst [vmem:[#allocation2 + $0x30] sm:$0xff] %v327
  %340 = vst [vmem:[#allocation2 + $0x38] sm:$0xff] %v328
  %341 = vst [vmem:[#allocation2 + $0x40] sm:$0xff] %v329
  %342 = vst [vmem:[#allocation2 + $0x48] sm:$0xff] %v330
  %343 = vst [vmem:[#allocation2 + $0x50] sm:$0xff] %v331
  %344 = vst [vmem:[#allocation2 + $0x58] sm:$0xff] %v332
  // Predicated region
  $region18: #{bert_token_classification_forward.11} parent=0 // pred_check
    %p345 = pneg %p15
  $region19: #{bert_token_classification_forward.11} parent=0 // pred_check_branch
    %347 = sbr.rel (%p345) target = $region21
  $region20: #{bert_token_classification_forward.11} parent=0 // pred_region
    %v348 = vld [vmem:[#allocation2] sm:$0xff]
    %v349 = vld [vmem:[#allocation2 + $0x8] sm:$0xff]
    %v350 = vld [vmem:[#allocation2 + $0x10] sm:$0xff]
    %v351 = vld [vmem:[#allocation2 + $0x18] sm:$0xff]
    %v352 = vld [vmem:[#allocation2 + $0x20] sm:$0xff]
    %v353 = vld [vmem:[#allocation2 + $0x28] sm:$0xff]
    %v354 = vld [vmem:[#allocation2 + $0x30] sm:$0xff]
    %v355 = vld [vmem:[#allocation2 + $0x38] sm:$0xff]
    %v356 = vld [vmem:[#allocation2 + $0x40] sm:$0xff]
    %v357 = vld [vmem:[#allocation2 + $0x48] sm:$0xff]
    %v358 = vld [vmem:[#allocation2 + $0x50] sm:$0xff]
    %v359 = vld [vmem:[#allocation2 + $0x58] sm:$0xff]
    %v360 = vld [vmem:[%s2] sm:$0x7]
    %v362 = vlaneseq
    %v363 = vshrl.u32 %v362, 7
    %v364 = vsub.s32 0, %v363
    %v365 = vrot.slane %v360, %v364
    %v366 = vlaneseq
    %v367 = vshrl.u32 %v366, 7
    %v368 = vsub.s32 1, %v367
    %v369 = vrot.slane %v360, %v368
    %v370 = vlaneseq
    %v371 = vshrl.u32 %v370, 7
    %v372 = vsub.s32 2, %v371
    %v373 = vrot.slane %v360, %v372
    %v377 = vadd.f32 %v348, %v365
    %v378 = vadd.f32 %v349, %v369
    %v379 = vadd.f32 %v350, %v373
    %v380 = vadd.f32 %v351, %v365
    %v381 = vadd.f32 %v352, %v369
    %v382 = vadd.f32 %v353, %v373
    %v383 = vadd.f32 %v354, %v365
    %v384 = vadd.f32 %v355, %v369
    %v385 = vadd.f32 %v356, %v373
    %v386 = vadd.f32 %v357, %v365
    %v387 = vadd.f32 %v358, %v369
    %v388 = vadd.f32 %v359, %v373
    %v389 = vpack.c.bf16 %v380, %v377
    %v390 = vpack.c.bf16 %v381, %v378
    %v391 = vpack.c.bf16 %v382, %v379
    %v392 = vpack.c.bf16 %v386, %v383
    %v393 = vpack.c.bf16 %v387, %v384
    %v394 = vpack.c.bf16 %v388, %v385
    %v401 = vunpack.c.l.b16 %v389
    %v402 = vunpack.c.l.b16 %v390
    %v403 = vunpack.c.l.b16 %v391
    %v404 = vunpack.c.h.b16 %v389
    %v405 = vunpack.c.h.b16 %v390
    %v406 = vunpack.c.h.b16 %v391
    %v407 = vunpack.c.l.b16 %v392
    %v408 = vunpack.c.l.b16 %v393
    %v409 = vunpack.c.l.b16 %v394
    %v410 = vunpack.c.h.b16 %v392
    %v411 = vunpack.c.h.b16 %v393
    %v412 = vunpack.c.h.b16 %v394
    %v413 = vpack.c.b16 %v402, %v401
    %v414 = vpack.c.b16 %v403, %v403
    %v415 = vpack.c.b16 %v405, %v404
    %v416 = vpack.c.b16 %v406, %v406
    %v417 = vpack.c.b16 %v408, %v407
    %v418 = vpack.c.b16 %v409, %v409
    %v419 = vpack.c.b16 %v411, %v410
    %v420 = vpack.c.b16 %v412, %v412
    %429 = vst [vmem:[%s3] sm:$0xff] %v413
    %430 = vst [vmem:[%s3 + $0x8] sm:$0xf] %v414
    %431 = vst [vmem:[%s3 + $0xc] sm:$0xff] %v415
    %432 = vst [vmem:[%s3 + $0x14] sm:$0xf] %v416
    %433 = vst [vmem:[%s3 + $0x18] sm:$0xff] %v417
    %434 = vst [vmem:[%s3 + $0x20] sm:$0xf] %v418
    %435 = vst [vmem:[%s3 + $0x24] sm:$0xff] %v419
    %436 = vst [vmem:[%s3 + $0x2c] sm:$0xf] %v420
  $region21: #{bert_token_classification_forward.11} parent=0 // pred_fallthru
    _
  // Predicated region
  $region22: #{bert_token_classification_forward.11} parent=0 // pred_check
    _
  $region23: #{bert_token_classification_forward.11} parent=0 // pred_check_branch
    %438 = sbr.rel (0) target = $region25
  $region24: #{bert_token_classification_forward.11} parent=0 // pred_region
    _
  $region25: #{bert_token_classification_forward.11} parent=0 // pred_fallthru
    _
  // Predicated region
  $region26: #{bert_token_classification_forward.11} parent=0 // pred_check
    _
  $region27: #{bert_token_classification_forward.11} parent=0 // pred_check_branch
    %440 = sbr.rel (0) target = $region29
  $region28: #{bert_token_classification_forward.11} parent=0 // pred_region
    _
  $region29: #{bert_token_classification_forward.11} parent=0 // pred_fallthru
    _

// kernel: bert_token_classification_forward.13
$region0: #{bert_token_classification_forward.13}
  #allocation0 [shape = 'u32[]', space=smem, size = 0x4, offset = 0x4, fixed_abs, tag = 'smem constant byte address 0x4 - core index']
  #allocation1 [shape = 'u32[144,128]{1,0:T(1,128)}', space=vmem, size = 0x12000, scoped, tag = 'internal scratch']
  #allocation2 [shape = 'f32[32,128]{1,0:T(8,128)}', space=vmem, size = 0x4000, scoped, tag = 'scratch operand']
  %s0 = inlined_call_operand.vmem [shape: bf16[32,128], index: 0, kind: input, shape index: {}]
  %s1 = inlined_call_operand.vmem [shape: bf16[128,128], index: 1, kind: input, shape index: {}]
  %s2 = inlined_call_operand.vmem [shape: f32[1,128], index: 2, kind: input, shape index: {}]
  %s3 = inlined_call_operand.vmem [shape: bf16[32,128], index: 3, kind: input, shape index: {}]
  %s4 = inlined_call_operand.vmem [shape: f32[1,128], index: 4, kind: input, shape index: {}]
  %s5 = inlined_call_operand.vmem [shape: f32[1,128], index: 5, kind: input, shape index: {}]
  %s6 = inlined_call_operand.vmem [shape: bf16[32,128], index: 6, kind: output, shape index: {}]
  %s7 = sld [smem:[#allocation0]]
  $region42: #{bert_token_classification_forward.13} parent=0
    _
  %s9 = ssub.s32 1, %s7
  %s10 = scalar_select 0, %s9, %s7
  // Predicated region
  $region2: #{bert_token_classification_forward.13} parent=0 // pred_check
    _
  $region3: #{bert_token_classification_forward.13} parent=0 // pred_check_branch
    %12 = sbr.rel (0) target = $region5
  $region4: #{bert_token_classification_forward.13} parent=0 // pred_region
    _
  $region5: #{bert_token_classification_forward.13} parent=0 // pred_fallthru
    _
  // Predicated region
  $region6: #{bert_token_classification_forward.13} parent=0 // pred_check
    _
  $region7: #{bert_token_classification_forward.13} parent=0 // pred_check_branch
    %14 = sbr.rel (0) target = $region9
  $region8: #{bert_token_classification_forward.13} parent=0 // pred_region
    _
  $region9: #{bert_token_classification_forward.13} parent=0 // pred_fallthru
    _
  // Predicated region
  $region10: #{bert_token_classification_forward.13} parent=0 // pred_check
    _
  $region11: #{bert_token_classification_forward.13} parent=0 // pred_check_branch
    %16 = sbr.rel (0) target = $region13
  $region12: #{bert_token_classification_forward.13} parent=0 // pred_region
    _
  $region13: #{bert_token_classification_forward.13} parent=0 // pred_fallthru
    _
  // Predicated region
  $region14: #{bert_token_classification_forward.13} parent=0 // pred_check
    _
  $region15: #{bert_token_classification_forward.13} parent=0 // pred_check_branch
    %18 = sbr.rel (0) target = $region17
  $region16: #{bert_token_classification_forward.13} parent=0 // pred_region
    _
  $region17: #{bert_token_classification_forward.13} parent=0 // pred_fallthru
    _
  // Predicated region
  $region18: #{bert_token_classification_forward.13} parent=0 // pred_check
    _
  $region19: #{bert_token_classification_forward.13} parent=0 // pred_check_branch
    %20 = sbr.rel (0) target = $region21
  $region20: #{bert_token_classification_forward.13} parent=0 // pred_region
    _
  $region21: #{bert_token_classification_forward.13} parent=0 // pred_fallthru
    _
  // Predicated region
  $region22: #{bert_token_classification_forward.13} parent=0 // pred_check
    _
  $region23: #{bert_token_classification_forward.13} parent=0 // pred_check_branch
    %22 = sbr.rel (0) target = $region25
  $region24: #{bert_token_classification_forward.13} parent=0 // pred_region
    _
  $region25: #{bert_token_classification_forward.13} parent=0 // pred_fallthru
    _
  %p24 = scmp.eq.s32.totalorder 0, 0
  // Predicated region
  $region26: #{bert_token_classification_forward.13} parent=0 // pred_check
    %p25 = pneg %p24
  $region27: #{bert_token_classification_forward.13} parent=0 // pred_check_branch
    %27 = sbr.rel (%p25) target = $region29
  $region28: #{bert_token_classification_forward.13} parent=0 // pred_region
    %28 = vst [vmem:[#allocation2] sm:$0xff] 0.0
    %29 = vst [vmem:[#allocation2 + $0x8] sm:$0xff] 0.0
    %30 = vst [vmem:[#allocation2 + $0x10] sm:$0xff] 0.0
    %31 = vst [vmem:[#allocation2 + $0x18] sm:$0xff] 0.0
  $region29: #{bert_token_classification_forward.13} parent=0 // pred_fallthru
    _
  %v32 = vld [vmem:[#allocation2] sm:$0xff]
  %v33 = vld [vmem:[#allocation2 + $0x8] sm:$0xff]
  %v34 = vld [vmem:[#allocation2 + $0x10] sm:$0xff]
  %v35 = vld [vmem:[#allocation2 + $0x18] sm:$0xff]
  %v36 = vld [vmem:[%s0] sm:$0xf]
  %v37 = vld [vmem:[%s0 + $0x4] sm:$0xf]
  %v38 = vld [vmem:[%s0 + $0x8] sm:$0xf]
  %v39 = vld [vmem:[%s0 + $0xc] sm:$0xf]
  %v40 = vld [vmem:[%s1] sm:$0xf]
  %v41 = vld [vmem:[%s1 + $0x4] sm:$0xf]
  %v42 = vld [vmem:[%s1 + $0x8] sm:$0xf]
  %v43 = vld [vmem:[%s1 + $0xc] sm:$0xf]
  %v44 = vld [vmem:[%s1 + $0x10] sm:$0xf]
  %v45 = vld [vmem:[%s1 + $0x14] sm:$0xf]
  %v46 = vld [vmem:[%s1 + $0x18] sm:$0xf]
  %v47 = vld [vmem:[%s1 + $0x1c] sm:$0xf]
  %v48 = vld [vmem:[%s1 + $0x20] sm:$0xf]
  %v49 = vld [vmem:[%s1 + $0x24] sm:$0xf]
  %v50 = vld [vmem:[%s1 + $0x28] sm:$0xf]
  %v51 = vld [vmem:[%s1 + $0x2c] sm:$0xf]
  %v52 = vld [vmem:[%s1 + $0x30] sm:$0xf]
  %v53 = vld [vmem:[%s1 + $0x34] sm:$0xf]
  %v54 = vld [vmem:[%s1 + $0x38] sm:$0xf]
  %v55 = vld [vmem:[%s1 + $0x3c] sm:$0xf]
  %v60 = vunpack.c.l.b16 %v36
  %v61 = vunpack.c.l.b16 %v37
  %v62 = vunpack.c.l.b16 %v38
  %v63 = vunpack.c.l.b16 %v39
  %v64 = vpack.c.b16 %v61, %v60
  %v65 = vpack.c.b16 %v63, %v62
  %v84 = vunpack.c.l.b16 %v40
  %v85 = vunpack.c.l.b16 %v41
  %v86 = vunpack.c.l.b16 %v42
  %v87 = vunpack.c.l.b16 %v43
  %v88 = vunpack.c.l.b16 %v44
  %v89 = vunpack.c.l.b16 %v45
  %v90 = vunpack.c.l.b16 %v46
  %v91 = vunpack.c.l.b16 %v47
  %v92 = vunpack.c.l.b16 %v48
  %v93 = vunpack.c.l.b16 %v49
  %v94 = vunpack.c.l.b16 %v50
  %v95 = vunpack.c.l.b16 %v51
  %v96 = vunpack.c.l.b16 %v52
  %v97 = vunpack.c.l.b16 %v53
  %v98 = vunpack.c.l.b16 %v54
  %v99 = vunpack.c.l.b16 %v55
  %v100 = vpack.c.b16 %v85, %v84
  %v101 = vpack.c.b16 %v87, %v86
  %v102 = vpack.c.b16 %v89, %v88
  %v103 = vpack.c.b16 %v91, %v90
  %v104 = vpack.c.b16 %v93, %v92
  %v105 = vpack.c.b16 %v95, %v94
  %v106 = vpack.c.b16 %v97, %v96
  %v107 = vpack.c.b16 %v99, %v98
  %116 = vmatprep.subr.bf16.mxu0 0
  %117 = vmatpush1.bf16.msra.mxu0 %v100
  %118 = vmatprep.subr.bf16.mxu0 0
  %119 = vmatpush1.bf16.msra.mxu0 %v101
  %120 = vmatprep.subr.bf16.mxu0 0
  %121 = vmatpush1.bf16.msra.mxu0 %v102
  %122 = vmatprep.subr.bf16.mxu0 0
  %123 = vmatpush1.bf16.msra.mxu0 %v103
  %124 = vmatprep.subr.bf16.mxu0 0
  %125 = vmatpush1.bf16.msra.mxu0 %v104
  %126 = vmatprep.subr.bf16.mxu0 0
  %127 = vmatpush1.bf16.msra.mxu0 %v105
  %128 = vmatprep.subr.bf16.mxu0 0
  %129 = vmatpush1.bf16.msra.mxu0 %v106
  %130 = vmatprep.subr.bf16.mxu0 0
  %131 = vmatpush1.bf16.msra.mxu0 %v107
  %132 = vmatprep.subr.bf16.mxu0 0
  %133 = vmatpush1.bf16.msra.mxu0 0
  %134 = vmatprep.subr.bf16.mxu0 0
  %135 = vmatpush1.bf16.msra.mxu0 0
  %136 = vmatprep.subr.bf16.mxu0 0
  %137 = vmatpush1.bf16.msra.mxu0 0
  %138 = vmatprep.subr.bf16.mxu0 0
  %139 = vmatpush1.bf16.msra.mxu0 0
  %140 = vmatprep.subr.bf16.mxu0 0
  %141 = vmatpush1.bf16.msra.mxu0 0
  %142 = vmatprep.subr.bf16.mxu0 0
  %143 = vmatpush1.bf16.msra.mxu0 0
  %144 = vmatprep.subr.bf16.mxu0 0
  %145 = vmatpush1.bf16.msra.mxu0 0
  %146 = vmatprep.subr.bf16.mxu0 0
  %147 = vmatpush1.bf16.msra.mxu0 0
  %148 = vmatprep.mubr.bf16.mxu0 0
  %149 = vmatmul.mubr.bf16.gmra.mrb[0].mxu0 %v64
  %v150 = vpop.f32.mrb[0].mxu0
  %v151 = vadd.f32 0.0, %v150
  %v152 = vpop.f32.mrb[0].mxu0
  %v153 = vpop.f32.mrb[0].mxu0
  %v154 = vadd.f32 0.0, %v153
  %v155 = vpop.f32.mrb[0].mxu0
  %156 = vmatprep.mubr.bf16.mxu0 0
  %157 = vmatmul.mubr.bf16.gmra.mrb[0].mxu0 %v65
  %v158 = vpop.f32.mrb[0].mxu0
  %v159 = vadd.f32 0.0, %v158
  %v160 = vpop.f32.mrb[0].mxu0
  %v161 = vpop.f32.mrb[0].mxu0
  %v162 = vadd.f32 0.0, %v161
  %v163 = vpop.f32.mrb[0].mxu0
  %164 = vdwg.mxu0
  %v165 = vadd.f32 %v32, %v151
  %v166 = vadd.f32 %v33, %v154
  %v167 = vadd.f32 %v34, %v159
  %v168 = vadd.f32 %v35, %v162
  %169 = vst [vmem:[#allocation2] sm:$0xff] %v165
  %170 = vst [vmem:[#allocation2 + $0x8] sm:$0xff] %v166
  %171 = vst [vmem:[#allocation2 + $0x10] sm:$0xff] %v167
  %172 = vst [vmem:[#allocation2 + $0x18] sm:$0xff] %v168
  // Predicated region
  $region30: #{bert_token_classification_forward.13} parent=0 // pred_check
    %p173 = pneg %p24
  $region31: #{bert_token_classification_forward.13} parent=0 // pred_check_branch
    %175 = sbr.rel (%p173) target = $region33
  $region32: #{bert_token_classification_forward.13} parent=0 // pred_region
    %v176 = vld [vmem:[#allocation2] sm:$0xff]
    %v177 = vld [vmem:[#allocation2 + $0x8] sm:$0xff]
    %v178 = vld [vmem:[#allocation2 + $0x10] sm:$0xff]
    %v179 = vld [vmem:[#allocation2 + $0x18] sm:$0xff]
    %v180 = vld [vmem:[%s2] sm:$0x1]
    %v182 = vlaneseq
    %v183 = vshrl.u32 %v182, 7
    %v184 = vsub.s32 0, %v183
    %v185 = vrot.slane %v180, %v184
    %v187 = vadd.f32 %v176, %v185
    %v188 = vadd.f32 %v177, %v185
    %v189 = vadd.f32 %v178, %v185
    %v190 = vadd.f32 %v179, %v185
    %v191 = vld [vmem:[%s3] sm:$0xf]
    %v192 = vld [vmem:[%s3 + $0x4] sm:$0xf]
    %v193 = vld [vmem:[%s3 + $0x8] sm:$0xf]
    %v194 = vld [vmem:[%s3 + $0xc] sm:$0xf]
    %v195 = vunpack.c.l.bf16 %v191
    %v196 = vunpack.c.l.bf16 %v192
    %v197 = vunpack.c.l.bf16 %v193
    %v198 = vunpack.c.l.bf16 %v194
    %v199 = vadd.f32 %v187, %v195
    %v200 = vadd.f32 %v188, %v196
    %v201 = vadd.f32 %v189, %v197
    %v202 = vadd.f32 %v190, %v198
    %203 = vadd.xlane.f32.xlu0 %v199
    %v204 = vpop.xlane.xlu0 %203
    %205 = vadd.xlane.f32.xlu0 %v200
    %v206 = vpop.xlane.xlu0 %205
    %207 = vadd.xlane.f32.xlu0 %v201
    %v208 = vpop.xlane.xlu0 %207
    %209 = vadd.xlane.f32.xlu0 %v202
    %v210 = vpop.xlane.xlu0 %209
    %v211 = vrcp.pop 128.0
    %v212 = vmul.f32 %v204, %v211
    %v213 = vmul.f32 %v206, %v211
    %v214 = vmul.f32 %v208, %v211
    %v215 = vmul.f32 %v210, %v211
    %v216 = vsub.f32 %v199, %v212
    %v217 = vsub.f32 %v200, %v213
    %v218 = vsub.f32 %v201, %v214
    %v219 = vsub.f32 %v202, %v215
    %v220 = vmul.f32 %v216, %v216
    %v221 = vmul.f32 %v217, %v217
    %v222 = vmul.f32 %v218, %v218
    %v223 = vmul.f32 %v219, %v219
    %224 = vadd.xlane.f32.xlu0 %v220
    %v225 = vpop.xlane.xlu0 %224
    %226 = vadd.xlane.f32.xlu0 %v221
    %v227 = vpop.xlane.xlu0 %226
    %228 = vadd.xlane.f32.xlu0 %v222
    %v229 = vpop.xlane.xlu0 %228
    %230 = vadd.xlane.f32.xlu0 %v223
    %v231 = vpop.xlane.xlu0 %230
    %v232 = vmul.f32 %v225, %v211
    %v233 = vmul.f32 %v227, %v211
    %v234 = vmul.f32 %v229, %v211
    %v235 = vmul.f32 %v231, %v211
    %v236 = vadd.f32 %v232, 1e-05
    %v237 = vadd.f32 %v233, 1e-05
    %v238 = vadd.f32 %v234, 1e-05
    %v239 = vadd.f32 %v235, 1e-05
    %v240 = vrsqrt.pop %v236
    %v241 = vrsqrt.pop %v237
    %v242 = vrsqrt.pop %v238
    %v243 = vrsqrt.pop %v239
    %v244 = vmul.f32 %v216, %v240
    %v245 = vmul.f32 %v217, %v241
    %v246 = vmul.f32 %v218, %v242
    %v247 = vmul.f32 %v219, %v243
    %v248 = vld [vmem:[%s4] sm:$0x1]
    %v250 = vlaneseq
    %v251 = vshrl.u32 %v250, 7
    %v252 = vsub.s32 0, %v251
    %v253 = vrot.slane %v248, %v252
    %v255 = vmul.f32 %v244, %v253
    %v256 = vmul.f32 %v245, %v253
    %v257 = vmul.f32 %v246, %v253
    %v258 = vmul.f32 %v247, %v253
    %v259 = vld [vmem:[%s5] sm:$0x1]
    %v261 = vlaneseq
    %v262 = vshrl.u32 %v261, 7
    %v263 = vsub.s32 0, %v262
    %v264 = vrot.slane %v259, %v263
    %v266 = vadd.f32 %v255, %v264
    %v267 = vadd.f32 %v256, %v264
    %v268 = vadd.f32 %v257, %v264
    %v269 = vadd.f32 %v258, %v264
    %v270 = vpack.c.bf16 %v267, %v266
    %v271 = vpack.c.bf16 %v269, %v268
    %v274 = vunpack.c.l.b16 %v270
    %v275 = vunpack.c.h.b16 %v270
    %v276 = vunpack.c.l.b16 %v271
    %v277 = vunpack.c.h.b16 %v271
    %v278 = vpack.c.b16 %v274, %v274
    %v279 = vpack.c.b16 %v275, %v275
    %v280 = vpack.c.b16 %v276, %v276
    %v281 = vpack.c.b16 %v277, %v277
    %286 = vst [vmem:[%s6] sm:$0xf] %v278
    %287 = vst [vmem:[%s6 + $0x4] sm:$0xf] %v279
    %288 = vst [vmem:[%s6 + $0x8] sm:$0xf] %v280
    %289 = vst [vmem:[%s6 + $0xc] sm:$0xf] %v281
  $region33: #{bert_token_classification_forward.13} parent=0 // pred_fallthru
    _
  // Predicated region
  $region34: #{bert_token_classification_forward.13} parent=0 // pred_check
    _
  $region35: #{bert_token_classification_forward.13} parent=0 // pred_check_branch
    %291 = sbr.rel (0) target = $region37
  $region36: #{bert_token_classification_forward.13} parent=0 // pred_region
    _
  $region37: #{bert_token_classification_forward.13} parent=0 // pred_fallthru
    _
  // Predicated region
  $region38: #{bert_token_classification_forward.13} parent=0 // pred_check
    _
  $region39: #{bert_token_classification_forward.13} parent=0 // pred_check_branch
    %293 = sbr.rel (0) target = $region41
  $region40: #{bert_token_classification_forward.13} parent=0 // pred_region
    _
  $region41: #{bert_token_classification_forward.13} parent=0 // pred_fallthru
    _

// kernel: bert_token_classification_forward.12
$region0: #{bert_token_classification_forward.12}
  #allocation0 [shape = 'u32[]', space=smem, size = 0x4, offset = 0x4, fixed_abs, tag = 'smem constant byte address 0x4 - core index']
  #allocation1 [shape = 'u32[144,128]{1,0:T(1,128)}', space=vmem, size = 0x12000, scoped, tag = 'internal scratch']
  %s0 = inlined_call_operand.vmem [shape: bf16[32,384], index: 0, kind: input, shape index: {}]
  %s1 = inlined_call_operand.vmem [shape: f32[2,4,16], index: 1, kind: input, shape index: {}]
  %s2 = inlined_call_operand.vmem [shape: bf16[32,128], index: 2, kind: output, shape index: {}]
  %s3 = sld [smem:[#allocation0]]
  $region41: #{bert_token_classification_forward.12} parent=0
    _
  %s5 = ssub.s32 1, %s3
  %s6 = scalar_select 0, %s5, %s3
  loop: start=0, step=1, limit=4
  $region2: #{bert_token_classification_forward.12} parent=0 // loop_pre_header
    _
  $region3: #{bert_token_classification_forward.12} parent=0 // loop_header
    %s8 = sphi 0, %s12
    %p9 = scmp.ge.s32.totalorder %s8, 4
    %s18 = sphi 0, %s20
    %s21 = sphi 0, %s18
    %s22 = sphi 0, %s21
    %s38 = sphi 0, %s22
    %s44 = sphi 0, %s46
    %s47 = sphi 0, %s44
    %s48 = sphi 0, %s47
    %s64 = sphi 0, %s48
    %s70 = sphi 0, %s72
    %s73 = sphi 0, %s70
    %s74 = sphi 0, %s73
    %s90 = sphi 0, %s74
  $region4: #{bert_token_classification_forward.12} parent=0 // loop_header_branch
    %11 = sbr.rel (%p9) target = $region8
  $region5: #{bert_token_classification_forward.12} parent=0 // loop_body
    %s13 = ssub.s32 %s8, 1
    %s14 = ssub.s32 %s8, 2
    %s15 = sadd.s32 %s8, 1
    %s16 = ssub.s32 %s8, %s15
    %p17 = scmp.eq.s32.totalorder %s16, 0
    %s19 = sadd.s32 %s18, 1
    %s20 = scalar_select %p17, %s18, %s19
    %p23 = pneg %p17
    %p24 = scmp.eq.s32.totalorder %s8, 1
    %p25 = por %p23, %p24
    %p26 = scmp.ne.s32.totalorder %s18, %s21
    %p27 = scmp.eq.s32.totalorder %s8, 0
    %p28 = por %p26, %p27
    %p29 = scmp.ne.s32.totalorder %s18, %s21
    %p30 = scmp.eq.s32.totalorder %s13, 1
    %p31 = por %p29, %p30
    %p32 = scmp.ne.s32.totalorder %s21, %s22
    %p33 = scmp.eq.s32.totalorder %s13, 0
    %p34 = por %p32, %p33
    %p35 = scmp.ne.s32.totalorder %s21, %s22
    %p36 = scmp.eq.s32.totalorder %s14, 1
    %p37 = por %p35, %p36
    %p39 = scmp.ne.s32.totalorder %s22, %s38
    %p40 = scmp.eq.s32.totalorder %s14, 0
    %p41 = por %p39, %p40
    %s42 = ssub.s32 %s8, %s15
    %p43 = scmp.eq.s32.totalorder %s42, 0
    %s45 = sadd.s32 %s44, 1
    %s46 = scalar_select %p43, %s44, %s45
    %p49 = pneg %p43
    %p50 = scmp.eq.s32.totalorder %s8, 1
    %p51 = por %p49, %p50
    %p52 = scmp.ne.s32.totalorder %s44, %s47
    %p53 = scmp.eq.s32.totalorder %s8, 0
    %p54 = por %p52, %p53
    %p55 = scmp.ne.s32.totalorder %s44, %s47
    %p56 = scmp.eq.s32.totalorder %s13, 1
    %p57 = por %p55, %p56
    %p58 = scmp.ne.s32.totalorder %s47, %s48
    %p59 = scmp.eq.s32.totalorder %s13, 0
    %p60 = por %p58, %p59
    %p61 = scmp.ne.s32.totalorder %s47, %s48
    %p62 = scmp.eq.s32.totalorder %s14, 1
    %p63 = por %p61, %p62
    %p65 = scmp.ne.s32.totalorder %s48, %s64
    %p66 = scmp.eq.s32.totalorder %s14, 0
    %p67 = por %p65, %p66
    %s68 = ssub.s32 %s8, %s15
    %p69 = scmp.eq.s32.totalorder %s68, 0
    %s71 = sadd.s32 %s70, 1
    %s72 = scalar_select %p69, %s70, %s71
    %p75 = pneg %p69
    %p76 = scmp.eq.s32.totalorder %s8, 1
    %p77 = por %p75, %p76
    %p78 = scmp.ne.s32.totalorder %s70, %s73
    %p79 = scmp.eq.s32.totalorder %s8, 0
    %p80 = por %p78, %p79
    %p81 = scmp.ne.s32.totalorder %s70, %s73
    %p82 = scmp.eq.s32.totalorder %s13, 1
    %p83 = por %p81, %p82
    %p84 = scmp.ne.s32.totalorder %s73, %s74
    %p85 = scmp.eq.s32.totalorder %s13, 0
    %p86 = por %p84, %p85
    %p87 = scmp.ne.s32.totalorder %s73, %s74
    %p88 = scmp.eq.s32.totalorder %s14, 1
    %p89 = por %p87, %p88
    %p91 = scmp.ne.s32.totalorder %s74, %s90
    %p92 = scmp.eq.s32.totalorder %s14, 0
    %p93 = por %p91, %p92
    %p94 = scmp.le.s32.totalorder 1, %s8
    %p95 = scmp.lt.s32.totalorder %s8, 3
    %p96 = pnand %p94, %p95
    %p97 = pneg %p96
    // Predicated region
    $region9: #{bert_token_classification_forward.12} parent=5 // pred_check
      _
    $region10: #{bert_token_classification_forward.12} parent=5 // pred_check_branch
      %99 = sbr.rel (%p96) target = $region12
    $region11: #{bert_token_classification_forward.12} parent=5 // pred_region
      %s100 = ssub.s32 %s8, 1
    $region12: #{bert_token_classification_forward.12} parent=5 // pred_fallthru
      _
    %p101 = scmp.lt.s32.totalorder %s8, 2
    // Predicated region
    $region13: #{bert_token_classification_forward.12} parent=5 // pred_check
      %p102 = pneg %p101
    $region14: #{bert_token_classification_forward.12} parent=5 // pred_check_branch
      %104 = sbr.rel (%p102) target = $region16
    $region15: #{bert_token_classification_forward.12} parent=5 // pred_region
      // Predicated region
      $region17: #{bert_token_classification_forward.12} parent=15 // pred_check
        %p105 = pneg %p28
      $region18: #{bert_token_classification_forward.12} parent=15 // pred_check_branch
        %107 = sbr.rel (%p105) target = $region20
      $region19: #{bert_token_classification_forward.12} parent=15 // pred_region
        %s108 = smul.u32 2, %s8
        %p109 = scmp.lt.s32.totalorder %s108, 3
        %s110 = scalar_select %p109, %s108, 3
        %s111 = smul.addr %s110, 3
        %s112 = smul.addr %s111, 4
        %s113 = scalar_lea.vmem %s0, %s112
        %s114 = smul.u32 2, %s8
      $region20: #{bert_token_classification_forward.12} parent=15 // pred_fallthru
        _
      // Predicated region
      $region21: #{bert_token_classification_forward.12} parent=15 // pred_check
        %p115 = pneg %p54
      $region22: #{bert_token_classification_forward.12} parent=15 // pred_check_branch
        %117 = sbr.rel (%p115) target = $region24
      $region23: #{bert_token_classification_forward.12} parent=15 // pred_region
        %p118 = scmp.lt.s32.totalorder %s8, 1
        %s119 = scalar_select %p118, %s8, 1
        %s120 = smul.addr %s119, 4
        %s121 = scalar_lea.vmem %s1, %s120
      $region24: #{bert_token_classification_forward.12} parent=15 // pred_fallthru
        _
    $region16: #{bert_token_classification_forward.12} parent=5 // pred_fallthru
      _
    %p122 = scmp.le.s32.totalorder 1, %s8
    %p123 = scmp.lt.s32.totalorder %s8, 3
    %p124 = pnand %p122, %p123
    %p125 = pneg %p124
    // Predicated region
    $region25: #{bert_token_classification_forward.12} parent=5 // pred_check
      _
    $region26: #{bert_token_classification_forward.12} parent=5 // pred_check_branch
      %127 = sbr.rel (%p124) target = $region28
    $region27: #{bert_token_classification_forward.12} parent=5 // pred_region
      %s128 = ssub.s32 %s8, 1
      %s129 = smul.u32 2, %s13
      %p130 = scmp.lt.s32.totalorder %s129, 3
      %s131 = scalar_select %p130, %s129, 3
      %s132 = smul.addr %s131, 3
      %s133 = smul.addr %s132, 4
      %s134 = scalar_lea.vmem %s0, %s133
      %p135 = pneg %p34
      %p136 = pneg %p31
      %p137 = scmp.lt.s32.totalorder %s13, 1
      %s138 = scalar_select %p137, %s13, 1
      %s139 = smul.addr %s138, 4
      %s140 = scalar_lea.vmem %s1, %s139
      %p141 = pneg %p60
      %p142 = pneg %p57
      %p143 = pneg %p86
      %p144 = pneg %p83
      %s145 = smul.u32 2, %s13
      %p146 = scmp.lt.s32.totalorder %s145, 3
      %s147 = scalar_select %p146, %s145, 3
      %s148 = smul.addr %s147, 4
      %s149 = scalar_lea.vmem %s2, %s148
      %s150 = smul.u32 2, %s13
      %p151 = scmp.lt.s32.totalorder %s150, 3
      %s152 = scalar_select %p151, %s150, 3
      %s153 = smul.addr %s152, 3
      %s154 = smul.addr %s153, 4
      %s155 = scalar_lea.vmem %s0, %s154
      %s156 = smul.u32 2, %s13
      %p157 = scmp.lt.s32.totalorder %s13, 1
      %s158 = scalar_select %p157, %s13, 1
      %s159 = smul.addr %s158, 4
      %s160 = scalar_lea.vmem %s1, %s159
      %s161 = smul.u32 2, %s13
      %p162 = scmp.lt.s32.totalorder %s161, 3
      %s163 = scalar_select %p162, %s161, 3
      %s164 = smul.addr %s163, 4
      %s165 = scalar_lea.vmem %s2, %s164
      %s166 = smul.u32 2, %s13
      %v168 = vld [vmem:[%s160] sm:$0xf]
      %v169 = vld [vmem:[%s155] sm:$0xf]
      %v170 = vld [vmem:[%s155 + $0xc] sm:$0xf]
      %v171 = vld [vmem:[%s155 + $0x4] sm:$0xf]
      %v172 = vld [vmem:[%s155 + $0x10] sm:$0xf]
      %v173 = vld [vmem:[%s155 + $0x8] sm:$0xf]
      %v174 = vld [vmem:[%s155 + $0x14] sm:$0xf]
      %v177 = vunpack.c.l.b16 %v169
      %v178 = vunpack.c.l.b16 %v170
      %v179 = vpack.c.b16 %v178, %v177
      %v182 = vunpack.c.l.b16 %v171
      %v183 = vunpack.c.l.b16 %v172
      %v184 = vpack.c.b16 %v183, %v182
      %vm185 = vcmask 261120
      %v187 = vsel %vm185, %v179, 0
      %v190 = vsel %vm185, %v184, 0
      %192 = vmatprep.subr.bf16.mxu0 0
      %193 = vmatpush1.bf16.xpose.msra.mxu0 %v190
      %194 = vmatprep.subr.bf16.mxu0 0
      %195 = vmatpush1.bf16.xpose.msra.mxu0 0
      %196 = vmatprep.subr.bf16.mxu0 0
      %197 = vmatpush1.bf16.xpose.msra.mxu0 0
      %198 = vmatprep.subr.bf16.mxu0 0
      %199 = vmatpush1.bf16.xpose.msra.mxu0 0
      %200 = vmatprep.subr.bf16.mxu0 0
      %201 = vmatpush1.bf16.xpose.msra.mxu0 0
      %202 = vmatprep.subr.bf16.mxu0 0
      %203 = vmatpush1.bf16.xpose.msra.mxu0 0
      %204 = vmatprep.subr.bf16.mxu0 0
      %205 = vmatpush1.bf16.xpose.msra.mxu0 0
      %206 = vmatprep.subr.bf16.mxu0 0
      %207 = vmatpush1.bf16.xpose.msra.mxu0 0
      %208 = vmatprep.subr.bf16.mxu0 0
      %209 = vmatpush1.bf16.xpose.msra.mxu0 0
      %210 = vmatprep.subr.bf16.mxu0 0
      %211 = vmatpush1.bf16.xpose.msra.mxu0 0
      %212 = vmatprep.subr.bf16.mxu0 0
      %213 = vmatpush1.bf16.xpose.msra.mxu0 0
      %214 = vmatprep.subr.bf16.mxu0 0
      %215 = vmatpush1.bf16.xpose.msra.mxu0 0
      %216 = vmatprep.subr.bf16.mxu0 0
      %217 = vmatpush1.bf16.xpose.msra.mxu0 0
      %218 = vmatprep.subr.bf16.mxu0 0
      %219 = vmatpush1.bf16.xpose.msra.mxu0 0
      %220 = vmatprep.subr.bf16.mxu0 0
      %221 = vmatpush1.bf16.xpose.msra.mxu0 0
      %222 = vmatprep.subr.bf16.mxu0 0
      %223 = vmatpush1.bf16.xpose.msra.mxu0 0
      %224 = vmatprep.mubr.bf16.mxu0 0
      %225 = vmatmul.mubr.bf16.gmra.mrb[0].mxu0 %v187
      %v226 = vpop.f32.mrb[0].mxu0
      %v227 = vadd.f32 0.0, %v226
      %v228 = vpop.f32.mrb[0].mxu0
      %v229 = vpop.f32.mrb[0].mxu0
      %v230 = vadd.f32 0.0, %v229
      %v231 = vpop.f32.mrb[0].mxu0
      %232 = vdwg.mxu0
      %v233 = vmul.f32 %v227, 0.17677669
      %v234 = vmul.f32 %v230, 0.17677669
      %v235 = vlaneseq
      %v236 = vshrl.u32 %v235, 7
      %v237 = vsub.s32 0, %v236
      %v238 = vrot.slane %v168, %v237
      %v239 = vadd.f32 %v233, %v238
      %v240 = vadd.f32 %v234, %v238
      %vm241 = vcmask 130048
      %v242 = vsel %vm241, %v239, -inf
      %243 = vmax.xlane.f32.xlu0 %v242
      %v244 = vpop.xlane.xlu0 %243
      %v245 = vsel %vm241, %v240, -inf
      %246 = vmax.xlane.f32.xlu0 %v245
      %v247 = vpop.xlane.xlu0 %246
      %v248 = vsub.f32 %v239, %v244
      %v249 = vsub.f32 %v240, %v247
      %v250 = vmul.f32 %v248, 1.442695
      %v251 = vpow.pop %v250
      %v252 = vmul.f32 %v249, 1.442695
      %v253 = vpow.pop %v252
      %v254 = vsel %vm241, %v251, 0.0
      %255 = vadd.xlane.f32.xlu0 %v254
      %v256 = vpop.xlane.xlu0 %255
      %v257 = vsel %vm241, %v253, 0.0
      %258 = vadd.xlane.f32.xlu0 %v257
      %v259 = vpop.xlane.xlu0 %258
      %v260 = vrcp.pop %v256
      %v261 = vrcp.pop %v259
      %v262 = vmul.f32 %v251, %v260
      %v263 = vmul.f32 %v253, %v261
      %v264 = vpack.c.bf16 %v263, %v262
      %v267 = vunpack.c.l.b16 %v173
      %v268 = vunpack.c.l.b16 %v174
      %v269 = vpack.c.b16 %v268, %v267
      %v272 = vsel %vm241, %v264, 0
      %274 = vmatprep.subr.bf16.mxu0 0
      %275 = vmatpush1.bf16.msra.mxu0 %v269
      %276 = vmatprep.subr.bf16.mxu0 0
      %277 = vmatpush1.bf16.msra.mxu0 0
      %278 = vmatprep.subr.bf16.mxu0 0
      %279 = vmatpush1.bf16.msra.mxu0 0
      %280 = vmatprep.subr.bf16.mxu0 0
      %281 = vmatpush1.bf16.msra.mxu0 0
      %282 = vmatprep.subr.bf16.mxu0 0
      %283 = vmatpush1.bf16.msra.mxu0 0
      %284 = vmatprep.subr.bf16.mxu0 0
      %285 = vmatpush1.bf16.msra.mxu0 0
      %286 = vmatprep.subr.bf16.mxu0 0
      %287 = vmatpush1.bf16.msra.mxu0 0
      %288 = vmatprep.subr.bf16.mxu0 0
      %289 = vmatpush1.bf16.msra.mxu0 0
      %290 = vmatprep.subr.bf16.mxu0 0
      %291 = vmatpush1.bf16.msra.mxu0 0
      %292 = vmatprep.subr.bf16.mxu0 0
      %293 = vmatpush1.bf16.msra.mxu0 0
      %294 = vmatprep.subr.bf16.mxu0 0
      %295 = vmatpush1.bf16.msra.mxu0 0
      %296 = vmatprep.subr.bf16.mxu0 0
      %297 = vmatpush1.bf16.msra.mxu0 0
      %298 = vmatprep.subr.bf16.mxu0 0
      %299 = vmatpush1.bf16.msra.mxu0 0
      %300 = vmatprep.subr.bf16.mxu0 0
      %301 = vmatpush1.bf16.msra.mxu0 0
      %302 = vmatprep.subr.bf16.mxu0 0
      %303 = vmatpush1.bf16.msra.mxu0 0
      %304 = vmatprep.subr.bf16.mxu0 0
      %305 = vmatpush1.bf16.msra.mxu0 0
      %306 = vmatprep.mubr.bf16.mxu0 0
      %307 = vmatmul.mubr.bf16.gmra.mrb[0].mxu0 %v272
      %v308 = vpop.f32.mrb[0].mxu0
      %v309 = vadd.f32 0.0, %v308
      %v310 = vpop.f32.mrb[0].mxu0
      %v311 = vpop.f32.mrb[0].mxu0
      %v312 = vadd.f32 0.0, %v311
      %v313 = vpop.f32.mrb[0].mxu0
      %314 = vdwg.mxu0
      %v315 = vpack.c.bf16 %v312, %v309
      %316 = vrot.lane.b32.xlu0 %v179, 96
      %v317 = vpop.permute.xlu0 %316
      %318 = vrot.lane.b32.xlu0 %v184, 96
      %v319 = vpop.permute.xlu0 %318
      %v321 = vsel %vm185, %v317, 0
      %v324 = vsel %vm185, %v319, 0
      %326 = vmatprep.subr.bf16.mxu0 0
      %327 = vmatpush1.bf16.xpose.msra.mxu0 %v324
      %328 = vmatprep.subr.bf16.mxu0 0
      %329 = vmatpush1.bf16.xpose.msra.mxu0 0
      %330 = vmatprep.subr.bf16.mxu0 0
      %331 = vmatpush1.bf16.xpose.msra.mxu0 0
      %332 = vmatprep.subr.bf16.mxu0 0
      %333 = vmatpush1.bf16.xpose.msra.mxu0 0
      %334 = vmatprep.subr.bf16.mxu0 0
      %335 = vmatpush1.bf16.xpose.msra.mxu0 0
      %336 = vmatprep.subr.bf16.mxu0 0
      %337 = vmatpush1.bf16.xpose.msra.mxu0 0
      %338 = vmatprep.subr.bf16.mxu0 0
      %339 = vmatpush1.bf16.xpose.msra.mxu0 0
      %340 = vmatprep.subr.bf16.mxu0 0
      %341 = vmatpush1.bf16.xpose.msra.mxu0 0
      %342 = vmatprep.subr.bf16.mxu0 0
      %343 = vmatpush1.bf16.xpose.msra.mxu0 0
      %344 = vmatprep.subr.bf16.mxu0 0
      %345 = vmatpush1.bf16.xpose.msra.mxu0 0
      %346 = vmatprep.subr.bf16.mxu0 0
      %347 = vmatpush1.bf16.xpose.msra.mxu0 0
      %348 = vmatprep.subr.bf16.mxu0 0
      %349 = vmatpush1.bf16.xpose.msra.mxu0 0
      %350 = vmatprep.subr.bf16.mxu0 0
      %351 = vmatpush1.bf16.xpose.msra.mxu0 0
      %352 = vmatprep.subr.bf16.mxu0 0
      %353 = vmatpush1.bf16.xpose.msra.mxu0 0
      %354 = vmatprep.subr.bf16.mxu0 0
      %355 = vmatpush1.bf16.xpose.msra.mxu0 0
      %356 = vmatprep.subr.bf16.mxu0 0
      %357 = vmatpush1.bf16.xpose.msra.mxu0 0
      %358 = vmatprep.mubr.bf16.mxu0 0
      %359 = vmatmul.mubr.bf16.gmra.mrb[0].mxu0 %v321
      %v360 = vpop.f32.mrb[0].mxu0
      %v361 = vadd.f32 0.0, %v360
      %v362 = vpop.f32.mrb[0].mxu0
      %v363 = vpop.f32.mrb[0].mxu0
      %v364 = vadd.f32 0.0, %v363
      %v365 = vpop.f32.mrb[0].mxu0
      %366 = vdwg.mxu0
      %v367 = vmul.f32 %v361, 0.17677669
      %v368 = vmul.f32 %v364, 0.17677669
      %v369 = vlaneseq
      %v370 = vshrl.u32 %v369, 7
      %v371 = vsub.s32 1, %v370
      %v372 = vrot.slane %v168, %v371
      %v373 = vadd.f32 %v367, %v372
      %v374 = vadd.f32 %v368, %v372
      %v375 = vsel %vm241, %v373, -inf
      %376 = vmax.xlane.f32.xlu0 %v375
      %v377 = vpop.xlane.xlu0 %376
      %v378 = vsel %vm241, %v374, -inf
      %379 = vmax.xlane.f32.xlu0 %v378
      %v380 = vpop.xlane.xlu0 %379
      %v381 = vsub.f32 %v373, %v377
      %v382 = vsub.f32 %v374, %v380
      %v383 = vmul.f32 %v381, 1.442695
      %v384 = vpow.pop %v383
      %v385 = vmul.f32 %v382, 1.442695
      %v386 = vpow.pop %v385
      %v387 = vsel %vm241, %v384, 0.0
      %388 = vadd.xlane.f32.xlu0 %v387
      %v389 = vpop.xlane.xlu0 %388
      %v390 = vsel %vm241, %v386, 0.0
      %391 = vadd.xlane.f32.xlu0 %v390
      %v392 = vpop.xlane.xlu0 %391
      %v393 = vrcp.pop %v389
      %v394 = vrcp.pop %v392
      %v395 = vmul.f32 %v384, %v393
      %v396 = vmul.f32 %v386, %v394
      %v397 = vpack.c.bf16 %v396, %v395
      %398 = vrot.lane.b32.xlu0 %v269, 96
      %v399 = vpop.permute.xlu0 %398
      %v402 = vsel %vm241, %v397, 0
      %404 = vmatprep.subr.bf16.mxu0 0
      %405 = vmatpush1.bf16.msra.mxu0 %v399
      %406 = vmatprep.subr.bf16.mxu0 0
      %407 = vmatpush1.bf16.msra.mxu0 0
      %408 = vmatprep.subr.bf16.mxu0 0
      %409 = vmatpush1.bf16.msra.mxu0 0
      %410 = vmatprep.subr.bf16.mxu0 0
      %411 = vmatpush1.bf16.msra.mxu0 0
      %412 = vmatprep.subr.bf16.mxu0 0
      %413 = vmatpush1.bf16.msra.mxu0 0
      %414 = vmatprep.subr.bf16.mxu0 0
      %415 = vmatpush1.bf16.msra.mxu0 0
      %416 = vmatprep.subr.bf16.mxu0 0
      %417 = vmatpush1.bf16.msra.mxu0 0
      %418 = vmatprep.subr.bf16.mxu0 0
      %419 = vmatpush1.bf16.msra.mxu0 0
      %420 = vmatprep.subr.bf16.mxu0 0
      %421 = vmatpush1.bf16.msra.mxu0 0
      %422 = vmatprep.subr.bf16.mxu0 0
      %423 = vmatpush1.bf16.msra.mxu0 0
      %424 = vmatprep.subr.bf16.mxu0 0
      %425 = vmatpush1.bf16.msra.mxu0 0
      %426 = vmatprep.subr.bf16.mxu0 0
      %427 = vmatpush1.bf16.msra.mxu0 0
      %428 = vmatprep.subr.bf16.mxu0 0
      %429 = vmatpush1.bf16.msra.mxu0 0
      %430 = vmatprep.subr.bf16.mxu0 0
      %431 = vmatpush1.bf16.msra.mxu0 0
      %432 = vmatprep.subr.bf16.mxu0 0
      %433 = vmatpush1.bf16.msra.mxu0 0
      %434 = vmatprep.subr.bf16.mxu0 0
      %435 = vmatpush1.bf16.msra.mxu0 0
      %436 = vmatprep.mubr.bf16.mxu0 0
      %437 = vmatmul.mubr.bf16.gmra.mrb[0].mxu0 %v402
      %v438 = vpop.f32.mrb[0].mxu0
      %v439 = vadd.f32 0.0, %v438
      %v440 = vpop.f32.mrb[0].mxu0
      %v441 = vpop.f32.mrb[0].mxu0
      %v442 = vadd.f32 0.0, %v441
      %v443 = vpop.f32.mrb[0].mxu0
      %444 = vdwg.mxu0
      %v445 = vpack.c.bf16 %v442, %v439
      %447 = vrot.lane.b32.xlu0 %v445, 32
      %v448 = vpop.permute.xlu0 %447
      %v451 = vsel %vm185, %v315, %v448
      %v453 = vunpack.c.l.b16 %v451
      %v454 = vunpack.c.h.b16 %v451
      %v455 = vpack.c.b16 %v453, %v453
      %v456 = vpack.c.b16 %v454, %v454
      %vm459 = vcmask 519168
      %460 = vst.msk [vmem:[%s165] sm:$0xf] %vm459, %v455
      %461 = vst.msk [vmem:[%s165 + $0x4] sm:$0xf] %vm459, %v456
      %v462 = vld [vmem:[%s155] sm:$0xf]
      %v463 = vld [vmem:[%s155 + $0xc] sm:$0xf]
      %v464 = vld [vmem:[%s155 + $0x4] sm:$0xf]
      %v465 = vld [vmem:[%s155 + $0x10] sm:$0xf]
      %v466 = vld [vmem:[%s155 + $0x8] sm:$0xf]
      %v467 = vld [vmem:[%s155 + $0x14] sm:$0xf]
      %v470 = vunpack.c.l.b16 %v462
      %v471 = vunpack.c.l.b16 %v463
      %v472 = vpack.c.b16 %v471, %v470
      %473 = vrot.lane.b32.xlu0 %v472, 64
      %v474 = vpop.permute.xlu0 %473
      %v477 = vunpack.c.l.b16 %v464
      %v478 = vunpack.c.l.b16 %v465
      %v479 = vpack.c.b16 %v478, %v477
      %480 = vrot.lane.b32.xlu0 %v479, 64
      %v481 = vpop.permute.xlu0 %480
      %v483 = vsel %vm185, %v474, 0
      %v486 = vsel %vm185, %v481, 0
      %488 = vmatprep.subr.bf16.mxu0 0
      %489 = vmatpush1.bf16.xpose.msra.mxu0 %v486
      %490 = vmatprep.subr.bf16.mxu0 0
      %491 = vmatpush1.bf16.xpose.msra.mxu0 0
      %492 = vmatprep.subr.bf16.mxu0 0
      %493 = vmatpush1.bf16.xpose.msra.mxu0 0
      %494 = vmatprep.subr.bf16.mxu0 0
      %495 = vmatpush1.bf16.xpose.msra.mxu0 0
      %496 = vmatprep.subr.bf16.mxu0 0
      %497 = vmatpush1.bf16.xpose.msra.mxu0 0
      %498 = vmatprep.subr.bf16.mxu0 0
      %499 = vmatpush1.bf16.xpose.msra.mxu0 0
      %500 = vmatprep.subr.bf16.mxu0 0
      %501 = vmatpush1.bf16.xpose.msra.mxu0 0
      %502 = vmatprep.subr.bf16.mxu0 0
      %503 = vmatpush1.bf16.xpose.msra.mxu0 0
      %504 = vmatprep.subr.bf16.mxu0 0
      %505 = vmatpush1.bf16.xpose.msra.mxu0 0
      %506 = vmatprep.subr.bf16.mxu0 0
      %507 = vmatpush1.bf16.xpose.msra.mxu0 0
      %508 = vmatprep.subr.bf16.mxu0 0
      %509 = vmatpush1.bf16.xpose.msra.mxu0 0
      %510 = vmatprep.subr.bf16.mxu0 0
      %511 = vmatpush1.bf16.xpose.msra.mxu0 0
      %512 = vmatprep.subr.bf16.mxu0 0
      %513 = vmatpush1.bf16.xpose.msra.mxu0 0
      %514 = vmatprep.subr.bf16.mxu0 0
      %515 = vmatpush1.bf16.xpose.msra.mxu0 0
      %516 = vmatprep.subr.bf16.mxu0 0
      %517 = vmatpush1.bf16.xpose.msra.mxu0 0
      %518 = vmatprep.subr.bf16.mxu0 0
      %519 = vmatpush1.bf16.xpose.msra.mxu0 0
      %520 = vmatprep.mubr.bf16.mxu0 0
      %521 = vmatmul.mubr.bf16.gmra.mrb[0].mxu0 %v483
      %v522 = vpop.f32.mrb[0].mxu0
      %v523 = vadd.f32 0.0, %v522
      %v524 = vpop.f32.mrb[0].mxu0
      %v525 = vpop.f32.mrb[0].mxu0
      %v526 = vadd.f32 0.0, %v525
      %v527 = vpop.f32.mrb[0].mxu0
      %528 = vdwg.mxu0
      %v529 = vmul.f32 %v523, 0.17677669
      %v530 = vmul.f32 %v526, 0.17677669
      %v531 = vlaneseq
      %v532 = vshrl.u32 %v531, 7
      %v533 = vsub.s32 2, %v532
      %v534 = vrot.slane %v168, %v533
      %v535 = vadd.f32 %v529, %v534
      %v536 = vadd.f32 %v530, %v534
      %v537 = vsel %vm241, %v535, -inf
      %538 = vmax.xlane.f32.xlu0 %v537
      %v539 = vpop.xlane.xlu0 %538
      %v540 = vsel %vm241, %v536, -inf
      %541 = vmax.xlane.f32.xlu0 %v540
      %v542 = vpop.xlane.xlu0 %541
      %v543 = vsub.f32 %v535, %v539
      %v544 = vsub.f32 %v536, %v542
      %v545 = vmul.f32 %v543, 1.442695
      %v546 = vpow.pop %v545
      %v547 = vmul.f32 %v544, 1.442695
      %v548 = vpow.pop %v547
      %v549 = vsel %vm241, %v546, 0.0
      %550 = vadd.xlane.f32.xlu0 %v549
      %v551 = vpop.xlane.xlu0 %550
      %v552 = vsel %vm241, %v548, 0.0
      %553 = vadd.xlane.f32.xlu0 %v552
      %v554 = vpop.xlane.xlu0 %553
      %v555 = vrcp.pop %v551
      %v556 = vrcp.pop %v554
      %v557 = vmul.f32 %v546, %v555
      %v558 = vmul.f32 %v548, %v556
      %v559 = vpack.c.bf16 %v558, %v557
      %v562 = vunpack.c.l.b16 %v466
      %v563 = vunpack.c.l.b16 %v467
      %v564 = vpack.c.b16 %v563, %v562
      %565 = vrot.lane.b32.xlu0 %v564, 64
      %v566 = vpop.permute.xlu0 %565
      %v569 = vsel %vm241, %v559, 0
      %571 = vmatprep.subr.bf16.mxu0 0
      %572 = vmatpush1.bf16.msra.mxu0 %v566
      %573 = vmatprep.subr.bf16.mxu0 0
      %574 = vmatpush1.bf16.msra.mxu0 0
      %575 = vmatprep.subr.bf16.mxu0 0
      %576 = vmatpush1.bf16.msra.mxu0 0
      %577 = vmatprep.subr.bf16.mxu0 0
      %578 = vmatpush1.bf16.msra.mxu0 0
      %579 = vmatprep.subr.bf16.mxu0 0
      %580 = vmatpush1.bf16.msra.mxu0 0
      %581 = vmatprep.subr.bf16.mxu0 0
      %582 = vmatpush1.bf16.msra.mxu0 0
      %583 = vmatprep.subr.bf16.mxu0 0
      %584 = vmatpush1.bf16.msra.mxu0 0
      %585 = vmatprep.subr.bf16.mxu0 0
      %586 = vmatpush1.bf16.msra.mxu0 0
      %587 = vmatprep.subr.bf16.mxu0 0
      %588 = vmatpush1.bf16.msra.mxu0 0
      %589 = vmatprep.subr.bf16.mxu0 0
      %590 = vmatpush1.bf16.msra.mxu0 0
      %591 = vmatprep.subr.bf16.mxu0 0
      %592 = vmatpush1.bf16.msra.mxu0 0
      %593 = vmatprep.subr.bf16.mxu0 0
      %594 = vmatpush1.bf16.msra.mxu0 0
      %595 = vmatprep.subr.bf16.mxu0 0
      %596 = vmatpush1.bf16.msra.mxu0 0
      %597 = vmatprep.subr.bf16.mxu0 0
      %598 = vmatpush1.bf16.msra.mxu0 0
      %599 = vmatprep.subr.bf16.mxu0 0
      %600 = vmatpush1.bf16.msra.mxu0 0
      %601 = vmatprep.subr.bf16.mxu0 0
      %602 = vmatpush1.bf16.msra.mxu0 0
      %603 = vmatprep.mubr.bf16.mxu0 0
      %604 = vmatmul.mubr.bf16.gmra.mrb[0].mxu0 %v569
      %v605 = vpop.f32.mrb[0].mxu0
      %v606 = vadd.f32 0.0, %v605
      %v607 = vpop.f32.mrb[0].mxu0
      %v608 = vpop.f32.mrb[0].mxu0
      %v609 = vadd.f32 0.0, %v608
      %v610 = vpop.f32.mrb[0].mxu0
      %611 = vdwg.mxu0
      %v612 = vpack.c.bf16 %v609, %v606
      %613 = vrot.lane.b32.xlu0 %v472, 32
      %v614 = vpop.permute.xlu0 %613
      %615 = vrot.lane.b32.xlu0 %v479, 32
      %v616 = vpop.permute.xlu0 %615
      %v618 = vsel %vm185, %v614, 0
      %v621 = vsel %vm185, %v616, 0
      %623 = vmatprep.subr.bf16.mxu0 0
      %624 = vmatpush1.bf16.xpose.msra.mxu0 %v621
      %625 = vmatprep.subr.bf16.mxu0 0
      %626 = vmatpush1.bf16.xpose.msra.mxu0 0
      %627 = vmatprep.subr.bf16.mxu0 0
      %628 = vmatpush1.bf16.xpose.msra.mxu0 0
      %629 = vmatprep.subr.bf16.mxu0 0
      %630 = vmatpush1.bf16.xpose.msra.mxu0 0
      %631 = vmatprep.subr.bf16.mxu0 0
      %632 = vmatpush1.bf16.xpose.msra.mxu0 0
      %633 = vmatprep.subr.bf16.mxu0 0
      %634 = vmatpush1.bf16.xpose.msra.mxu0 0
      %635 = vmatprep.subr.bf16.mxu0 0
      %636 = vmatpush1.bf16.xpose.msra.mxu0 0
      %637 = vmatprep.subr.bf16.mxu0 0
      %638 = vmatpush1.bf16.xpose.msra.mxu0 0
      %639 = vmatprep.subr.bf16.mxu0 0
      %640 = vmatpush1.bf16.xpose.msra.mxu0 0
      %641 = vmatprep.subr.bf16.mxu0 0
      %642 = vmatpush1.bf16.xpose.msra.mxu0 0
      %643 = vmatprep.subr.bf16.mxu0 0
      %644 = vmatpush1.bf16.xpose.msra.mxu0 0
      %645 = vmatprep.subr.bf16.mxu0 0
      %646 = vmatpush1.bf16.xpose.msra.mxu0 0
      %647 = vmatprep.subr.bf16.mxu0 0
      %648 = vmatpush1.bf16.xpose.msra.mxu0 0
      %649 = vmatprep.subr.bf16.mxu0 0
      %650 = vmatpush1.bf16.xpose.msra.mxu0 0
      %651 = vmatprep.subr.bf16.mxu0 0
      %652 = vmatpush1.bf16.xpose.msra.mxu0 0
      %653 = vmatprep.subr.bf16.mxu0 0
      %654 = vmatpush1.bf16.xpose.msra.mxu0 0
      %655 = vmatprep.mubr.bf16.mxu0 0
      %656 = vmatmul.mubr.bf16.gmra.mrb[0].mxu0 %v618
      %v657 = vpop.f32.mrb[0].mxu0
      %v658 = vadd.f32 0.0, %v657
      %v659 = vpop.f32.mrb[0].mxu0
      %v660 = vpop.f32.mrb[0].mxu0
      %v661 = vadd.f32 0.0, %v660
      %v662 = vpop.f32.mrb[0].mxu0
      %663 = vdwg.mxu0
      %v664 = vmul.f32 %v658, 0.17677669
      %v665 = vmul.f32 %v661, 0.17677669
      %v666 = vlaneseq
      %v667 = vshrl.u32 %v666, 7
      %v668 = vsub.s32 3, %v667
      %v669 = vrot.slane %v168, %v668
      %v670 = vadd.f32 %v664, %v669
      %v671 = vadd.f32 %v665, %v669
      %v672 = vsel %vm241, %v670, -inf
      %673 = vmax.xlane.f32.xlu0 %v672
      %v674 = vpop.xlane.xlu0 %673
      %v675 = vsel %vm241, %v671, -inf
      %676 = vmax.xlane.f32.xlu0 %v675
      %v677 = vpop.xlane.xlu0 %676
      %v678 = vsub.f32 %v670, %v674
      %v679 = vsub.f32 %v671, %v677
      %v680 = vmul.f32 %v678, 1.442695
      %v681 = vpow.pop %v680
      %v682 = vmul.f32 %v679, 1.442695
      %v683 = vpow.pop %v682
      %v684 = vsel %vm241, %v681, 0.0
      %685 = vadd.xlane.f32.xlu0 %v684
      %v686 = vpop.xlane.xlu0 %685
      %v687 = vsel %vm241, %v683, 0.0
      %688 = vadd.xlane.f32.xlu0 %v687
      %v689 = vpop.xlane.xlu0 %688
      %v690 = vrcp.pop %v686
      %v691 = vrcp.pop %v689
      %v692 = vmul.f32 %v681, %v690
      %v693 = vmul.f32 %v683, %v691
      %v694 = vpack.c.bf16 %v693, %v692
      %695 = vrot.lane.b32.xlu0 %v564, 32
      %v696 = vpop.permute.xlu0 %695
      %v699 = vsel %vm241, %v694, 0
      %701 = vmatprep.subr.bf16.mxu0 0
      %702 = vmatpush1.bf16.msra.mxu0 %v696
      %703 = vmatprep.subr.bf16.mxu0 0
      %704 = vmatpush1.bf16.msra.mxu0 0
      %705 = vmatprep.subr.bf16.mxu0 0
      %706 = vmatpush1.bf16.msra.mxu0 0
      %707 = vmatprep.subr.bf16.mxu0 0
      %708 = vmatpush1.bf16.msra.mxu0 0
      %709 = vmatprep.subr.bf16.mxu0 0
      %710 = vmatpush1.bf16.msra.mxu0 0
      %711 = vmatprep.subr.bf16.mxu0 0
      %712 = vmatpush1.bf16.msra.mxu0 0
      %713 = vmatprep.subr.bf16.mxu0 0
      %714 = vmatpush1.bf16.msra.mxu0 0
      %715 = vmatprep.subr.bf16.mxu0 0
      %716 = vmatpush1.bf16.msra.mxu0 0
      %717 = vmatprep.subr.bf16.mxu0 0
      %718 = vmatpush1.bf16.msra.mxu0 0
      %719 = vmatprep.subr.bf16.mxu0 0
      %720 = vmatpush1.bf16.msra.mxu0 0
      %721 = vmatprep.subr.bf16.mxu0 0
      %722 = vmatpush1.bf16.msra.mxu0 0
      %723 = vmatprep.subr.bf16.mxu0 0
      %724 = vmatpush1.bf16.msra.mxu0 0
      %725 = vmatprep.subr.bf16.mxu0 0
      %726 = vmatpush1.bf16.msra.mxu0 0
      %727 = vmatprep.subr.bf16.mxu0 0
      %728 = vmatpush1.bf16.msra.mxu0 0
      %729 = vmatprep.subr.bf16.mxu0 0
      %730 = vmatpush1.bf16.msra.mxu0 0
      %731 = vmatprep.subr.bf16.mxu0 0
      %732 = vmatpush1.bf16.msra.mxu0 0
      %733 = vmatprep.mubr.bf16.mxu0 0
      %734 = vmatmul.mubr.bf16.gmra.mrb[0].mxu0 %v699
      %v735 = vpop.f32.mrb[0].mxu0
      %v736 = vadd.f32 0.0, %v735
      %v737 = vpop.f32.mrb[0].mxu0
      %v738 = vpop.f32.mrb[0].mxu0
      %v739 = vadd.f32 0.0, %v738
      %v740 = vpop.f32.mrb[0].mxu0
      %741 = vdwg.mxu0
      %v742 = vpack.c.bf16 %v739, %v736
      %744 = vrot.lane.b32.xlu0 %v742, 32
      %v745 = vpop.permute.xlu0 %744
      %v748 = vsel %vm185, %v612, %v745
      %v750 = vunpack.c.l.b16 %v748
      %v751 = vunpack.c.h.b16 %v748
      %v752 = vpack.c.b16 %v750, %v750
      %v753 = vpack.c.b16 %v751, %v751
      %754 = vrot.lane.b32.xlu0 %v752, 64
      %v755 = vpop.permute.xlu0 %754
      %756 = vrot.lane.b32.xlu0 %v753, 64
      %v757 = vpop.permute.xlu0 %756
      %vm760 = vcmask 1043968
      %761 = vst.msk [vmem:[%s165] sm:$0xf] %vm760, %v755
      %762 = vst.msk [vmem:[%s165 + $0x4] sm:$0xf] %vm760, %v757
      %s763 = smul.u32 2, %s13
      %p764 = scmp.lt.s32.totalorder %s763, 3
      %s765 = scalar_select %p764, %s763, 3
      %s766 = smul.addr %s765, 4
      %s767 = scalar_lea.vmem %s2, %s766
      // Predicated region
      $region29: #{bert_token_classification_forward.12} parent=27 // pred_check
        %p768 = pneg %p83
      $region30: #{bert_token_classification_forward.12} parent=27 // pred_check_branch
        %770 = sbr.rel (%p768) target = $region32
      $region31: #{bert_token_classification_forward.12} parent=27 // pred_region
        %s771 = smul.u32 2, %s13
      $region32: #{bert_token_classification_forward.12} parent=27 // pred_fallthru
        _
    $region28: #{bert_token_classification_forward.12} parent=5 // pred_fallthru
      _
    %p772 = scmp.le.s32.totalorder 2, %s8
    // Predicated region
    $region33: #{bert_token_classification_forward.12} parent=5 // pred_check
      %p773 = pneg %p772
    $region34: #{bert_token_classification_forward.12} parent=5 // pred_check_branch
      %775 = sbr.rel (%p773) target = $region36
    $region35: #{bert_token_classification_forward.12} parent=5 // pred_region
      %s776 = ssub.s32 %s8, 2
      // Predicated region
      $region37: #{bert_token_classification_forward.12} parent=35 // pred_check
        %p777 = pneg %p89
      $region38: #{bert_token_classification_forward.12} parent=35 // pred_check_branch
        %779 = sbr.rel (%p777) target = $region40
      $region39: #{bert_token_classification_forward.12} parent=35 // pred_region
        %s780 = smul.u32 2, %s14
        %p781 = scmp.lt.s32.totalorder %s780, 3
        %s782 = scalar_select %p781, %s780, 3
        %s783 = smul.addr %s782, 4
        %s784 = scalar_lea.vmem %s2, %s783
      $region40: #{bert_token_classification_forward.12} parent=35 // pred_fallthru
        _
    $region36: #{bert_token_classification_forward.12} parent=5 // pred_fallthru
      _
  $region6: #{bert_token_classification_forward.12} parent=0 // loop_footer
    %s12 = sadd.s32 1, %s8
  $region7: #{bert_token_classification_forward.12} parent=0 // loop_footer_branch
    %7 = sbr.rel target = $region3
  $region8: #{bert_token_classification_forward.12} parent=0 // loop_exit
    _

// kernel: bert_token_classification_forward.14
$region0: #{bert_token_classification_forward.14}
  #allocation0 [shape = 'u32[]', space=smem, size = 0x4, offset = 0x4, fixed_abs, tag = 'smem constant byte address 0x4 - core index']
  #allocation1 [shape = 'u32[144,128]{1,0:T(1,128)}', space=vmem, size = 0x12000, scoped, tag = 'internal scratch']
  #allocation2 [shape = 'f32[32,512]{1,0:T(8,128)}', space=vmem, size = 0x10000, scoped, tag = 'scratch operand']
  %s0 = inlined_call_operand.vmem [shape: bf16[32,128], index: 0, kind: input, shape index: {}]
  %s1 = inlined_call_operand.vmem [shape: bf16[128,512], index: 1, kind: input, shape index: {}]
  %s2 = inlined_call_operand.vmem [shape: f32[1,512], index: 2, kind: input, shape index: {}]
  %s3 = inlined_call_operand.vmem [shape: bf16[32,512], index: 3, kind: output, shape index: {}]
  %s4 = sld [smem:[#allocation0]]
  $region30: #{bert_token_classification_forward.14} parent=0
    _
  %s6 = ssub.s32 1, %s4
  %s7 = scalar_select 0, %s6, %s4
  // Predicated region
  $region2: #{bert_token_classification_forward.14} parent=0 // pred_check
    _
  $region3: #{bert_token_classification_forward.14} parent=0 // pred_check_branch
    %9 = sbr.rel (0) target = $region5
  $region4: #{bert_token_classification_forward.14} parent=0 // pred_region
    _
  $region5: #{bert_token_classification_forward.14} parent=0 // pred_fallthru
    _
  // Predicated region
  $region6: #{bert_token_classification_forward.14} parent=0 // pred_check
    _
  $region7: #{bert_token_classification_forward.14} parent=0 // pred_check_branch
    %11 = sbr.rel (0) target = $region9
  $region8: #{bert_token_classification_forward.14} parent=0 // pred_region
    _
  $region9: #{bert_token_classification_forward.14} parent=0 // pred_fallthru
    _
  // Predicated region
  $region10: #{bert_token_classification_forward.14} parent=0 // pred_check
    _
  $region11: #{bert_token_classification_forward.14} parent=0 // pred_check_branch
    %13 = sbr.rel (0) target = $region13
  $region12: #{bert_token_classification_forward.14} parent=0 // pred_region
    _
  $region13: #{bert_token_classification_forward.14} parent=0 // pred_fallthru
    _
  %p15 = scmp.eq.s32.totalorder 0, 0
  // Predicated region
  $region14: #{bert_token_classification_forward.14} parent=0 // pred_check
    %p16 = pneg %p15
  $region15: #{bert_token_classification_forward.14} parent=0 // pred_check_branch
    %18 = sbr.rel (%p16) target = $region17
  $region16: #{bert_token_classification_forward.14} parent=0 // pred_region
    %19 = vst [vmem:[#allocation2] sm:$0xff] 0.0
    %20 = vst [vmem:[#allocation2 + $0x8] sm:$0xff] 0.0
    %21 = vst [vmem:[#allocation2 + $0x10] sm:$0xff] 0.0
    %22 = vst [vmem:[#allocation2 + $0x18] sm:$0xff] 0.0
    %23 = vst [vmem:[#allocation2 + $0x20] sm:$0xff] 0.0
    %24 = vst [vmem:[#allocation2 + $0x28] sm:$0xff] 0.0
    %25 = vst [vmem:[#allocation2 + $0x30] sm:$0xff] 0.0
    %26 = vst [vmem:[#allocation2 + $0x38] sm:$0xff] 0.0
    %27 = vst [vmem:[#allocation2 + $0x40] sm:$0xff] 0.0
    %28 = vst [vmem:[#allocation2 + $0x48] sm:$0xff] 0.0
    %29 = vst [vmem:[#allocation2 + $0x50] sm:$0xff] 0.0
    %30 = vst [vmem:[#allocation2 + $0x58] sm:$0xff] 0.0
    %31 = vst [vmem:[#allocation2 + $0x60] sm:$0xff] 0.0
    %32 = vst [vmem:[#allocation2 + $0x68] sm:$0xff] 0.0
    %33 = vst [vmem:[#allocation2 + $0x70] sm:$0xff] 0.0
    %34 = vst [vmem:[#allocation2 + $0x78] sm:$0xff] 0.0
  $region17: #{bert_token_classification_forward.14} parent=0 // pred_fallthru
    _
  %v35 = vld [vmem:[#allocation2] sm:$0xff]
  %v36 = vld [vmem:[#allocation2 + $0x8] sm:$0xff]
  %v37 = vld [vmem:[#allocation2 + $0x10] sm:$0xff]
  %v38 = vld [vmem:[#allocation2 + $0x18] sm:$0xff]
  %v39 = vld [vmem:[#allocation2 + $0x20] sm:$0xff]
  %v40 = vld [vmem:[#allocation2 + $0x28] sm:$0xff]
  %v41 = vld [vmem:[#allocation2 + $0x30] sm:$0xff]
  %v42 = vld [vmem:[#allocation2 + $0x38] sm:$0xff]
  %v43 = vld [vmem:[#allocation2 + $0x40] sm:$0xff]
  %v44 = vld [vmem:[#allocation2 + $0x48] sm:$0xff]
  %v45 = vld [vmem:[#allocation2 + $0x50] sm:$0xff]
  %v46 = vld [vmem:[#allocation2 + $0x58] sm:$0xff]
  %v47 = vld [vmem:[#allocation2 + $0x60] sm:$0xff]
  %v48 = vld [vmem:[#allocation2 + $0x68] sm:$0xff]
  %v49 = vld [vmem:[#allocation2 + $0x70] sm:$0xff]
  %v50 = vld [vmem:[#allocation2 + $0x78] sm:$0xff]
  %v51 = vld [vmem:[%s0] sm:$0xf]
  %v52 = vld [vmem:[%s0 + $0x4] sm:$0xf]
  %v53 = vld [vmem:[%s0 + $0x8] sm:$0xf]
  %v54 = vld [vmem:[%s0 + $0xc] sm:$0xf]
  %v55 = vld [vmem:[%s1] sm:$0xff]
  %v56 = vld [vmem:[%s1 + $0x8] sm:$0xff]
  %v57 = vld [vmem:[%s1 + $0x10] sm:$0xff]
  %v58 = vld [vmem:[%s1 + $0x18] sm:$0xff]
  %v59 = vld [vmem:[%s1 + $0x20] sm:$0xff]
  %v60 = vld [vmem:[%s1 + $0x28] sm:$0xff]
  %v61 = vld [vmem:[%s1 + $0x30] sm:$0xff]
  %v62 = vld [vmem:[%s1 + $0x38] sm:$0xff]
  %v63 = vld [vmem:[%s1 + $0x40] sm:$0xff]
  %v64 = vld [vmem:[%s1 + $0x48] sm:$0xff]
  %v65 = vld [vmem:[%s1 + $0x50] sm:$0xff]
  %v66 = vld [vmem:[%s1 + $0x58] sm:$0xff]
  %v67 = vld [vmem:[%s1 + $0x60] sm:$0xff]
  %v68 = vld [vmem:[%s1 + $0x68] sm:$0xff]
  %v69 = vld [vmem:[%s1 + $0x70] sm:$0xff]
  %v70 = vld [vmem:[%s1 + $0x78] sm:$0xff]
  %v71 = vld [vmem:[%s1 + $0x80] sm:$0xff]
  %v72 = vld [vmem:[%s1 + $0x88] sm:$0xff]
  %v73 = vld [vmem:[%s1 + $0x90] sm:$0xff]
  %v74 = vld [vmem:[%s1 + $0x98] sm:$0xff]
  %v75 = vld [vmem:[%s1 + $0xa0] sm:$0xff]
  %v76 = vld [vmem:[%s1 + $0xa8] sm:$0xff]
  %v77 = vld [vmem:[%s1 + $0xb0] sm:$0xff]
  %v78 = vld [vmem:[%s1 + $0xb8] sm:$0xff]
  %v79 = vld [vmem:[%s1 + $0xc0] sm:$0xff]
  %v80 = vld [vmem:[%s1 + $0xc8] sm:$0xff]
  %v81 = vld [vmem:[%s1 + $0xd0] sm:$0xff]
  %v82 = vld [vmem:[%s1 + $0xd8] sm:$0xff]
  %v83 = vld [vmem:[%s1 + $0xe0] sm:$0xff]
  %v84 = vld [vmem:[%s1 + $0xe8] sm:$0xff]
  %v85 = vld [vmem:[%s1 + $0xf0] sm:$0xff]
  %v86 = vld [vmem:[%s1 + $0xf8] sm:$0xff]
  %v91 = vunpack.c.l.b16 %v51
  %v92 = vunpack.c.l.b16 %v52
  %v93 = vunpack.c.l.b16 %v53
  %v94 = vunpack.c.l.b16 %v54
  %v95 = vpack.c.b16 %v92, %v91
  %v96 = vpack.c.b16 %v94, %v93
  %v131 = vunpack.c.l.b16 %v55
  %v132 = vunpack.c.h.b16 %v55
  %v133 = vunpack.c.l.b16 %v56
  %v134 = vunpack.c.h.b16 %v56
  %v135 = vunpack.c.l.b16 %v57
  %v136 = vunpack.c.h.b16 %v57
  %v137 = vunpack.c.l.b16 %v58
  %v138 = vunpack.c.h.b16 %v58
  %v139 = vunpack.c.l.b16 %v59
  %v140 = vunpack.c.h.b16 %v59
  %v141 = vunpack.c.l.b16 %v60
  %v142 = vunpack.c.h.b16 %v60
  %v143 = vunpack.c.l.b16 %v61
  %v144 = vunpack.c.h.b16 %v61
  %v145 = vunpack.c.l.b16 %v62
  %v146 = vunpack.c.h.b16 %v62
  %v147 = vunpack.c.l.b16 %v63
  %v148 = vunpack.c.h.b16 %v63
  %v149 = vunpack.c.l.b16 %v64
  %v150 = vunpack.c.h.b16 %v64
  %v151 = vunpack.c.l.b16 %v65
  %v152 = vunpack.c.h.b16 %v65
  %v153 = vunpack.c.l.b16 %v66
  %v154 = vunpack.c.h.b16 %v66
  %v155 = vunpack.c.l.b16 %v67
  %v156 = vunpack.c.h.b16 %v67
  %v157 = vunpack.c.l.b16 %v68
  %v158 = vunpack.c.h.b16 %v68
  %v159 = vunpack.c.l.b16 %v69
  %v160 = vunpack.c.h.b16 %v69
  %v161 = vunpack.c.l.b16 %v70
  %v162 = vunpack.c.h.b16 %v70
  %v163 = vunpack.c.l.b16 %v71
  %v164 = vunpack.c.h.b16 %v71
  %v165 = vunpack.c.l.b16 %v72
  %v166 = vunpack.c.h.b16 %v72
  %v167 = vunpack.c.l.b16 %v73
  %v168 = vunpack.c.h.b16 %v73
  %v169 = vunpack.c.l.b16 %v74
  %v170 = vunpack.c.h.b16 %v74
  %v171 = vunpack.c.l.b16 %v75
  %v172 = vunpack.c.h.b16 %v75
  %v173 = vunpack.c.l.b16 %v76
  %v174 = vunpack.c.h.b16 %v76
  %v175 = vunpack.c.l.b16 %v77
  %v176 = vunpack.c.h.b16 %v77
  %v177 = vunpack.c.l.b16 %v78
  %v178 = vunpack.c.h.b16 %v78
  %v179 = vunpack.c.l.b16 %v79
  %v180 = vunpack.c.h.b16 %v79
  %v181 = vunpack.c.l.b16 %v80
  %v182 = vunpack.c.h.b16 %v80
  %v183 = vunpack.c.l.b16 %v81
  %v184 = vunpack.c.h.b16 %v81
  %v185 = vunpack.c.l.b16 %v82
  %v186 = vunpack.c.h.b16 %v82
  %v187 = vunpack.c.l.b16 %v83
  %v188 = vunpack.c.h.b16 %v83
  %v189 = vunpack.c.l.b16 %v84
  %v190 = vunpack.c.h.b16 %v84
  %v191 = vunpack.c.l.b16 %v85
  %v192 = vunpack.c.h.b16 %v85
  %v193 = vunpack.c.l.b16 %v86
  %v194 = vunpack.c.h.b16 %v86
  %v195 = vpack.c.b16 %v135, %v131
  %v196 = vpack.c.b16 %v136, %v132
  %v197 = vpack.c.b16 %v137, %v133
  %v198 = vpack.c.b16 %v138, %v134
  %v199 = vpack.c.b16 %v143, %v139
  %v200 = vpack.c.b16 %v144, %v140
  %v201 = vpack.c.b16 %v145, %v141
  %v202 = vpack.c.b16 %v146, %v142
  %v203 = vpack.c.b16 %v151, %v147
  %v204 = vpack.c.b16 %v152, %v148
  %v205 = vpack.c.b16 %v153, %v149
  %v206 = vpack.c.b16 %v154, %v150
  %v207 = vpack.c.b16 %v159, %v155
  %v208 = vpack.c.b16 %v160, %v156
  %v209 = vpack.c.b16 %v161, %v157
  %v210 = vpack.c.b16 %v162, %v158
  %v211 = vpack.c.b16 %v167, %v163
  %v212 = vpack.c.b16 %v168, %v164
  %v213 = vpack.c.b16 %v169, %v165
  %v214 = vpack.c.b16 %v170, %v166
  %v215 = vpack.c.b16 %v175, %v171
  %v216 = vpack.c.b16 %v176, %v172
  %v217 = vpack.c.b16 %v177, %v173
  %v218 = vpack.c.b16 %v178, %v174
  %v219 = vpack.c.b16 %v183, %v179
  %v220 = vpack.c.b16 %v184, %v180
  %v221 = vpack.c.b16 %v185, %v181
  %v222 = vpack.c.b16 %v186, %v182
  %v223 = vpack.c.b16 %v191, %v187
  %v224 = vpack.c.b16 %v192, %v188
  %v225 = vpack.c.b16 %v193, %v189
  %v226 = vpack.c.b16 %v194, %v190
  %259 = vmatprep.subr.bf16.mxu0 %v196
  %260 = vmatpush1.bf16.msra.mxu0 %v195
  %261 = vmatprep.subr.bf16.mxu0 %v200
  %262 = vmatpush1.bf16.msra.mxu0 %v199
  %263 = vmatprep.subr.bf16.mxu0 %v204
  %264 = vmatpush1.bf16.msra.mxu0 %v203
  %265 = vmatprep.subr.bf16.mxu0 %v208
  %266 = vmatpush1.bf16.msra.mxu0 %v207
  %267 = vmatprep.subr.bf16.mxu0 %v212
  %268 = vmatpush1.bf16.msra.mxu0 %v211
  %269 = vmatprep.subr.bf16.mxu0 %v216
  %270 = vmatpush1.bf16.msra.mxu0 %v215
  %271 = vmatprep.subr.bf16.mxu0 %v220
  %272 = vmatpush1.bf16.msra.mxu0 %v219
  %273 = vmatprep.subr.bf16.mxu0 %v224
  %274 = vmatpush1.bf16.msra.mxu0 %v223
  %275 = vmatprep.subr.bf16.mxu0 0
  %276 = vmatpush1.bf16.msra.mxu0 0
  %277 = vmatprep.subr.bf16.mxu0 0
  %278 = vmatpush1.bf16.msra.mxu0 0
  %279 = vmatprep.subr.bf16.mxu0 0
  %280 = vmatpush1.bf16.msra.mxu0 0
  %281 = vmatprep.subr.bf16.mxu0 0
  %282 = vmatpush1.bf16.msra.mxu0 0
  %283 = vmatprep.subr.bf16.mxu0 0
  %284 = vmatpush1.bf16.msra.mxu0 0
  %285 = vmatprep.subr.bf16.mxu0 0
  %286 = vmatpush1.bf16.msra.mxu0 0
  %287 = vmatprep.subr.bf16.mxu0 0
  %288 = vmatpush1.bf16.msra.mxu0 0
  %289 = vmatprep.subr.bf16.mxu0 0
  %290 = vmatpush1.bf16.msra.mxu0 0
  %291 = vmatprep.mubr.bf16.mxu0 0
  %292 = vmatmul.mubr.bf16.gmra.mrb[0].mxu0 %v95
  %v293 = vpop.f32.mrb[0].mxu0
  %v294 = vadd.f32 0.0, %v293
  %v295 = vpop.f32.mrb[0].mxu0
  %v296 = vadd.f32 0.0, %v295
  %v297 = vpop.f32.mrb[0].mxu0
  %v298 = vadd.f32 0.0, %v297
  %v299 = vpop.f32.mrb[0].mxu0
  %v300 = vadd.f32 0.0, %v299
  %301 = vmatprep.mubr.bf16.mxu0 0
  %302 = vmatmul.mubr.bf16.gmra.mrb[0].mxu0 %v96
  %v303 = vpop.f32.mrb[0].mxu0
  %v304 = vadd.f32 0.0, %v303
  %v305 = vpop.f32.mrb[0].mxu0
  %v306 = vadd.f32 0.0, %v305
  %v307 = vpop.f32.mrb[0].mxu0
  %v308 = vadd.f32 0.0, %v307
  %v309 = vpop.f32.mrb[0].mxu0
  %v310 = vadd.f32 0.0, %v309
  %311 = vdwg.mxu0
  %312 = vmatprep.subr.bf16.mxu0 %v198
  %313 = vmatpush1.bf16.msra.mxu0 %v197
  %314 = vmatprep.subr.bf16.mxu0 %v202
  %315 = vmatpush1.bf16.msra.mxu0 %v201
  %316 = vmatprep.subr.bf16.mxu0 %v206
  %317 = vmatpush1.bf16.msra.mxu0 %v205
  %318 = vmatprep.subr.bf16.mxu0 %v210
  %319 = vmatpush1.bf16.msra.mxu0 %v209
  %320 = vmatprep.subr.bf16.mxu0 %v214
  %321 = vmatpush1.bf16.msra.mxu0 %v213
  %322 = vmatprep.subr.bf16.mxu0 %v218
  %323 = vmatpush1.bf16.msra.mxu0 %v217
  %324 = vmatprep.subr.bf16.mxu0 %v222
  %325 = vmatpush1.bf16.msra.mxu0 %v221
  %326 = vmatprep.subr.bf16.mxu0 %v226
  %327 = vmatpush1.bf16.msra.mxu0 %v225
  %328 = vmatprep.subr.bf16.mxu0 0
  %329 = vmatpush1.bf16.msra.mxu0 0
  %330 = vmatprep.subr.bf16.mxu0 0
  %331 = vmatpush1.bf16.msra.mxu0 0
  %332 = vmatprep.subr.bf16.mxu0 0
  %333 = vmatpush1.bf16.msra.mxu0 0
  %334 = vmatprep.subr.bf16.mxu0 0
  %335 = vmatpush1.bf16.msra.mxu0 0
  %336 = vmatprep.subr.bf16.mxu0 0
  %337 = vmatpush1.bf16.msra.mxu0 0
  %338 = vmatprep.subr.bf16.mxu0 0
  %339 = vmatpush1.bf16.msra.mxu0 0
  %340 = vmatprep.subr.bf16.mxu0 0
  %341 = vmatpush1.bf16.msra.mxu0 0
  %342 = vmatprep.subr.bf16.mxu0 0
  %343 = vmatpush1.bf16.msra.mxu0 0
  %344 = vmatprep.mubr.bf16.mxu0 0
  %345 = vmatmul.mubr.bf16.gmra.mrb[0].mxu0 %v95
  %v346 = vpop.f32.mrb[0].mxu0
  %v347 = vadd.f32 0.0, %v346
  %v348 = vpop.f32.mrb[0].mxu0
  %v349 = vadd.f32 0.0, %v348
  %v350 = vpop.f32.mrb[0].mxu0
  %v351 = vadd.f32 0.0, %v350
  %v352 = vpop.f32.mrb[0].mxu0
  %v353 = vadd.f32 0.0, %v352
  %354 = vmatprep.mubr.bf16.mxu0 0
  %355 = vmatmul.mubr.bf16.gmra.mrb[0].mxu0 %v96
  %v356 = vpop.f32.mrb[0].mxu0
  %v357 = vadd.f32 0.0, %v356
  %v358 = vpop.f32.mrb[0].mxu0
  %v359 = vadd.f32 0.0, %v358
  %v360 = vpop.f32.mrb[0].mxu0
  %v361 = vadd.f32 0.0, %v360
  %v362 = vpop.f32.mrb[0].mxu0
  %v363 = vadd.f32 0.0, %v362
  %364 = vdwg.mxu0
  %v365 = vadd.f32 %v35, %v294
  %v366 = vadd.f32 %v36, %v296
  %v367 = vadd.f32 %v37, %v347
  %v368 = vadd.f32 %v38, %v349
  %v369 = vadd.f32 %v39, %v298
  %v370 = vadd.f32 %v40, %v300
  %v371 = vadd.f32 %v41, %v351
  %v372 = vadd.f32 %v42, %v353
  %v373 = vadd.f32 %v43, %v304
  %v374 = vadd.f32 %v44, %v306
  %v375 = vadd.f32 %v45, %v357
  %v376 = vadd.f32 %v46, %v359
  %v377 = vadd.f32 %v47, %v308
  %v378 = vadd.f32 %v48, %v310
  %v379 = vadd.f32 %v49, %v361
  %v380 = vadd.f32 %v50, %v363
  %381 = vst [vmem:[#allocation2] sm:$0xff] %v365
  %382 = vst [vmem:[#allocation2 + $0x8] sm:$0xff] %v366
  %383 = vst [vmem:[#allocation2 + $0x10] sm:$0xff] %v367
  %384 = vst [vmem:[#allocation2 + $0x18] sm:$0xff] %v368
  %385 = vst [vmem:[#allocation2 + $0x20] sm:$0xff] %v369
  %386 = vst [vmem:[#allocation2 + $0x28] sm:$0xff] %v370
  %387 = vst [vmem:[#allocation2 + $0x30] sm:$0xff] %v371
  %388 = vst [vmem:[#allocation2 + $0x38] sm:$0xff] %v372
  %389 = vst [vmem:[#allocation2 + $0x40] sm:$0xff] %v373
  %390 = vst [vmem:[#allocation2 + $0x48] sm:$0xff] %v374
  %391 = vst [vmem:[#allocation2 + $0x50] sm:$0xff] %v375
  %392 = vst [vmem:[#allocation2 + $0x58] sm:$0xff] %v376
  %393 = vst [vmem:[#allocation2 + $0x60] sm:$0xff] %v377
  %394 = vst [vmem:[#allocation2 + $0x68] sm:$0xff] %v378
  %395 = vst [vmem:[#allocation2 + $0x70] sm:$0xff] %v379
  %396 = vst [vmem:[#allocation2 + $0x78] sm:$0xff] %v380
  // Predicated region
  $region18: #{bert_token_classification_forward.14} parent=0 // pred_check
    %p397 = pneg %p15
  $region19: #{bert_token_classification_forward.14} parent=0 // pred_check_branch
    %399 = sbr.rel (%p397) target = $region21
  $region20: #{bert_token_classification_forward.14} parent=0 // pred_region
    %v400 = vld [vmem:[#allocation2] sm:$0xff]
    %v401 = vld [vmem:[#allocation2 + $0x8] sm:$0xff]
    %v402 = vld [vmem:[#allocation2 + $0x10] sm:$0xff]
    %v403 = vld [vmem:[#allocation2 + $0x18] sm:$0xff]
    %v404 = vld [vmem:[#allocation2 + $0x20] sm:$0xff]
    %v405 = vld [vmem:[#allocation2 + $0x28] sm:$0xff]
    %v406 = vld [vmem:[#allocation2 + $0x30] sm:$0xff]
    %v407 = vld [vmem:[#allocation2 + $0x38] sm:$0xff]
    %v408 = vld [vmem:[#allocation2 + $0x40] sm:$0xff]
    %v409 = vld [vmem:[#allocation2 + $0x48] sm:$0xff]
    %v410 = vld [vmem:[#allocation2 + $0x50] sm:$0xff]
    %v411 = vld [vmem:[#allocation2 + $0x58] sm:$0xff]
    %v412 = vld [vmem:[#allocation2 + $0x60] sm:$0xff]
    %v413 = vld [vmem:[#allocation2 + $0x68] sm:$0xff]
    %v414 = vld [vmem:[#allocation2 + $0x70] sm:$0xff]
    %v415 = vld [vmem:[#allocation2 + $0x78] sm:$0xff]
    %v416 = vld [vmem:[%s2] sm:$0xf]
    %v418 = vlaneseq
    %v419 = vshrl.u32 %v418, 7
    %v420 = vsub.s32 0, %v419
    %v421 = vrot.slane %v416, %v420
    %v422 = vlaneseq
    %v423 = vshrl.u32 %v422, 7
    %v424 = vsub.s32 1, %v423
    %v425 = vrot.slane %v416, %v424
    %v426 = vlaneseq
    %v427 = vshrl.u32 %v426, 7
    %v428 = vsub.s32 2, %v427
    %v429 = vrot.slane %v416, %v428
    %v430 = vlaneseq
    %v431 = vshrl.u32 %v430, 7
    %v432 = vsub.s32 3, %v431
    %v433 = vrot.slane %v416, %v432
    %v438 = vadd.f32 %v400, %v421
    %v439 = vadd.f32 %v401, %v425
    %v440 = vadd.f32 %v402, %v429
    %v441 = vadd.f32 %v403, %v433
    %v442 = vadd.f32 %v404, %v421
    %v443 = vadd.f32 %v405, %v425
    %v444 = vadd.f32 %v406, %v429
    %v445 = vadd.f32 %v407, %v433
    %v446 = vadd.f32 %v408, %v421
    %v447 = vadd.f32 %v409, %v425
    %v448 = vadd.f32 %v410, %v429
    %v449 = vadd.f32 %v411, %v433
    %v450 = vadd.f32 %v412, %v421
    %v451 = vadd.f32 %v413, %v425
    %v452 = vadd.f32 %v414, %v429
    %v453 = vadd.f32 %v415, %v433
    %v454 = vmul.f32 %v438, 0.5
    %v455 = vmul.f32 %v439, 0.5
    %v456 = vmul.f32 %v440, 0.5
    %v457 = vmul.f32 %v441, 0.5
    %v458 = vmul.f32 %v442, 0.5
    %v459 = vmul.f32 %v443, 0.5
    %v460 = vmul.f32 %v444, 0.5
    %v461 = vmul.f32 %v445, 0.5
    %v462 = vmul.f32 %v446, 0.5
    %v463 = vmul.f32 %v447, 0.5
    %v464 = vmul.f32 %v448, 0.5
    %v465 = vmul.f32 %v449, 0.5
    %v466 = vmul.f32 %v450, 0.5
    %v467 = vmul.f32 %v451, 0.5
    %v468 = vmul.f32 %v452, 0.5
    %v469 = vmul.f32 %v453, 0.5
    %v470 = vmul.f32 %v438, 0.70710677
    %v471 = vmul.f32 %v439, 0.70710677
    %v472 = vmul.f32 %v440, 0.70710677
    %v473 = vmul.f32 %v441, 0.70710677
    %v474 = vmul.f32 %v442, 0.70710677
    %v475 = vmul.f32 %v443, 0.70710677
    %v476 = vmul.f32 %v444, 0.70710677
    %v477 = vmul.f32 %v445, 0.70710677
    %v478 = vmul.f32 %v446, 0.70710677
    %v479 = vmul.f32 %v447, 0.70710677
    %v480 = vmul.f32 %v448, 0.70710677
    %v481 = vmul.f32 %v449, 0.70710677
    %v482 = vmul.f32 %v450, 0.70710677
    %v483 = vmul.f32 %v451, 0.70710677
    %v484 = vmul.f32 %v452, 0.70710677
    %v485 = vmul.f32 %v453, 0.70710677
    %v486 = vand.u32 2147483647, %v470
    %v487 = vand.u32 2147483647, %v471
    %v488 = vand.u32 2147483647, %v472
    %v489 = vand.u32 2147483647, %v473
    %v490 = vand.u32 2147483647, %v474
    %v491 = vand.u32 2147483647, %v475
    %v492 = vand.u32 2147483647, %v476
    %v493 = vand.u32 2147483647, %v477
    %v494 = vand.u32 2147483647, %v478
    %v495 = vand.u32 2147483647, %v479
    %v496 = vand.u32 2147483647, %v480
    %v497 = vand.u32 2147483647, %v481
    %v498 = vand.u32 2147483647, %v482
    %v499 = vand.u32 2147483647, %v483
    %v500 = vand.u32 2147483647, %v484
    %v501 = vand.u32 2147483647, %v485
    %v502 = vmul.f32 %v486, 0.3275911
    %v503 = vmul.f32 %v487, 0.3275911
    %v504 = vmul.f32 %v488, 0.3275911
    %v505 = vmul.f32 %v489, 0.3275911
    %v506 = vmul.f32 %v490, 0.3275911
    %v507 = vmul.f32 %v491, 0.3275911
    %v508 = vmul.f32 %v492, 0.3275911
    %v509 = vmul.f32 %v493, 0.3275911
    %v510 = vmul.f32 %v494, 0.3275911
    %v511 = vmul.f32 %v495, 0.3275911
    %v512 = vmul.f32 %v496, 0.3275911
    %v513 = vmul.f32 %v497, 0.3275911
    %v514 = vmul.f32 %v498, 0.3275911
    %v515 = vmul.f32 %v499, 0.3275911
    %v516 = vmul.f32 %v500, 0.3275911
    %v517 = vmul.f32 %v501, 0.3275911
    %v518 = vadd.f32 %v502, 1.0
    %v519 = vadd.f32 %v503, 1.0
    %v520 = vadd.f32 %v504, 1.0
    %v521 = vadd.f32 %v505, 1.0
    %v522 = vadd.f32 %v506, 1.0
    %v523 = vadd.f32 %v507, 1.0
    %v524 = vadd.f32 %v508, 1.0
    %v525 = vadd.f32 %v509, 1.0
    %v526 = vadd.f32 %v510, 1.0
    %v527 = vadd.f32 %v511, 1.0
    %v528 = vadd.f32 %v512, 1.0
    %v529 = vadd.f32 %v513, 1.0
    %v530 = vadd.f32 %v514, 1.0
    %v531 = vadd.f32 %v515, 1.0
    %v532 = vadd.f32 %v516, 1.0
    %v533 = vadd.f32 %v517, 1.0
    %v534 = vrcp.pop %v518
    %v535 = vrcp.pop %v519
    %v536 = vrcp.pop %v520
    %v537 = vrcp.pop %v521
    %v538 = vrcp.pop %v522
    %v539 = vrcp.pop %v523
    %v540 = vrcp.pop %v524
    %v541 = vrcp.pop %v525
    %v542 = vrcp.pop %v526
    %v543 = vrcp.pop %v527
    %v544 = vrcp.pop %v528
    %v545 = vrcp.pop %v529
    %v546 = vrcp.pop %v530
    %v547 = vrcp.pop %v531
    %v548 = vrcp.pop %v532
    %v549 = vrcp.pop %v533
    %v550 = vmul.f32 %v534, 1.0614054
    %v551 = vmul.f32 %v535, 1.0614054
    %v552 = vmul.f32 %v536, 1.0614054
    %v553 = vmul.f32 %v537, 1.0614054
    %v554 = vmul.f32 %v538, 1.0614054
    %v555 = vmul.f32 %v539, 1.0614054
    %v556 = vmul.f32 %v540, 1.0614054
    %v557 = vmul.f32 %v541, 1.0614054
    %v558 = vmul.f32 %v542, 1.0614054
    %v559 = vmul.f32 %v543, 1.0614054
    %v560 = vmul.f32 %v544, 1.0614054
    %v561 = vmul.f32 %v545, 1.0614054
    %v562 = vmul.f32 %v546, 1.0614054
    %v563 = vmul.f32 %v547, 1.0614054
    %v564 = vmul.f32 %v548, 1.0614054
    %v565 = vmul.f32 %v549, 1.0614054
    %v566 = vadd.f32 %v550, -1.4531521
    %v567 = vadd.f32 %v551, -1.4531521
    %v568 = vadd.f32 %v552, -1.4531521
    %v569 = vadd.f32 %v553, -1.4531521
    %v570 = vadd.f32 %v554, -1.4531521
    %v571 = vadd.f32 %v555, -1.4531521
    %v572 = vadd.f32 %v556, -1.4531521
    %v573 = vadd.f32 %v557, -1.4531521
    %v574 = vadd.f32 %v558, -1.4531521
    %v575 = vadd.f32 %v559, -1.4531521
    %v576 = vadd.f32 %v560, -1.4531521
    %v577 = vadd.f32 %v561, -1.4531521
    %v578 = vadd.f32 %v562, -1.4531521
    %v579 = vadd.f32 %v563, -1.4531521
    %v580 = vadd.f32 %v564, -1.4531521
    %v581 = vadd.f32 %v565, -1.4531521
    %v582 = vmul.f32 %v566, %v534
    %v583 = vmul.f32 %v567, %v535
    %v584 = vmul.f32 %v568, %v536
    %v585 = vmul.f32 %v569, %v537
    %v586 = vmul.f32 %v570, %v538
    %v587 = vmul.f32 %v571, %v539
    %v588 = vmul.f32 %v572, %v540
    %v589 = vmul.f32 %v573, %v541
    %v590 = vmul.f32 %v574, %v542
    %v591 = vmul.f32 %v575, %v543
    %v592 = vmul.f32 %v576, %v544
    %v593 = vmul.f32 %v577, %v545
    %v594 = vmul.f32 %v578, %v546
    %v595 = vmul.f32 %v579, %v547
    %v596 = vmul.f32 %v580, %v548
    %v597 = vmul.f32 %v581, %v549
    %v598 = vadd.f32 %v582, 1.4214138
    %v599 = vadd.f32 %v583, 1.4214138
    %v600 = vadd.f32 %v584, 1.4214138
    %v601 = vadd.f32 %v585, 1.4214138
    %v602 = vadd.f32 %v586, 1.4214138
    %v603 = vadd.f32 %v587, 1.4214138
    %v604 = vadd.f32 %v588, 1.4214138
    %v605 = vadd.f32 %v589, 1.4214138
    %v606 = vadd.f32 %v590, 1.4214138
    %v607 = vadd.f32 %v591, 1.4214138
    %v608 = vadd.f32 %v592, 1.4214138
    %v609 = vadd.f32 %v593, 1.4214138
    %v610 = vadd.f32 %v594, 1.4214138
    %v611 = vadd.f32 %v595, 1.4214138
    %v612 = vadd.f32 %v596, 1.4214138
    %v613 = vadd.f32 %v597, 1.4214138
    %v614 = vmul.f32 %v598, %v534
    %v615 = vmul.f32 %v599, %v535
    %v616 = vmul.f32 %v600, %v536
    %v617 = vmul.f32 %v601, %v537
    %v618 = vmul.f32 %v602, %v538
    %v619 = vmul.f32 %v603, %v539
    %v620 = vmul.f32 %v604, %v540
    %v621 = vmul.f32 %v605, %v541
    %v622 = vmul.f32 %v606, %v542
    %v623 = vmul.f32 %v607, %v543
    %v624 = vmul.f32 %v608, %v544
    %v625 = vmul.f32 %v609, %v545
    %v626 = vmul.f32 %v610, %v546
    %v627 = vmul.f32 %v611, %v547
    %v628 = vmul.f32 %v612, %v548
    %v629 = vmul.f32 %v613, %v549
    %v630 = vadd.f32 %v614, -0.28449672
    %v631 = vadd.f32 %v615, -0.28449672
    %v632 = vadd.f32 %v616, -0.28449672
    %v633 = vadd.f32 %v617, -0.28449672
    %v634 = vadd.f32 %v618, -0.28449672
    %v635 = vadd.f32 %v619, -0.28449672
    %v636 = vadd.f32 %v620, -0.28449672
    %v637 = vadd.f32 %v621, -0.28449672
    %v638 = vadd.f32 %v622, -0.28449672
    %v639 = vadd.f32 %v623, -0.28449672
    %v640 = vadd.f32 %v624, -0.28449672
    %v641 = vadd.f32 %v625, -0.28449672
    %v642 = vadd.f32 %v626, -0.28449672
    %v643 = vadd.f32 %v627, -0.28449672
    %v644 = vadd.f32 %v628, -0.28449672
    %v645 = vadd.f32 %v629, -0.28449672
    %v646 = vmul.f32 %v630, %v534
    %v647 = vmul.f32 %v631, %v535
    %v648 = vmul.f32 %v632, %v536
    %v649 = vmul.f32 %v633, %v537
    %v650 = vmul.f32 %v634, %v538
    %v651 = vmul.f32 %v635, %v539
    %v652 = vmul.f32 %v636, %v540
    %v653 = vmul.f32 %v637, %v541
    %v654 = vmul.f32 %v638, %v542
    %v655 = vmul.f32 %v639, %v543
    %v656 = vmul.f32 %v640, %v544
    %v657 = vmul.f32 %v641, %v545
    %v658 = vmul.f32 %v642, %v546
    %v659 = vmul.f32 %v643, %v547
    %v660 = vmul.f32 %v644, %v548
    %v661 = vmul.f32 %v645, %v549
    %v662 = vadd.f32 %v646, 0.2548296
    %v663 = vadd.f32 %v647, 0.2548296
    %v664 = vadd.f32 %v648, 0.2548296
    %v665 = vadd.f32 %v649, 0.2548296
    %v666 = vadd.f32 %v650, 0.2548296
    %v667 = vadd.f32 %v651, 0.2548296
    %v668 = vadd.f32 %v652, 0.2548296
    %v669 = vadd.f32 %v653, 0.2548296
    %v670 = vadd.f32 %v654, 0.2548296
    %v671 = vadd.f32 %v655, 0.2548296
    %v672 = vadd.f32 %v656, 0.2548296
    %v673 = vadd.f32 %v657, 0.2548296
    %v674 = vadd.f32 %v658, 0.2548296
    %v675 = vadd.f32 %v659, 0.2548296
    %v676 = vadd.f32 %v660, 0.2548296
    %v677 = vadd.f32 %v661, 0.2548296
    %v678 = vmul.f32 %v662, %v534
    %v679 = vmul.f32 %v663, %v535
    %v680 = vmul.f32 %v664, %v536
    %v681 = vmul.f32 %v665, %v537
    %v682 = vmul.f32 %v666, %v538
    %v683 = vmul.f32 %v667, %v539
    %v684 = vmul.f32 %v668, %v540
    %v685 = vmul.f32 %v669, %v541
    %v686 = vmul.f32 %v670, %v542
    %v687 = vmul.f32 %v671, %v543
    %v688 = vmul.f32 %v672, %v544
    %v689 = vmul.f32 %v673, %v545
    %v690 = vmul.f32 %v674, %v546
    %v691 = vmul.f32 %v675, %v547
    %v692 = vmul.f32 %v676, %v548
    %v693 = vmul.f32 %v677, %v549
    %v694 = vsub.f32 0.0, %v486
    %v695 = vsub.f32 0.0, %v487
    %v696 = vsub.f32 0.0, %v488
    %v697 = vsub.f32 0.0, %v489
    %v698 = vsub.f32 0.0, %v490
    %v699 = vsub.f32 0.0, %v491
    %v700 = vsub.f32 0.0, %v492
    %v701 = vsub.f32 0.0, %v493
    %v702 = vsub.f32 0.0, %v494
    %v703 = vsub.f32 0.0, %v495
    %v704 = vsub.f32 0.0, %v496
    %v705 = vsub.f32 0.0, %v497
    %v706 = vsub.f32 0.0, %v498
    %v707 = vsub.f32 0.0, %v499
    %v708 = vsub.f32 0.0, %v500
    %v709 = vsub.f32 0.0, %v501
    %v710 = vmul.f32 %v694, %v486
    %v711 = vmul.f32 %v695, %v487
    %v712 = vmul.f32 %v696, %v488
    %v713 = vmul.f32 %v697, %v489
    %v714 = vmul.f32 %v698, %v490
    %v715 = vmul.f32 %v699, %v491
    %v716 = vmul.f32 %v700, %v492
    %v717 = vmul.f32 %v701, %v493
    %v718 = vmul.f32 %v702, %v494
    %v719 = vmul.f32 %v703, %v495
    %v720 = vmul.f32 %v704, %v496
    %v721 = vmul.f32 %v705, %v497
    %v722 = vmul.f32 %v706, %v498
    %v723 = vmul.f32 %v707, %v499
    %v724 = vmul.f32 %v708, %v500
    %v725 = vmul.f32 %v709, %v501
    %v726 = vmul.f32 %v710, 1.442695
    %v727 = vpow.pop %v726
    %v728 = vmul.f32 %v711, 1.442695
    %v729 = vpow.pop %v728
    %v730 = vmul.f32 %v712, 1.442695
    %v731 = vpow.pop %v730
    %v732 = vmul.f32 %v713, 1.442695
    %v733 = vpow.pop %v732
    %v734 = vmul.f32 %v714, 1.442695
    %v735 = vpow.pop %v734
    %v736 = vmul.f32 %v715, 1.442695
    %v737 = vpow.pop %v736
    %v738 = vmul.f32 %v716, 1.442695
    %v739 = vpow.pop %v738
    %v740 = vmul.f32 %v717, 1.442695
    %v741 = vpow.pop %v740
    %v742 = vmul.f32 %v718, 1.442695
    %v743 = vpow.pop %v742
    %v744 = vmul.f32 %v719, 1.442695
    %v745 = vpow.pop %v744
    %v746 = vmul.f32 %v720, 1.442695
    %v747 = vpow.pop %v746
    %v748 = vmul.f32 %v721, 1.442695
    %v749 = vpow.pop %v748
    %v750 = vmul.f32 %v722, 1.442695
    %v751 = vpow.pop %v750
    %v752 = vmul.f32 %v723, 1.442695
    %v753 = vpow.pop %v752
    %v754 = vmul.f32 %v724, 1.442695
    %v755 = vpow.pop %v754
    %v756 = vmul.f32 %v725, 1.442695
    %v757 = vpow.pop %v756
    %v758 = vmul.f32 %v678, %v727
    %v759 = vmul.f32 %v679, %v729
    %v760 = vmul.f32 %v680, %v731
    %v761 = vmul.f32 %v681, %v733
    %v762 = vmul.f32 %v682, %v735
    %v763 = vmul.f32 %v683, %v737
    %v764 = vmul.f32 %v684, %v739
    %v765 = vmul.f32 %v685, %v741
    %v766 = vmul.f32 %v686, %v743
    %v767 = vmul.f32 %v687, %v745
    %v768 = vmul.f32 %v688, %v747
    %v769 = vmul.f32 %v689, %v749
    %v770 = vmul.f32 %v690, %v751
    %v771 = vmul.f32 %v691, %v753
    %v772 = vmul.f32 %v692, %v755
    %v773 = vmul.f32 %v693, %v757
    %v774 = vsub.f32 1.0, %v758
    %v775 = vsub.f32 1.0, %v759
    %v776 = vsub.f32 1.0, %v760
    %v777 = vsub.f32 1.0, %v761
    %v778 = vsub.f32 1.0, %v762
    %v779 = vsub.f32 1.0, %v763
    %v780 = vsub.f32 1.0, %v764
    %v781 = vsub.f32 1.0, %v765
    %v782 = vsub.f32 1.0, %v766
    %v783 = vsub.f32 1.0, %v767
    %v784 = vsub.f32 1.0, %v768
    %v785 = vsub.f32 1.0, %v769
    %v786 = vsub.f32 1.0, %v770
    %v787 = vsub.f32 1.0, %v771
    %v788 = vsub.f32 1.0, %v772
    %v789 = vsub.f32 1.0, %v773
    %vm790 = vcmp.ge.f32.partialorder %v470, 0.0
    %vm791 = vcmp.ge.f32.partialorder %v471, 0.0
    %vm792 = vcmp.ge.f32.partialorder %v472, 0.0
    %vm793 = vcmp.ge.f32.partialorder %v473, 0.0
    %vm794 = vcmp.ge.f32.partialorder %v474, 0.0
    %vm795 = vcmp.ge.f32.partialorder %v475, 0.0
    %vm796 = vcmp.ge.f32.partialorder %v476, 0.0
    %vm797 = vcmp.ge.f32.partialorder %v477, 0.0
    %vm798 = vcmp.ge.f32.partialorder %v478, 0.0
    %vm799 = vcmp.ge.f32.partialorder %v479, 0.0
    %vm800 = vcmp.ge.f32.partialorder %v480, 0.0
    %vm801 = vcmp.ge.f32.partialorder %v481, 0.0
    %vm802 = vcmp.ge.f32.partialorder %v482, 0.0
    %vm803 = vcmp.ge.f32.partialorder %v483, 0.0
    %vm804 = vcmp.ge.f32.partialorder %v484, 0.0
    %vm805 = vcmp.ge.f32.partialorder %v485, 0.0
    %v806 = vsub.f32 0.0, %v774
    %v807 = vsub.f32 0.0, %v775
    %v808 = vsub.f32 0.0, %v776
    %v809 = vsub.f32 0.0, %v777
    %v810 = vsub.f32 0.0, %v778
    %v811 = vsub.f32 0.0, %v779
    %v812 = vsub.f32 0.0, %v780
    %v813 = vsub.f32 0.0, %v781
    %v814 = vsub.f32 0.0, %v782
    %v815 = vsub.f32 0.0, %v783
    %v816 = vsub.f32 0.0, %v784
    %v817 = vsub.f32 0.0, %v785
    %v818 = vsub.f32 0.0, %v786
    %v819 = vsub.f32 0.0, %v787
    %v820 = vsub.f32 0.0, %v788
    %v821 = vsub.f32 0.0, %v789
    %v822 = vsel %vm790, %v774, %v806
    %v823 = vsel %vm791, %v775, %v807
    %v824 = vsel %vm792, %v776, %v808
    %v825 = vsel %vm793, %v777, %v809
    %v826 = vsel %vm794, %v778, %v810
    %v827 = vsel %vm795, %v779, %v811
    %v828 = vsel %vm796, %v780, %v812
    %v829 = vsel %vm797, %v781, %v813
    %v830 = vsel %vm798, %v782, %v814
    %v831 = vsel %vm799, %v783, %v815
    %v832 = vsel %vm800, %v784, %v816
    %v833 = vsel %vm801, %v785, %v817
    %v834 = vsel %vm802, %v786, %v818
    %v835 = vsel %vm803, %v787, %v819
    %v836 = vsel %vm804, %v788, %v820
    %v837 = vsel %vm805, %v789, %v821
    %v838 = vadd.f32 %v822, 1.0
    %v839 = vadd.f32 %v823, 1.0
    %v840 = vadd.f32 %v824, 1.0
    %v841 = vadd.f32 %v825, 1.0
    %v842 = vadd.f32 %v826, 1.0
    %v843 = vadd.f32 %v827, 1.0
    %v844 = vadd.f32 %v828, 1.0
    %v845 = vadd.f32 %v829, 1.0
    %v846 = vadd.f32 %v830, 1.0
    %v847 = vadd.f32 %v831, 1.0
    %v848 = vadd.f32 %v832, 1.0
    %v849 = vadd.f32 %v833, 1.0
    %v850 = vadd.f32 %v834, 1.0
    %v851 = vadd.f32 %v835, 1.0
    %v852 = vadd.f32 %v836, 1.0
    %v853 = vadd.f32 %v837, 1.0
    %v854 = vmul.f32 %v454, %v838
    %v855 = vmul.f32 %v455, %v839
    %v856 = vmul.f32 %v456, %v840
    %v857 = vmul.f32 %v457, %v841
    %v858 = vmul.f32 %v458, %v842
    %v859 = vmul.f32 %v459, %v843
    %v860 = vmul.f32 %v460, %v844
    %v861 = vmul.f32 %v461, %v845
    %v862 = vmul.f32 %v462, %v846
    %v863 = vmul.f32 %v463, %v847
    %v864 = vmul.f32 %v464, %v848
    %v865 = vmul.f32 %v465, %v849
    %v866 = vmul.f32 %v466, %v850
    %v867 = vmul.f32 %v467, %v851
    %v868 = vmul.f32 %v468, %v852
    %v869 = vmul.f32 %v469, %v853
    %v870 = vpack.c.bf16 %v858, %v854
    %v871 = vpack.c.bf16 %v859, %v855
    %v872 = vpack.c.bf16 %v860, %v856
    %v873 = vpack.c.bf16 %v861, %v857
    %v874 = vpack.c.bf16 %v866, %v862
    %v875 = vpack.c.bf16 %v867, %v863
    %v876 = vpack.c.bf16 %v868, %v864
    %v877 = vpack.c.bf16 %v869, %v865
    %v886 = vunpack.c.l.b16 %v870
    %v887 = vunpack.c.l.b16 %v871
    %v888 = vunpack.c.l.b16 %v872
    %v889 = vunpack.c.l.b16 %v873
    %v890 = vunpack.c.h.b16 %v870
    %v891 = vunpack.c.h.b16 %v871
    %v892 = vunpack.c.h.b16 %v872
    %v893 = vunpack.c.h.b16 %v873
    %v894 = vunpack.c.l.b16 %v874
    %v895 = vunpack.c.l.b16 %v875
    %v896 = vunpack.c.l.b16 %v876
    %v897 = vunpack.c.l.b16 %v877
    %v898 = vunpack.c.h.b16 %v874
    %v899 = vunpack.c.h.b16 %v875
    %v900 = vunpack.c.h.b16 %v876
    %v901 = vunpack.c.h.b16 %v877
    %v902 = vpack.c.b16 %v887, %v886
    %v903 = vpack.c.b16 %v889, %v888
    %v904 = vpack.c.b16 %v891, %v890
    %v905 = vpack.c.b16 %v893, %v892
    %v906 = vpack.c.b16 %v895, %v894
    %v907 = vpack.c.b16 %v897, %v896
    %v908 = vpack.c.b16 %v899, %v898
    %v909 = vpack.c.b16 %v901, %v900
    %918 = vst [vmem:[%s3] sm:$0xff] %v902
    %919 = vst [vmem:[%s3 + $0x8] sm:$0xff] %v903
    %920 = vst [vmem:[%s3 + $0x10] sm:$0xff] %v904
    %921 = vst [vmem:[%s3 + $0x18] sm:$0xff] %v905
    %922 = vst [vmem:[%s3 + $0x20] sm:$0xff] %v906
    %923 = vst [vmem:[%s3 + $0x28] sm:$0xff] %v907
    %924 = vst [vmem:[%s3 + $0x30] sm:$0xff] %v908
    %925 = vst [vmem:[%s3 + $0x38] sm:$0xff] %v909
  $region21: #{bert_token_classification_forward.14} parent=0 // pred_fallthru
    _
  // Predicated region
  $region22: #{bert_token_classification_forward.14} parent=0 // pred_check
    _
  $region23: #{bert_token_classification_forward.14} parent=0 // pred_check_branch
    %927 = sbr.rel (0) target = $region25
  $region24: #{bert_token_classification_forward.14} parent=0 // pred_region
    _
  $region25: #{bert_token_classification_forward.14} parent=0 // pred_fallthru
    _
  // Predicated region
  $region26: #{bert_token_classification_forward.14} parent=0 // pred_check
    _
  $region27: #{bert_token_classification_forward.14} parent=0 // pred_check_branch
    %929 = sbr.rel (0) target = $region29
  $region28: #{bert_token_classification_forward.14} parent=0 // pred_region
    _
  $region29: #{bert_token_classification_forward.14} parent=0 // pred_fallthru
    _

// kernel: bert_token_classification_forward.15
$region0: #{bert_token_classification_forward.15}
  #allocation0 [shape = 'u32[]', space=smem, size = 0x4, offset = 0x4, fixed_abs, tag = 'smem constant byte address 0x4 - core index']
  #allocation1 [shape = 'u32[144,128]{1,0:T(1,128)}', space=vmem, size = 0x12000, scoped, tag = 'internal scratch']
  #allocation2 [shape = 'f32[32,128]{1,0:T(8,128)}', space=vmem, size = 0x4000, scoped, tag = 'scratch operand']
  %s0 = inlined_call_operand.vmem [shape: bf16[32,512], index: 0, kind: input, shape index: {}]
  %s1 = inlined_call_operand.vmem [shape: bf16[512,128], index: 1, kind: input, shape index: {}]
  %s2 = inlined_call_operand.vmem [shape: f32[1,128], index: 2, kind: input, shape index: {}]
  %s3 = inlined_call_operand.vmem [shape: bf16[32,128], index: 3, kind: input, shape index: {}]
  %s4 = inlined_call_operand.vmem [shape: f32[1,128], index: 4, kind: input, shape index: {}]
  %s5 = inlined_call_operand.vmem [shape: f32[1,128], index: 5, kind: input, shape index: {}]
  %s6 = inlined_call_operand.vmem [shape: bf16[32,128], index: 6, kind: output, shape index: {}]
  %s7 = sld [smem:[#allocation0]]
  $region42: #{bert_token_classification_forward.15} parent=0
    _
  %s9 = ssub.s32 1, %s7
  %s10 = scalar_select 0, %s9, %s7
  // Predicated region
  $region2: #{bert_token_classification_forward.15} parent=0 // pred_check
    _
  $region3: #{bert_token_classification_forward.15} parent=0 // pred_check_branch
    %12 = sbr.rel (0) target = $region5
  $region4: #{bert_token_classification_forward.15} parent=0 // pred_region
    _
  $region5: #{bert_token_classification_forward.15} parent=0 // pred_fallthru
    _
  // Predicated region
  $region6: #{bert_token_classification_forward.15} parent=0 // pred_check
    _
  $region7: #{bert_token_classification_forward.15} parent=0 // pred_check_branch
    %14 = sbr.rel (0) target = $region9
  $region8: #{bert_token_classification_forward.15} parent=0 // pred_region
    _
  $region9: #{bert_token_classification_forward.15} parent=0 // pred_fallthru
    _
  // Predicated region
  $region10: #{bert_token_classification_forward.15} parent=0 // pred_check
    _
  $region11: #{bert_token_classification_forward.15} parent=0 // pred_check_branch
    %16 = sbr.rel (0) target = $region13
  $region12: #{bert_token_classification_forward.15} parent=0 // pred_region
    _
  $region13: #{bert_token_classification_forward.15} parent=0 // pred_fallthru
    _
  // Predicated region
  $region14: #{bert_token_classification_forward.15} parent=0 // pred_check
    _
  $region15: #{bert_token_classification_forward.15} parent=0 // pred_check_branch
    %18 = sbr.rel (0) target = $region17
  $region16: #{bert_token_classification_forward.15} parent=0 // pred_region
    _
  $region17: #{bert_token_classification_forward.15} parent=0 // pred_fallthru
    _
  // Predicated region
  $region18: #{bert_token_classification_forward.15} parent=0 // pred_check
    _
  $region19: #{bert_token_classification_forward.15} parent=0 // pred_check_branch
    %20 = sbr.rel (0) target = $region21
  $region20: #{bert_token_classification_forward.15} parent=0 // pred_region
    _
  $region21: #{bert_token_classification_forward.15} parent=0 // pred_fallthru
    _
  // Predicated region
  $region22: #{bert_token_classification_forward.15} parent=0 // pred_check
    _
  $region23: #{bert_token_classification_forward.15} parent=0 // pred_check_branch
    %22 = sbr.rel (0) target = $region25
  $region24: #{bert_token_classification_forward.15} parent=0 // pred_region
    _
  $region25: #{bert_token_classification_forward.15} parent=0 // pred_fallthru
    _
  %p24 = scmp.eq.s32.totalorder 0, 0
  // Predicated region
  $region26: #{bert_token_classification_forward.15} parent=0 // pred_check
    %p25 = pneg %p24
  $region27: #{bert_token_classification_forward.15} parent=0 // pred_check_branch
    %27 = sbr.rel (%p25) target = $region29
  $region28: #{bert_token_classification_forward.15} parent=0 // pred_region
    %28 = vst [vmem:[#allocation2] sm:$0xff] 0.0
    %29 = vst [vmem:[#allocation2 + $0x8] sm:$0xff] 0.0
    %30 = vst [vmem:[#allocation2 + $0x10] sm:$0xff] 0.0
    %31 = vst [vmem:[#allocation2 + $0x18] sm:$0xff] 0.0
  $region29: #{bert_token_classification_forward.15} parent=0 // pred_fallthru
    _
  %v32 = vld [vmem:[#allocation2] sm:$0xff]
  %v33 = vld [vmem:[#allocation2 + $0x8] sm:$0xff]
  %v34 = vld [vmem:[#allocation2 + $0x10] sm:$0xff]
  %v35 = vld [vmem:[#allocation2 + $0x18] sm:$0xff]
  %v36 = vld [vmem:[%s0] sm:$0xff]
  %v37 = vld [vmem:[%s0 + $0x8] sm:$0xff]
  %v38 = vld [vmem:[%s0 + $0x10] sm:$0xff]
  %v39 = vld [vmem:[%s0 + $0x18] sm:$0xff]
  %v40 = vld [vmem:[%s0 + $0x20] sm:$0xff]
  %v41 = vld [vmem:[%s0 + $0x28] sm:$0xff]
  %v42 = vld [vmem:[%s0 + $0x30] sm:$0xff]
  %v43 = vld [vmem:[%s0 + $0x38] sm:$0xff]
  %v44 = vld [vmem:[%s1] sm:$0xf]
  %v45 = vld [vmem:[%s1 + $0x4] sm:$0xf]
  %v46 = vld [vmem:[%s1 + $0x8] sm:$0xf]
  %v47 = vld [vmem:[%s1 + $0xc] sm:$0xf]
  %v48 = vld [vmem:[%s1 + $0x10] sm:$0xf]
  %v49 = vld [vmem:[%s1 + $0x14] sm:$0xf]
  %v50 = vld [vmem:[%s1 + $0x18] sm:$0xf]
  %v51 = vld [vmem:[%s1 + $0x1c] sm:$0xf]
  %v52 = vld [vmem:[%s1 + $0x20] sm:$0xf]
  %v53 = vld [vmem:[%s1 + $0x24] sm:$0xf]
  %v54 = vld [vmem:[%s1 + $0x28] sm:$0xf]
  %v55 = vld [vmem:[%s1 + $0x2c] sm:$0xf]
  %v56 = vld [vmem:[%s1 + $0x30] sm:$0xf]
  %v57 = vld [vmem:[%s1 + $0x34] sm:$0xf]
  %v58 = vld [vmem:[%s1 + $0x38] sm:$0xf]
  %v59 = vld [vmem:[%s1 + $0x3c] sm:$0xf]
  %v60 = vld [vmem:[%s1 + $0x40] sm:$0xf]
  %v61 = vld [vmem:[%s1 + $0x44] sm:$0xf]
  %v62 = vld [vmem:[%s1 + $0x48] sm:$0xf]
  %v63 = vld [vmem:[%s1 + $0x4c] sm:$0xf]
  %v64 = vld [vmem:[%s1 + $0x50] sm:$0xf]
  %v65 = vld [vmem:[%s1 + $0x54] sm:$0xf]
  %v66 = vld [vmem:[%s1 + $0x58] sm:$0xf]
  %v67 = vld [vmem:[%s1 + $0x5c] sm:$0xf]
  %v68 = vld [vmem:[%s1 + $0x60] sm:$0xf]
  %v69 = vld [vmem:[%s1 + $0x64] sm:$0xf]
  %v70 = vld [vmem:[%s1 + $0x68] sm:$0xf]
  %v71 = vld [vmem:[%s1 + $0x6c] sm:$0xf]
  %v72 = vld [vmem:[%s1 + $0x70] sm:$0xf]
  %v73 = vld [vmem:[%s1 + $0x74] sm:$0xf]
  %v74 = vld [vmem:[%s1 + $0x78] sm:$0xf]
  %v75 = vld [vmem:[%s1 + $0x7c] sm:$0xf]
  %v76 = vld [vmem:[%s1 + $0x80] sm:$0xf]
  %v77 = vld [vmem:[%s1 + $0x84] sm:$0xf]
  %v78 = vld [vmem:[%s1 + $0x88] sm:$0xf]
  %v79 = vld [vmem:[%s1 + $0x8c] sm:$0xf]
  %v80 = vld [vmem:[%s1 + $0x90] sm:$0xf]
  %v81 = vld [vmem:[%s1 + $0x94] sm:$0xf]
  %v82 = vld [vmem:[%s1 + $0x98] sm:$0xf]
  %v83 = vld [vmem:[%s1 + $0x9c] sm:$0xf]
  %v84 = vld [vmem:[%s1 + $0xa0] sm:$0xf]
  %v85 = vld [vmem:[%s1 + $0xa4] sm:$0xf]
  %v86 = vld [vmem:[%s1 + $0xa8] sm:$0xf]
  %v87 = vld [vmem:[%s1 + $0xac] sm:$0xf]
  %v88 = vld [vmem:[%s1 + $0xb0] sm:$0xf]
  %v89 = vld [vmem:[%s1 + $0xb4] sm:$0xf]
  %v90 = vld [vmem:[%s1 + $0xb8] sm:$0xf]
  %v91 = vld [vmem:[%s1 + $0xbc] sm:$0xf]
  %v92 = vld [vmem:[%s1 + $0xc0] sm:$0xf]
  %v93 = vld [vmem:[%s1 + $0xc4] sm:$0xf]
  %v94 = vld [vmem:[%s1 + $0xc8] sm:$0xf]
  %v95 = vld [vmem:[%s1 + $0xcc] sm:$0xf]
  %v96 = vld [vmem:[%s1 + $0xd0] sm:$0xf]
  %v97 = vld [vmem:[%s1 + $0xd4] sm:$0xf]
  %v98 = vld [vmem:[%s1 + $0xd8] sm:$0xf]
  %v99 = vld [vmem:[%s1 + $0xdc] sm:$0xf]
  %v100 = vld [vmem:[%s1 + $0xe0] sm:$0xf]
  %v101 = vld [vmem:[%s1 + $0xe4] sm:$0xf]
  %v102 = vld [vmem:[%s1 + $0xe8] sm:$0xf]
  %v103 = vld [vmem:[%s1 + $0xec] sm:$0xf]
  %v104 = vld [vmem:[%s1 + $0xf0] sm:$0xf]
  %v105 = vld [vmem:[%s1 + $0xf4] sm:$0xf]
  %v106 = vld [vmem:[%s1 + $0xf8] sm:$0xf]
  %v107 = vld [vmem:[%s1 + $0xfc] sm:$0xf]
  %v116 = vunpack.c.l.b16 %v36
  %v117 = vunpack.c.h.b16 %v36
  %v118 = vunpack.c.l.b16 %v37
  %v119 = vunpack.c.h.b16 %v37
  %v120 = vunpack.c.l.b16 %v38
  %v121 = vunpack.c.h.b16 %v38
  %v122 = vunpack.c.l.b16 %v39
  %v123 = vunpack.c.h.b16 %v39
  %v124 = vunpack.c.l.b16 %v40
  %v125 = vunpack.c.h.b16 %v40
  %v126 = vunpack.c.l.b16 %v41
  %v127 = vunpack.c.h.b16 %v41
  %v128 = vunpack.c.l.b16 %v42
  %v129 = vunpack.c.h.b16 %v42
  %v130 = vunpack.c.l.b16 %v43
  %v131 = vunpack.c.h.b16 %v43
  %v132 = vpack.c.b16 %v120, %v116
  %v133 = vpack.c.b16 %v121, %v117
  %v134 = vpack.c.b16 %v122, %v118
  %v135 = vpack.c.b16 %v123, %v119
  %v136 = vpack.c.b16 %v128, %v124
  %v137 = vpack.c.b16 %v129, %v125
  %v138 = vpack.c.b16 %v130, %v126
  %v139 = vpack.c.b16 %v131, %v127
  %v212 = vunpack.c.l.b16 %v44
  %v213 = vunpack.c.l.b16 %v45
  %v214 = vunpack.c.l.b16 %v46
  %v215 = vunpack.c.l.b16 %v47
  %v216 = vunpack.c.l.b16 %v48
  %v217 = vunpack.c.l.b16 %v49
  %v218 = vunpack.c.l.b16 %v50
  %v219 = vunpack.c.l.b16 %v51
  %v220 = vunpack.c.l.b16 %v52
  %v221 = vunpack.c.l.b16 %v53
  %v222 = vunpack.c.l.b16 %v54
  %v223 = vunpack.c.l.b16 %v55
  %v224 = vunpack.c.l.b16 %v56
  %v225 = vunpack.c.l.b16 %v57
  %v226 = vunpack.c.l.b16 %v58
  %v227 = vunpack.c.l.b16 %v59
  %v228 = vunpack.c.l.b16 %v60
  %v229 = vunpack.c.l.b16 %v61
  %v230 = vunpack.c.l.b16 %v62
  %v231 = vunpack.c.l.b16 %v63
  %v232 = vunpack.c.l.b16 %v64
  %v233 = vunpack.c.l.b16 %v65
  %v234 = vunpack.c.l.b16 %v66
  %v235 = vunpack.c.l.b16 %v67
  %v236 = vunpack.c.l.b16 %v68
  %v237 = vunpack.c.l.b16 %v69
  %v238 = vunpack.c.l.b16 %v70
  %v239 = vunpack.c.l.b16 %v71
  %v240 = vunpack.c.l.b16 %v72
  %v241 = vunpack.c.l.b16 %v73
  %v242 = vunpack.c.l.b16 %v74
  %v243 = vunpack.c.l.b16 %v75
  %v244 = vunpack.c.l.b16 %v76
  %v245 = vunpack.c.l.b16 %v77
  %v246 = vunpack.c.l.b16 %v78
  %v247 = vunpack.c.l.b16 %v79
  %v248 = vunpack.c.l.b16 %v80
  %v249 = vunpack.c.l.b16 %v81
  %v250 = vunpack.c.l.b16 %v82
  %v251 = vunpack.c.l.b16 %v83
  %v252 = vunpack.c.l.b16 %v84
  %v253 = vunpack.c.l.b16 %v85
  %v254 = vunpack.c.l.b16 %v86
  %v255 = vunpack.c.l.b16 %v87
  %v256 = vunpack.c.l.b16 %v88
  %v257 = vunpack.c.l.b16 %v89
  %v258 = vunpack.c.l.b16 %v90
  %v259 = vunpack.c.l.b16 %v91
  %v260 = vunpack.c.l.b16 %v92
  %v261 = vunpack.c.l.b16 %v93
  %v262 = vunpack.c.l.b16 %v94
  %v263 = vunpack.c.l.b16 %v95
  %v264 = vunpack.c.l.b16 %v96
  %v265 = vunpack.c.l.b16 %v97
  %v266 = vunpack.c.l.b16 %v98
  %v267 = vunpack.c.l.b16 %v99
  %v268 = vunpack.c.l.b16 %v100
  %v269 = vunpack.c.l.b16 %v101
  %v270 = vunpack.c.l.b16 %v102
  %v271 = vunpack.c.l.b16 %v103
  %v272 = vunpack.c.l.b16 %v104
  %v273 = vunpack.c.l.b16 %v105
  %v274 = vunpack.c.l.b16 %v106
  %v275 = vunpack.c.l.b16 %v107
  %v276 = vpack.c.b16 %v213, %v212
  %v277 = vpack.c.b16 %v215, %v214
  %v278 = vpack.c.b16 %v217, %v216
  %v279 = vpack.c.b16 %v219, %v218
  %v280 = vpack.c.b16 %v221, %v220
  %v281 = vpack.c.b16 %v223, %v222
  %v282 = vpack.c.b16 %v225, %v224
  %v283 = vpack.c.b16 %v227, %v226
  %v284 = vpack.c.b16 %v229, %v228
  %v285 = vpack.c.b16 %v231, %v230
  %v286 = vpack.c.b16 %v233, %v232
  %v287 = vpack.c.b16 %v235, %v234
  %v288 = vpack.c.b16 %v237, %v236
  %v289 = vpack.c.b16 %v239, %v238
  %v290 = vpack.c.b16 %v241, %v240
  %v291 = vpack.c.b16 %v243, %v242
  %v292 = vpack.c.b16 %v245, %v244
  %v293 = vpack.c.b16 %v247, %v246
  %v294 = vpack.c.b16 %v249, %v248
  %v295 = vpack.c.b16 %v251, %v250
  %v296 = vpack.c.b16 %v253, %v252
  %v297 = vpack.c.b16 %v255, %v254
  %v298 = vpack.c.b16 %v257, %v256
  %v299 = vpack.c.b16 %v259, %v258
  %v300 = vpack.c.b16 %v261, %v260
  %v301 = vpack.c.b16 %v263, %v262
  %v302 = vpack.c.b16 %v265, %v264
  %v303 = vpack.c.b16 %v267, %v266
  %v304 = vpack.c.b16 %v269, %v268
  %v305 = vpack.c.b16 %v271, %v270
  %v306 = vpack.c.b16 %v273, %v272
  %v307 = vpack.c.b16 %v275, %v274
  %340 = vmatprep.subr.bf16.mxu0 0
  %341 = vmatpush1.bf16.msra.mxu0 %v276
  %342 = vmatprep.subr.bf16.mxu0 0
  %343 = vmatpush1.bf16.msra.mxu0 %v277
  %344 = vmatprep.subr.bf16.mxu0 0
  %345 = vmatpush1.bf16.msra.mxu0 %v278
  %346 = vmatprep.subr.bf16.mxu0 0
  %347 = vmatpush1.bf16.msra.mxu0 %v279
  %348 = vmatprep.subr.bf16.mxu0 0
  %349 = vmatpush1.bf16.msra.mxu0 %v280
  %350 = vmatprep.subr.bf16.mxu0 0
  %351 = vmatpush1.bf16.msra.mxu0 %v281
  %352 = vmatprep.subr.bf16.mxu0 0
  %353 = vmatpush1.bf16.msra.mxu0 %v282
  %354 = vmatprep.subr.bf16.mxu0 0
  %355 = vmatpush1.bf16.msra.mxu0 %v283
  %356 = vmatprep.subr.bf16.mxu0 0
  %357 = vmatpush1.bf16.msra.mxu0 %v284
  %358 = vmatprep.subr.bf16.mxu0 0
  %359 = vmatpush1.bf16.msra.mxu0 %v285
  %360 = vmatprep.subr.bf16.mxu0 0
  %361 = vmatpush1.bf16.msra.mxu0 %v286
  %362 = vmatprep.subr.bf16.mxu0 0
  %363 = vmatpush1.bf16.msra.mxu0 %v287
  %364 = vmatprep.subr.bf16.mxu0 0
  %365 = vmatpush1.bf16.msra.mxu0 %v288
  %366 = vmatprep.subr.bf16.mxu0 0
  %367 = vmatpush1.bf16.msra.mxu0 %v289
  %368 = vmatprep.subr.bf16.mxu0 0
  %369 = vmatpush1.bf16.msra.mxu0 %v290
  %370 = vmatprep.subr.bf16.mxu0 0
  %371 = vmatpush1.bf16.msra.mxu0 %v291
  %372 = vmatprep.mubr.bf16.mxu0 %v133
  %373 = vmatmul.mubr.bf16.gmra.mrb[0].mxu0 %v132
  %v374 = vpop.f32.mrb[0].mxu0
  %v375 = vadd.f32 0.0, %v374
  %v376 = vpop.f32.mrb[0].mxu0
  %v377 = vpop.f32.mrb[0].mxu0
  %v378 = vadd.f32 0.0, %v377
  %v379 = vpop.f32.mrb[0].mxu0
  %380 = vmatprep.mubr.bf16.mxu0 %v137
  %381 = vmatmul.mubr.bf16.gmra.mrb[0].mxu0 %v136
  %v382 = vpop.f32.mrb[0].mxu0
  %v383 = vadd.f32 0.0, %v382
  %v384 = vpop.f32.mrb[0].mxu0
  %v385 = vpop.f32.mrb[0].mxu0
  %v386 = vadd.f32 0.0, %v385
  %v387 = vpop.f32.mrb[0].mxu0
  %388 = vdwg.mxu0
  %389 = vmatprep.subr.bf16.mxu0 0
  %390 = vmatpush1.bf16.msra.mxu0 %v292
  %391 = vmatprep.subr.bf16.mxu0 0
  %392 = vmatpush1.bf16.msra.mxu0 %v293
  %393 = vmatprep.subr.bf16.mxu0 0
  %394 = vmatpush1.bf16.msra.mxu0 %v294
  %395 = vmatprep.subr.bf16.mxu0 0
  %396 = vmatpush1.bf16.msra.mxu0 %v295
  %397 = vmatprep.subr.bf16.mxu0 0
  %398 = vmatpush1.bf16.msra.mxu0 %v296
  %399 = vmatprep.subr.bf16.mxu0 0
  %400 = vmatpush1.bf16.msra.mxu0 %v297
  %401 = vmatprep.subr.bf16.mxu0 0
  %402 = vmatpush1.bf16.msra.mxu0 %v298
  %403 = vmatprep.subr.bf16.mxu0 0
  %404 = vmatpush1.bf16.msra.mxu0 %v299
  %405 = vmatprep.subr.bf16.mxu0 0
  %406 = vmatpush1.bf16.msra.mxu0 %v300
  %407 = vmatprep.subr.bf16.mxu0 0
  %408 = vmatpush1.bf16.msra.mxu0 %v301
  %409 = vmatprep.subr.bf16.mxu0 0
  %410 = vmatpush1.bf16.msra.mxu0 %v302
  %411 = vmatprep.subr.bf16.mxu0 0
  %412 = vmatpush1.bf16.msra.mxu0 %v303
  %413 = vmatprep.subr.bf16.mxu0 0
  %414 = vmatpush1.bf16.msra.mxu0 %v304
  %415 = vmatprep.subr.bf16.mxu0 0
  %416 = vmatpush1.bf16.msra.mxu0 %v305
  %417 = vmatprep.subr.bf16.mxu0 0
  %418 = vmatpush1.bf16.msra.mxu0 %v306
  %419 = vmatprep.subr.bf16.mxu0 0
  %420 = vmatpush1.bf16.msra.mxu0 %v307
  %421 = vmatprep.mubr.bf16.mxu0 %v135
  %422 = vmatmul.mubr.bf16.gmra.mrb[0].mxu0 %v134
  %v423 = vpop.f32.mrb[0].mxu0
  %v424 = vadd.f32 %v375, %v423
  %v425 = vpop.f32.mrb[0].mxu0
  %v426 = vpop.f32.mrb[0].mxu0
  %v427 = vadd.f32 %v378, %v426
  %v428 = vpop.f32.mrb[0].mxu0
  %429 = vmatprep.mubr.bf16.mxu0 %v139
  %430 = vmatmul.mubr.bf16.gmra.mrb[0].mxu0 %v138
  %v431 = vpop.f32.mrb[0].mxu0
  %v432 = vadd.f32 %v383, %v431
  %v433 = vpop.f32.mrb[0].mxu0
  %v434 = vpop.f32.mrb[0].mxu0
  %v435 = vadd.f32 %v386, %v434
  %v436 = vpop.f32.mrb[0].mxu0
  %437 = vdwg.mxu0
  %v438 = vadd.f32 %v32, %v424
  %v439 = vadd.f32 %v33, %v427
  %v440 = vadd.f32 %v34, %v432
  %v441 = vadd.f32 %v35, %v435
  %442 = vst [vmem:[#allocation2] sm:$0xff] %v438
  %443 = vst [vmem:[#allocation2 + $0x8] sm:$0xff] %v439
  %444 = vst [vmem:[#allocation2 + $0x10] sm:$0xff] %v440
  %445 = vst [vmem:[#allocation2 + $0x18] sm:$0xff] %v441
  // Predicated region
  $region30: #{bert_token_classification_forward.15} parent=0 // pred_check
    %p446 = pneg %p24
  $region31: #{bert_token_classification_forward.15} parent=0 // pred_check_branch
    %448 = sbr.rel (%p446) target = $region33
  $region32: #{bert_token_classification_forward.15} parent=0 // pred_region
    %v449 = vld [vmem:[#allocation2] sm:$0xff]
    %v450 = vld [vmem:[#allocation2 + $0x8] sm:$0xff]
    %v451 = vld [vmem:[#allocation2 + $0x10] sm:$0xff]
    %v452 = vld [vmem:[#allocation2 + $0x18] sm:$0xff]
    %v453 = vld [vmem:[%s2] sm:$0x1]
    %v455 = vlaneseq
    %v456 = vshrl.u32 %v455, 7
    %v457 = vsub.s32 0, %v456
    %v458 = vrot.slane %v453, %v457
    %v460 = vadd.f32 %v449, %v458
    %v461 = vadd.f32 %v450, %v458
    %v462 = vadd.f32 %v451, %v458
    %v463 = vadd.f32 %v452, %v458
    %v464 = vld [vmem:[%s3] sm:$0xf]
    %v465 = vld [vmem:[%s3 + $0x4] sm:$0xf]
    %v466 = vld [vmem:[%s3 + $0x8] sm:$0xf]
    %v467 = vld [vmem:[%s3 + $0xc] sm:$0xf]
    %v468 = vunpack.c.l.bf16 %v464
    %v469 = vunpack.c.l.bf16 %v465
    %v470 = vunpack.c.l.bf16 %v466
    %v471 = vunpack.c.l.bf16 %v467
    %v472 = vadd.f32 %v460, %v468
    %v473 = vadd.f32 %v461, %v469
    %v474 = vadd.f32 %v462, %v470
    %v475 = vadd.f32 %v463, %v471
    %476 = vadd.xlane.f32.xlu0 %v472
    %v477 = vpop.xlane.xlu0 %476
    %478 = vadd.xlane.f32.xlu0 %v473
    %v479 = vpop.xlane.xlu0 %478
    %480 = vadd.xlane.f32.xlu0 %v474
    %v481 = vpop.xlane.xlu0 %480
    %482 = vadd.xlane.f32.xlu0 %v475
    %v483 = vpop.xlane.xlu0 %482
    %v484 = vrcp.pop 128.0
    %v485 = vmul.f32 %v477, %v484
    %v486 = vmul.f32 %v479, %v484
    %v487 = vmul.f32 %v481, %v484
    %v488 = vmul.f32 %v483, %v484
    %v489 = vsub.f32 %v472, %v485
    %v490 = vsub.f32 %v473, %v486
    %v491 = vsub.f32 %v474, %v487
    %v492 = vsub.f32 %v475, %v488
    %v493 = vmul.f32 %v489, %v489
    %v494 = vmul.f32 %v490, %v490
    %v495 = vmul.f32 %v491, %v491
    %v496 = vmul.f32 %v492, %v492
    %497 = vadd.xlane.f32.xlu0 %v493
    %v498 = vpop.xlane.xlu0 %497
    %499 = vadd.xlane.f32.xlu0 %v494
    %v500 = vpop.xlane.xlu0 %499
    %501 = vadd.xlane.f32.xlu0 %v495
    %v502 = vpop.xlane.xlu0 %501
    %503 = vadd.xlane.f32.xlu0 %v496
    %v504 = vpop.xlane.xlu0 %503
    %v505 = vmul.f32 %v498, %v484
    %v506 = vmul.f32 %v500, %v484
    %v507 = vmul.f32 %v502, %v484
    %v508 = vmul.f32 %v504, %v484
    %v509 = vadd.f32 %v505, 1e-05
    %v510 = vadd.f32 %v506, 1e-05
    %v511 = vadd.f32 %v507, 1e-05
    %v512 = vadd.f32 %v508, 1e-05
    %v513 = vrsqrt.pop %v509
    %v514 = vrsqrt.pop %v510
    %v515 = vrsqrt.pop %v511
    %v516 = vrsqrt.pop %v512
    %v517 = vmul.f32 %v489, %v513
    %v518 = vmul.f32 %v490, %v514
    %v519 = vmul.f32 %v491, %v515
    %v520 = vmul.f32 %v492, %v516
    %v521 = vld [vmem:[%s4] sm:$0x1]
    %v523 = vlaneseq
    %v524 = vshrl.u32 %v523, 7
    %v525 = vsub.s32 0, %v524
    %v526 = vrot.slane %v521, %v525
    %v528 = vmul.f32 %v517, %v526
    %v529 = vmul.f32 %v518, %v526
    %v530 = vmul.f32 %v519, %v526
    %v531 = vmul.f32 %v520, %v526
    %v532 = vld [vmem:[%s5] sm:$0x1]
    %v534 = vlaneseq
    %v535 = vshrl.u32 %v534, 7
    %v536 = vsub.s32 0, %v535
    %v537 = vrot.slane %v532, %v536
    %v539 = vadd.f32 %v528, %v537
    %v540 = vadd.f32 %v529, %v537
    %v541 = vadd.f32 %v530, %v537
    %v542 = vadd.f32 %v531, %v537
    %v543 = vpack.c.bf16 %v540, %v539
    %v544 = vpack.c.bf16 %v542, %v541
    %v547 = vunpack.c.l.b16 %v543
    %v548 = vunpack.c.h.b16 %v543
    %v549 = vunpack.c.l.b16 %v544
    %v550 = vunpack.c.h.b16 %v544
    %v551 = vpack.c.b16 %v547, %v547
    %v552 = vpack.c.b16 %v548, %v548
    %v553 = vpack.c.b16 %v549, %v549
    %v554 = vpack.c.b16 %v550, %v550
    %559 = vst [vmem:[%s6] sm:$0xf] %v551
    %560 = vst [vmem:[%s6 + $0x4] sm:$0xf] %v552
    %561 = vst [vmem:[%s6 + $0x8] sm:$0xf] %v553
    %562 = vst [vmem:[%s6 + $0xc] sm:$0xf] %v554
  $region33: #{bert_token_classification_forward.15} parent=0 // pred_fallthru
    _
  // Predicated region
  $region34: #{bert_token_classification_forward.15} parent=0 // pred_check
    _
  $region35: #{bert_token_classification_forward.15} parent=0 // pred_check_branch
    %564 = sbr.rel (0) target = $region37
  $region36: #{bert_token_classification_forward.15} parent=0 // pred_region
    _
  $region37: #{bert_token_classification_forward.15} parent=0 // pred_fallthru
    _
  // Predicated region
  $region38: #{bert_token_classification_forward.15} parent=0 // pred_check
    _
  $region39: #{bert_token_classification_forward.15} parent=0 // pred_check_branch
    %566 = sbr.rel (0) target = $region41
  $region40: #{bert_token_classification_forward.15} parent=0 // pred_region
    _
  $region41: #{bert_token_classification_forward.15} parent=0 // pred_fallthru
    _

// kernel: bert_token_classification_forward.21
$region0: #{bert_token_classification_forward.21}
  #allocation0 [shape = 'u32[]', space=smem, size = 0x4, offset = 0x4, fixed_abs, tag = 'smem constant byte address 0x4 - core index']
  #allocation1 [shape = 'u32[144,128]{1,0:T(1,128)}', space=vmem, size = 0x12000, scoped, tag = 'internal scratch']
  %s0 = inlined_call_operand.vmem [shape: bf16[32,128], index: 0, kind: input, shape index: {}]
  %s1 = inlined_call_operand.vmem [shape: bf16[128,128], index: 1, kind: input, shape index: {}]
  %s2 = inlined_call_operand.vmem [shape: f32[1,128], index: 2, kind: input, shape index: {}]
  %s3 = inlined_call_operand.vmem [shape: f32[32,128], index: 3, kind: output, shape index: {}]
  %s4 = sld [smem:[#allocation0]]
  $region22: #{bert_token_classification_forward.21} parent=0
    _
  %s6 = ssub.s32 1, %s4
  %s7 = scalar_select 0, %s6, %s4
  // Predicated region
  $region2: #{bert_token_classification_forward.21} parent=0 // pred_check
    _
  $region3: #{bert_token_classification_forward.21} parent=0 // pred_check_branch
    %9 = sbr.rel (0) target = $region5
  $region4: #{bert_token_classification_forward.21} parent=0 // pred_region
    _
  $region5: #{bert_token_classification_forward.21} parent=0 // pred_fallthru
    _
  // Predicated region
  $region6: #{bert_token_classification_forward.21} parent=0 // pred_check
    _
  $region7: #{bert_token_classification_forward.21} parent=0 // pred_check_branch
    %11 = sbr.rel (0) target = $region9
  $region8: #{bert_token_classification_forward.21} parent=0 // pred_region
    _
  $region9: #{bert_token_classification_forward.21} parent=0 // pred_fallthru
    _
  // Predicated region
  $region10: #{bert_token_classification_forward.21} parent=0 // pred_check
    _
  $region11: #{bert_token_classification_forward.21} parent=0 // pred_check_branch
    %13 = sbr.rel (0) target = $region13
  $region12: #{bert_token_classification_forward.21} parent=0 // pred_region
    _
  $region13: #{bert_token_classification_forward.21} parent=0 // pred_fallthru
    _
  %v15 = vld [vmem:[%s0] sm:$0xf]
  %v16 = vld [vmem:[%s0 + $0x4] sm:$0xf]
  %v17 = vld [vmem:[%s0 + $0x8] sm:$0xf]
  %v18 = vld [vmem:[%s0 + $0xc] sm:$0xf]
  %v19 = vld [vmem:[%s1] sm:$0xf]
  %v20 = vld [vmem:[%s1 + $0x4] sm:$0xf]
  %v21 = vld [vmem:[%s1 + $0x8] sm:$0xf]
  %v22 = vld [vmem:[%s1 + $0xc] sm:$0xf]
  %v23 = vld [vmem:[%s1 + $0x10] sm:$0xf]
  %v24 = vld [vmem:[%s1 + $0x14] sm:$0xf]
  %v25 = vld [vmem:[%s1 + $0x18] sm:$0xf]
  %v26 = vld [vmem:[%s1 + $0x1c] sm:$0xf]
  %v27 = vld [vmem:[%s1 + $0x20] sm:$0xf]
  %v28 = vld [vmem:[%s1 + $0x24] sm:$0xf]
  %v29 = vld [vmem:[%s1 + $0x28] sm:$0xf]
  %v30 = vld [vmem:[%s1 + $0x2c] sm:$0xf]
  %v31 = vld [vmem:[%s1 + $0x30] sm:$0xf]
  %v32 = vld [vmem:[%s1 + $0x34] sm:$0xf]
  %v33 = vld [vmem:[%s1 + $0x38] sm:$0xf]
  %v34 = vld [vmem:[%s1 + $0x3c] sm:$0xf]
  %v35 = vld [vmem:[%s2] sm:$0x1]
  %v37 = vlaneseq
  %v38 = vshrl.u32 %v37, 7
  %v39 = vsub.s32 0, %v38
  %v40 = vrot.slane %v35, %v39
  %v46 = vunpack.c.l.b16 %v15
  %v47 = vunpack.c.l.b16 %v16
  %v48 = vunpack.c.l.b16 %v17
  %v49 = vunpack.c.l.b16 %v18
  %v50 = vpack.c.b16 %v47, %v46
  %v51 = vpack.c.b16 %v49, %v48
  %v70 = vunpack.c.l.b16 %v19
  %v71 = vunpack.c.l.b16 %v20
  %v72 = vunpack.c.l.b16 %v21
  %v73 = vunpack.c.l.b16 %v22
  %v74 = vunpack.c.l.b16 %v23
  %v75 = vunpack.c.l.b16 %v24
  %v76 = vunpack.c.l.b16 %v25
  %v77 = vunpack.c.l.b16 %v26
  %v78 = vunpack.c.l.b16 %v27
  %v79 = vunpack.c.l.b16 %v28
  %v80 = vunpack.c.l.b16 %v29
  %v81 = vunpack.c.l.b16 %v30
  %v82 = vunpack.c.l.b16 %v31
  %v83 = vunpack.c.l.b16 %v32
  %v84 = vunpack.c.l.b16 %v33
  %v85 = vunpack.c.l.b16 %v34
  %v86 = vpack.c.b16 %v71, %v70
  %v87 = vpack.c.b16 %v73, %v72
  %v88 = vpack.c.b16 %v75, %v74
  %v89 = vpack.c.b16 %v77, %v76
  %v90 = vpack.c.b16 %v79, %v78
  %v91 = vpack.c.b16 %v81, %v80
  %v92 = vpack.c.b16 %v83, %v82
  %v93 = vpack.c.b16 %v85, %v84
  %102 = vmatprep.subr.bf16.mxu0 0
  %103 = vmatpush1.bf16.msra.mxu0 %v86
  %104 = vmatprep.subr.bf16.mxu0 0
  %105 = vmatpush1.bf16.msra.mxu0 %v87
  %106 = vmatprep.subr.bf16.mxu0 0
  %107 = vmatpush1.bf16.msra.mxu0 %v88
  %108 = vmatprep.subr.bf16.mxu0 0
  %109 = vmatpush1.bf16.msra.mxu0 %v89
  %110 = vmatprep.subr.bf16.mxu0 0
  %111 = vmatpush1.bf16.msra.mxu0 %v90
  %112 = vmatprep.subr.bf16.mxu0 0
  %113 = vmatpush1.bf16.msra.mxu0 %v91
  %114 = vmatprep.subr.bf16.mxu0 0
  %115 = vmatpush1.bf16.msra.mxu0 %v92
  %116 = vmatprep.subr.bf16.mxu0 0
  %117 = vmatpush1.bf16.msra.mxu0 %v93
  %118 = vmatprep.subr.bf16.mxu0 0
  %119 = vmatpush1.bf16.msra.mxu0 0
  %120 = vmatprep.subr.bf16.mxu0 0
  %121 = vmatpush1.bf16.msra.mxu0 0
  %122 = vmatprep.subr.bf16.mxu0 0
  %123 = vmatpush1.bf16.msra.mxu0 0
  %124 = vmatprep.subr.bf16.mxu0 0
  %125 = vmatpush1.bf16.msra.mxu0 0
  %126 = vmatprep.subr.bf16.mxu0 0
  %127 = vmatpush1.bf16.msra.mxu0 0
  %128 = vmatprep.subr.bf16.mxu0 0
  %129 = vmatpush1.bf16.msra.mxu0 0
  %130 = vmatprep.subr.bf16.mxu0 0
  %131 = vmatpush1.bf16.msra.mxu0 0
  %132 = vmatprep.subr.bf16.mxu0 0
  %133 = vmatpush1.bf16.msra.mxu0 0
  %134 = vmatprep.mubr.bf16.mxu0 0
  %135 = vmatmul.mubr.bf16.gmra.mrb[0].mxu0 %v50
  %v136 = vpop.f32.mrb[0].mxu0
  %v137 = vadd.f32 %v40, %v136
  %v138 = vpop.f32.mrb[0].mxu0
  %v139 = vpop.f32.mrb[0].mxu0
  %v140 = vadd.f32 %v40, %v139
  %v141 = vpop.f32.mrb[0].mxu0
  %142 = vmatprep.mubr.bf16.mxu0 0
  %143 = vmatmul.mubr.bf16.gmra.mrb[0].mxu0 %v51
  %v144 = vpop.f32.mrb[0].mxu0
  %v145 = vadd.f32 %v40, %v144
  %v146 = vpop.f32.mrb[0].mxu0
  %v147 = vpop.f32.mrb[0].mxu0
  %v148 = vadd.f32 %v40, %v147
  %v149 = vpop.f32.mrb[0].mxu0
  %150 = vdwg.mxu0
  %151 = vmax.xlane.f32.xlu0 %v137
  %v152 = vpop.xlane.xlu0 %151
  %153 = vmax.xlane.f32.xlu0 %v140
  %v154 = vpop.xlane.xlu0 %153
  %155 = vmax.xlane.f32.xlu0 %v145
  %v156 = vpop.xlane.xlu0 %155
  %157 = vmax.xlane.f32.xlu0 %v148
  %v158 = vpop.xlane.xlu0 %157
  %v159 = vsub.f32 %v137, %v152
  %v160 = vsub.f32 %v140, %v154
  %v161 = vsub.f32 %v145, %v156
  %v162 = vsub.f32 %v148, %v158
  %v163 = vmul.f32 %v159, 1.442695
  %v164 = vpow.pop %v163
  %v165 = vmul.f32 %v160, 1.442695
  %v166 = vpow.pop %v165
  %v167 = vmul.f32 %v161, 1.442695
  %v168 = vpow.pop %v167
  %v169 = vmul.f32 %v162, 1.442695
  %v170 = vpow.pop %v169
  %171 = vadd.xlane.f32.xlu0 %v164
  %v172 = vpop.xlane.xlu0 %171
  %173 = vadd.xlane.f32.xlu0 %v166
  %v174 = vpop.xlane.xlu0 %173
  %175 = vadd.xlane.f32.xlu0 %v168
  %v176 = vpop.xlane.xlu0 %175
  %177 = vadd.xlane.f32.xlu0 %v170
  %v178 = vpop.xlane.xlu0 %177
  %v179 = vlog2.pop %v172
  %v180 = vmul.f32 %v179, 0.6931472
  %v181 = vlog2.pop %v174
  %v182 = vmul.f32 %v181, 0.6931472
  %v183 = vlog2.pop %v176
  %v184 = vmul.f32 %v183, 0.6931472
  %v185 = vlog2.pop %v178
  %v186 = vmul.f32 %v185, 0.6931472
  %v187 = vsub.f32 %v159, %v180
  %v188 = vsub.f32 %v160, %v182
  %v189 = vsub.f32 %v161, %v184
  %v190 = vsub.f32 %v162, %v186
  %191 = vst [vmem:[%s3] sm:$0xff] %v187
  %192 = vst [vmem:[%s3 + $0x8] sm:$0xff] %v188
  %193 = vst [vmem:[%s3 + $0x10] sm:$0xff] %v189
  %194 = vst [vmem:[%s3 + $0x18] sm:$0xff] %v190
  // Predicated region
  $region14: #{bert_token_classification_forward.21} parent=0 // pred_check
    _
  $region15: #{bert_token_classification_forward.21} parent=0 // pred_check_branch
    %196 = sbr.rel (0) target = $region17
  $region16: #{bert_token_classification_forward.21} parent=0 // pred_region
    _
  $region17: #{bert_token_classification_forward.21} parent=0 // pred_fallthru
    _
  // Predicated region
  $region18: #{bert_token_classification_forward.21} parent=0 // pred_check
    _
  $region19: #{bert_token_classification_forward.21} parent=0 // pred_check_branch
    %198 = sbr.rel (0) target = $region21
  $region20: #{bert_token_classification_forward.21} parent=0 // pred_region
    _
  $region21: #{bert_token_classification_forward.21} parent=0 // pred_fallthru
    _

</llo_original>
